<compile_context>
chip_gen: v6e
topology: v6e:2x2x1
jax: 0.10.0
libtpu: 0.0.40
codegen_flags: <defaults>
</compile_context>

<pallas_src>
import functools

import jax
import jax.numpy as jnp
from jax.experimental import pallas as pl
from jax.experimental.pallas import tpu as pltpu


# ------------------------------------------------------------------ kernel --

def _fused_model_kernel(
        # embedding inputs
        src_ref, args_ref, w_args_ref, b_args_ref,
        # stacked per-layer weights (leading axis = layer, blocked by grid)
        wq_ref, wk_ref, wv_ref, wo_ref,
        g1_ref, b1_ref, g2_ref, b2_ref,
        wf1_ref, bf1_ref, wf2_ref, bf2_ref,
        # heads
        seq_pool_ref, w_z_ref, b_z_ref,
        hist_ref, wh1_ref, bh1_ref, wh2_ref, bh2_ref,
        agents_ref, agent_pool_ref, wa1_ref, ba1_ref, wa2_ref, ba2_ref,
        # output
        z_ref,
        # scratch (resident activation)
        x_sc,
        *, B, S):
    l = pl.program_id(0)
    n_layers = pl.num_programs(0)
    D = x_sc.shape[-1]
    eps = 1e-5
    scale = 1.0 / (D ** 0.5)

    # ---- layer 0: source embedding = cmd_emb + pos_emb + args @ W_args ----
    @pl.when(l == 0)
    def _init():
        a_emb = jnp.dot(args_ref[...], w_args_ref[...],
                        preferred_element_type=jnp.float32) + b_args_ref[...]
        x_sc[...] = src_ref[...] + a_emb

    # ---- one pre-LN transformer encoder layer (whole batch, one grid step) ----
    x = x_sc[...]                                              # [B*S, D]
    mu = jnp.mean(x, axis=-1, keepdims=True)
    var = jnp.mean((x - mu) ** 2, axis=-1, keepdims=True)
    h = (x - mu) * jax.lax.rsqrt(var + eps) * g1_ref[0] + b1_ref[0]

    q = jnp.dot(h, wq_ref[0], preferred_element_type=jnp.float32).reshape(B, S, D)
    k = jnp.dot(h, wk_ref[0], preferred_element_type=jnp.float32).reshape(B, S, D)
    v = jnp.dot(h, wv_ref[0], preferred_element_type=jnp.float32).reshape(B, S, D)

    s = jnp.einsum("bqd,bkd->bqk", q, k,
                   preferred_element_type=jnp.float32) * scale
    s = s - jnp.max(s, axis=-1, keepdims=True)
    p = jnp.exp(s)
    p = p * pl.reciprocal(jnp.sum(p, axis=-1, keepdims=True), approx=True)
    ctx = jnp.einsum("bqk,bkd->bqd", p, v,
                     preferred_element_type=jnp.float32).reshape(B * S, D)
    x1 = x + jnp.dot(ctx, wo_ref[0], preferred_element_type=jnp.float32)

    mu2 = jnp.mean(x1, axis=-1, keepdims=True)
    var2 = jnp.mean((x1 - mu2) ** 2, axis=-1, keepdims=True)
    h2 = (x1 - mu2) * jax.lax.rsqrt(var2 + eps) * g2_ref[0] + b2_ref[0]
    f = jnp.dot(h2, wf1_ref[0], preferred_element_type=jnp.float32) + bf1_ref[0]
    f = jnp.maximum(f, 0.0)
    f = jnp.dot(f, wf2_ref[0], preferred_element_type=jnp.float32) + bf2_ref[0]
    x_sc[...] = x1 + f

    # ---- last layer: mean pool + latent head + history MLP + agent MLP ----
    @pl.when(l == n_layers - 1)
    def _tail():
        # sequence mean pool as a block-diagonal matmul: [B, B*S] @ [B*S, D]
        pooled = jnp.dot(seq_pool_ref[...], x_sc[...],
                         preferred_element_type=jnp.float32)            # [B, D]
        z = jnp.dot(pooled, w_z_ref[...],
                    preferred_element_type=jnp.float32) + b_z_ref[...]  # [B, dz]

        # history MLP
        hh = jnp.dot(hist_ref[...], wh1_ref[...],
                     preferred_element_type=jnp.float32) + bh1_ref[...]
        hh = jnp.maximum(hh, 0.0)
        hh = jnp.dot(hh, wh2_ref[...],
                     preferred_element_type=jnp.float32) + bh2_ref[...]

        # agent MLP + validity-masked mean (mask weights baked into agent_pool)
        aa = jnp.dot(agents_ref[...], wa1_ref[...],
                     preferred_element_type=jnp.float32) + ba1_ref[...]
        aa = jnp.maximum(aa, 0.0)
        aa = jnp.dot(aa, wa2_ref[...],
                     preferred_element_type=jnp.float32) + ba2_ref[...]  # [B*A, dz]
        agg = jnp.dot(agent_pool_ref[...], aa,
                      preferred_element_type=jnp.float32)                # [B, dz]

        z_ref[...] = z + hh + agg


# ------------------------------------------------------------- parameters ----

def init_params(key, *, n_commands, n_args, d_model, d_ff, n_layers,
                dim_z, max_seq_len, f_hist, f_agent, d_hidden):
    keys = iter(jax.random.split(key, 32))

    def dense(shape, scale=None):
        fan_in = shape[-2] if len(shape) >= 2 else shape[0]
        s = scale if scale is not None else 1.0 / jnp.sqrt(fan_in)
        return jax.random.normal(next(keys), shape, jnp.float32) * s

    L = n_layers
    p = {
        "cmd_embed": dense((n_commands, d_model), 0.02),
        "pos_embed": dense((max_seq_len, d_model), 0.02),
        "w_args": dense((n_args, d_model)),
        "b_args": jnp.zeros((1, d_model), jnp.float32),
        "w_z": dense((d_model, dim_z)),
        "b_z": jnp.zeros((1, dim_z), jnp.float32),
        # history MLP
        "wh1": dense((f_hist, d_hidden)), "bh1": jnp.zeros((1, d_hidden), jnp.float32),
        "wh2": dense((d_hidden, dim_z)), "bh2": jnp.zeros((1, dim_z), jnp.float32),
        # agent MLP
        "wa1": dense((f_agent, d_hidden)), "ba1": jnp.zeros((1, d_hidden), jnp.float32),
        "wa2": dense((d_hidden, dim_z)), "ba2": jnp.zeros((1, dim_z), jnp.float32),
        # stacked encoder-layer weights, leading axis = layer (for the grid)
        "wq": dense((L, d_model, d_model)), "wk": dense((L, d_model, d_model)),
        "wv": dense((L, d_model, d_model)), "wo": dense((L, d_model, d_model)),
        "g1": jnp.ones((L, 1, d_model), jnp.float32),
        "b1": jnp.zeros((L, 1, d_model), jnp.float32),
        "g2": jnp.ones((L, 1, d_model), jnp.float32),
        "b2": jnp.zeros((L, 1, d_model), jnp.float32),
        "wf1": dense((L, d_model, d_ff)), "bf1": jnp.zeros((L, 1, d_ff), jnp.float32),
        "wf2": dense((L, d_ff, d_model)), "bf2": jnp.zeros((L, 1, d_model), jnp.float32),
    }
    return p


# ---------------------------------------------------------------- forward ----

def model_trajectory_forward(params, x):
    (commands_enc, args_enc, commands_dec, args_dec,
     history, agents, agents_validity, _cfg_params, encode_mode) = x
    del commands_dec, args_dec, _cfg_params   # dropped by ModelTrajectory.forward

    B, S = commands_enc.shape
    A, f_agent = agents.shape[1], agents.shape[2]
    n_args = args_enc.shape[-1]
    L, D, _ = params["wq"].shape
    Dff = params["wf1"].shape[-1]
    dim_z = params["w_z"].shape[1]
    f_hist = history.shape[1]
    d_hidden = params["wh1"].shape[1]

    # ---- JAX glue: gathers / reshapes / pooling-weight construction only ----
    src_base = (params["cmd_embed"][commands_enc]
                + params["pos_embed"][None, :S, :]).reshape(B * S, D)
    args_flat = args_enc.reshape(B * S, n_args).astype(jnp.float32)
    agents_flat = agents.reshape(B * A, f_agent).astype(jnp.float32)
    history_f = history.astype(jnp.float32)

    # block-diagonal pooling matrices so pooling runs as MXU matmuls in-kernel
    eye_b = jnp.eye(B, dtype=jnp.float32)
    seq_pool = jnp.repeat(eye_b, S, axis=1) * (1.0 / S)                  # [B, B*S]
    vmask = agents_validity.astype(jnp.float32)                          # [B, A]
    inv_cnt = 1.0 / jnp.maximum(jnp.sum(vmask, axis=1, keepdims=True), 1.0)
    agent_pool = jnp.repeat(eye_b, A, axis=1) * (vmask * inv_cnt).reshape(1, B * A)

    kernel = functools.partial(_fused_model_kernel, B=B, S=S)

    def const2(shape):
        return pl.BlockSpec(shape, lambda l: (0, 0))

    def layer3(shape):
        return pl.BlockSpec(shape, lambda l: (l, 0, 0))

    in_specs = [
        const2((B * S, D)),                      # src_base
        const2((B * S, n_args)),                 # args_flat
        const2((n_args, D)), const2((1, D)),     # w_args, b_args
        layer3((1, D, D)), layer3((1, D, D)), layer3((1, D, D)), layer3((1, D, D)),
        layer3((1, 1, D)), layer3((1, 1, D)), layer3((1, 1, D)), layer3((1, 1, D)),
        layer3((1, D, Dff)), layer3((1, 1, Dff)), layer3((1, Dff, D)), layer3((1, 1, D)),
        const2((B, B * S)),                      # seq_pool
        const2((D, dim_z)), const2((1, dim_z)),  # w_z, b_z
        const2((B, f_hist)),
        const2((f_hist, d_hidden)), const2((1, d_hidden)),
        const2((d_hidden, dim_z)), const2((1, dim_z)),
        const2((B * A, f_agent)),
        const2((B, B * A)),                      # agent_pool
        const2((f_agent, d_hidden)), const2((1, d_hidden)),
        const2((d_hidden, dim_z)), const2((1, dim_z)),
    ]

    operands = (src_base, args_flat, params["w_args"], params["b_args"],
                params["wq"], params["wk"], params["wv"], params["wo"],
                params["g1"], params["b1"], params["g2"], params["b2"],
                params["wf1"], params["bf1"], params["wf2"], params["bf2"],
                seq_pool, params["w_z"], params["b_z"],
                history_f,
                params["wh1"], params["bh1"], params["wh2"], params["bh2"],
                agents_flat, agent_pool,
                params["wa1"], params["ba1"], params["wa2"], params["ba2"])

    # rough cost estimate so XLA schedules neighbors around the fused call
    flops = (2 * B * S * n_args * D
             + L * (2 * B * S * D * D * 4          # q/k/v/o projections
                    + 2 * B * S * S * D * 2        # attention matmuls
                    + 2 * B * S * D * Dff * 2)     # FFN
             + 2 * B * D * dim_z
             + 2 * B * (f_hist * d_hidden + d_hidden * dim_z)
             + 2 * B * A * (f_agent * d_hidden + d_hidden * dim_z))
    bytes_accessed = sum(int(o.size) * 4 for o in operands) + B * dim_z * 4
    cost = pl.CostEstimate(flops=int(flops),
                           transcendentals=int(L * B * S * S),
                           bytes_accessed=int(bytes_accessed))

    z = pl.pallas_call(
        kernel,
        out_shape=jax.ShapeDtypeStruct((B, dim_z), jnp.float32),
        grid=(L,),
        in_specs=in_specs,
        out_specs=pl.BlockSpec((B, dim_z), lambda l: (0, 0)),
        scratch_shapes=[pltpu.VMEM((B * S, D), jnp.float32)],
        compiler_params=pltpu.CompilerParams(
            dimension_semantics=("arbitrary",)),   # layer axis: sequential / resident
        cost_estimate=cost,
    )(*operands)

    if encode_mode:
        return z
    return z  # TODO(synk): decoder path unreachable from ModelTrajectory.forward


# ------------------------------------------------------------------- main ----

if __name__ == "__main__":
    # small shapes consistent with the module
    B, S = 2, 8            # batch, sequence length
    n_commands, n_args = 6, 8
    d_model, d_ff, n_layers = 32, 64, 2
    dim_z = 32
    A, f_agent, f_hist = 4, 8, 16
    d_hidden = 32

    key = jax.random.PRNGKey(0)
    kp, k1, k2, k3, k4, k5 = jax.random.split(key, 6)

    params = init_params(kp, n_commands=n_commands, n_args=n_args,
                         d_model=d_model, d_ff=d_ff, n_layers=n_layers,
                         dim_z=dim_z, max_seq_len=S, f_hist=f_hist,
                         f_agent=f_agent, d_hidden=d_hidden)

    commands_enc = jax.random.randint(k1, (B, S), 0, n_commands, dtype=jnp.int32)
    args_enc = jax.random.normal(k2, (B, S, n_args), jnp.float32)
    commands_dec = commands_enc            # unused by forward
    args_dec = args_enc                    # unused by forward
    history = jax.random.normal(k3, (B, f_hist), jnp.float32)
    agents = jax.random.normal(k4, (B, A, f_agent), jnp.float32)
    agents_validity = (jax.random.uniform(k5, (B, A)) > 0.3).astype(jnp.float32)

    x = (commands_enc, args_enc, commands_dec, args_dec,
         history, agents, agents_validity, None, True)

    z = model_trajectory_forward(params, x)
    jax.block_until_ready(z)
    assert z.shape == (B, dim_z) and z.dtype == jnp.float32
    print("KERNEL_OK")
</pallas_src>

<mosaic_0001>
module attributes {stable_mosaic.version = 11 : i64} {
  func.func @_fused_model_kernel(%arg0: i32, %arg1: memref<16x32xf32, #tpu.memory_space<vmem>>, %arg2: memref<16x8xf32, #tpu.memory_space<vmem>>, %arg3: memref<8x32xf32, #tpu.memory_space<vmem>>, %arg4: memref<1x32xf32, #tpu.memory_space<vmem>>, %arg5: memref<1x32x32xf32, #tpu.memory_space<vmem>>, %arg6: memref<1x32x32xf32, #tpu.memory_space<vmem>>, %arg7: memref<1x32x32xf32, #tpu.memory_space<vmem>>, %arg8: memref<1x32x32xf32, #tpu.memory_space<vmem>>, %arg9: memref<1x1x32xf32, #tpu.memory_space<vmem>>, %arg10: memref<1x1x32xf32, #tpu.memory_space<vmem>>, %arg11: memref<1x1x32xf32, #tpu.memory_space<vmem>>, %arg12: memref<1x1x32xf32, #tpu.memory_space<vmem>>, %arg13: memref<1x32x64xf32, #tpu.memory_space<vmem>>, %arg14: memref<1x1x64xf32, #tpu.memory_space<vmem>>, %arg15: memref<1x64x32xf32, #tpu.memory_space<vmem>>, %arg16: memref<1x1x32xf32, #tpu.memory_space<vmem>>, %arg17: memref<2x16xf32, #tpu.memory_space<vmem>>, %arg18: memref<32x32xf32, #tpu.memory_space<vmem>>, %arg19: memref<1x32xf32, #tpu.memory_space<vmem>>, %arg20: memref<2x16xf32, #tpu.memory_space<vmem>>, %arg21: memref<16x32xf32, #tpu.memory_space<vmem>>, %arg22: memref<1x32xf32, #tpu.memory_space<vmem>>, %arg23: memref<32x32xf32, #tpu.memory_space<vmem>>, %arg24: memref<1x32xf32, #tpu.memory_space<vmem>>, %arg25: memref<8x8xf32, #tpu.memory_space<vmem>>, %arg26: memref<2x8xf32, #tpu.memory_space<vmem>>, %arg27: memref<8x32xf32, #tpu.memory_space<vmem>>, %arg28: memref<1x32xf32, #tpu.memory_space<vmem>>, %arg29: memref<32x32xf32, #tpu.memory_space<vmem>>, %arg30: memref<1x32xf32, #tpu.memory_space<vmem>>, %arg31: memref<2x32xf32, #tpu.memory_space<vmem>>, %arg32: memref<16x32xf32, #tpu.memory_space<vmem>>) attributes {dimension_semantics = [#tpu.dimension_semantics<arbitrary>], iteration_bounds = array<i64: 2>, scalar_prefetch = 0 : i64, scratch_operands = 1 : i64, tpu.core_type = #tpu.core_type<tc>, window_params = [{pipeline_mode = #tpu.pipeline_mode<synchronous>, transform_indices = @transform_0, window_bounds = array<i64: 16, 32>}, {pipeline_mode = #tpu.pipeline_mode<synchronous>, transform_indices = @transform_1, window_bounds = array<i64: 16, 8>}, {pipeline_mode = #tpu.pipeline_mode<synchronous>, transform_indices = @transform_2, window_bounds = array<i64: 8, 32>}, {pipeline_mode = #tpu.pipeline_mode<synchronous>, transform_indices = @transform_3, window_bounds = array<i64: 1, 32>}, {transform_indices = @transform_4, window_bounds = array<i64: 1, 32, 32>}, {transform_indices = @transform_5, window_bounds = array<i64: 1, 32, 32>}, {transform_indices = @transform_6, window_bounds = array<i64: 1, 32, 32>}, {transform_indices = @transform_7, window_bounds = array<i64: 1, 32, 32>}, {transform_indices = @transform_8, window_bounds = array<i64: 1, 1, 32>}, {transform_indices = @transform_9, window_bounds = array<i64: 1, 1, 32>}, {transform_indices = @transform_10, window_bounds = array<i64: 1, 1, 32>}, {transform_indices = @transform_11, window_bounds = array<i64: 1, 1, 32>}, {transform_indices = @transform_12, window_bounds = array<i64: 1, 32, 64>}, {transform_indices = @transform_13, window_bounds = array<i64: 1, 1, 64>}, {transform_indices = @transform_14, window_bounds = array<i64: 1, 64, 32>}, {transform_indices = @transform_15, window_bounds = array<i64: 1, 1, 32>}, {pipeline_mode = #tpu.pipeline_mode<synchronous>, transform_indices = @transform_16, window_bounds = array<i64: 2, 16>}, {pipeline_mode = #tpu.pipeline_mode<synchronous>, transform_indices = @transform_17, window_bounds = array<i64: 32, 32>}, {pipeline_mode = #tpu.pipeline_mode<synchronous>, transform_indices = @transform_18, window_bounds = array<i64: 1, 32>}, {pipeline_mode = #tpu.pipeline_mode<synchronous>, transform_indices = @transform_19, window_bounds = array<i64: 2, 16>}, {pipeline_mode = #tpu.pipeline_mode<synchronous>, transform_indices = @transform_20, window_bounds = array<i64: 16, 32>}, {pipeline_mode = #tpu.pipeline_mode<synchronous>, transform_indices = @transform_21, window_bounds = array<i64: 1, 32>}, {pipeline_mode = #tpu.pipeline_mode<synchronous>, transform_indices = @transform_22, window_bounds = array<i64: 32, 32>}, {pipeline_mode = #tpu.pipeline_mode<synchronous>, transform_indices = @transform_23, window_bounds = array<i64: 1, 32>}, {pipeline_mode = #tpu.pipeline_mode<synchronous>, transform_indices = @transform_24, window_bounds = array<i64: 8, 8>}, {pipeline_mode = #tpu.pipeline_mode<synchronous>, transform_indices = @transform_25, window_bounds = array<i64: 2, 8>}, {pipeline_mode = #tpu.pipeline_mode<synchronous>, transform_indices = @transform_26, window_bounds = array<i64: 8, 32>}, {pipeline_mode = #tpu.pipeline_mode<synchronous>, transform_indices = @transform_27, window_bounds = array<i64: 1, 32>}, {pipeline_mode = #tpu.pipeline_mode<synchronous>, transform_indices = @transform_28, window_bounds = array<i64: 32, 32>}, {pipeline_mode = #tpu.pipeline_mode<synchronous>, transform_indices = @transform_29, window_bounds = array<i64: 1, 32>}, {pipeline_mode = #tpu.pipeline_mode<synchronous>, transform_indices = @transform_30, window_bounds = array<i64: 2, 32>}]} {
    %c0_i32 = arith.constant 0 : i32
    %0 = arith.cmpi eq, %arg0, %c0_i32 : i32
    %1 = arith.extui %0 : i1 to i32
    %c0_i32_0 = arith.constant 0 : i32
    %2 = arith.cmpi ne, %1, %c0_i32_0 : i32
    scf.if %2 {
      %c0_62 = arith.constant 0 : index
      %c0_63 = arith.constant 0 : index
      %108 = vector.load %arg2[%c0_62, %c0_63] : memref<16x8xf32, #tpu.memory_space<vmem>>, vector<16x8xf32>
      %c0_64 = arith.constant 0 : index
      %c0_65 = arith.constant 0 : index
      %109 = vector.load %arg3[%c0_64, %c0_65] : memref<8x32xf32, #tpu.memory_space<vmem>>, vector<8x32xf32>
      %cst_66 = arith.constant dense<0.000000e+00> : vector<16x32xf32>
      %110 = tpu.matmul %108, %109, %cst_66 {dimension_numbers = #tpu.dot_dimension_numbers<[1], [0], [0], [1], [0, 0, 1, 1], [], []>} : vector<16x8xf32>, vector<8x32xf32>, vector<16x32xf32> -> vector<16x32xf32>
      %c0_67 = arith.constant 0 : index
      %c0_68 = arith.constant 0 : index
      %111 = vector.load %arg4[%c0_67, %c0_68] : memref<1x32xf32, #tpu.memory_space<vmem>>, vector<1x32xf32>
      %112 = vector.broadcast %111 : vector<1x32xf32> to vector<16x32xf32>
      %113 = arith.addf %110, %112 : vector<16x32xf32>
      %c0_69 = arith.constant 0 : index
      %c0_70 = arith.constant 0 : index
      %114 = vector.load %arg1[%c0_69, %c0_70] : memref<16x32xf32, #tpu.memory_space<vmem>>, vector<16x32xf32>
      %115 = arith.addf %114, %113 : vector<16x32xf32>
      %c0_71 = arith.constant 0 : index
      %c0_72 = arith.constant 0 : index
      %116 = vector.load %arg32[%c0_71, %c0_72] : memref<16x32xf32, #tpu.memory_space<vmem>>, vector<16x32xf32>
      tpu.vector_store %arg32[%c0_71, %c0_72], %115 {strides = array<i32>} : memref<16x32xf32, #tpu.memory_space<vmem>>, vector<16x32xf32>,
    } else {
    }
    %c0 = arith.constant 0 : index
    %c0_1 = arith.constant 0 : index
    %3 = vector.load %arg32[%c0, %c0_1] : memref<16x32xf32, #tpu.memory_space<vmem>>, vector<16x32xf32>
    %cst = arith.constant dense<0.000000e+00> : vector<16xf32>
    %4 = vector.multi_reduction <add>, %3, %cst [1] : vector<16x32xf32> to vector<16xf32>
    %5 = vector.shape_cast %4 : vector<16xf32> to vector<16x1xf32>
    %cst_2 = arith.constant 3.200000e+01 : f32
    %6 = vector.broadcast %cst_2 : f32 to vector<16x1xf32>
    %7 = arith.divf %5, %6 : vector<16x1xf32>
    %8 = vector.broadcast %7 : vector<16x1xf32> to vector<16x32xf32>
    %9 = arith.subf %3, %8 : vector<16x32xf32>
    %10 = arith.mulf %9, %9 : vector<16x32xf32>
    %cst_3 = arith.constant dense<0.000000e+00> : vector<16xf32>
    %11 = vector.multi_reduction <add>, %10, %cst_3 [1] : vector<16x32xf32> to vector<16xf32>
    %12 = vector.shape_cast %11 : vector<16xf32> to vector<16x1xf32>
    %cst_4 = arith.constant 3.200000e+01 : f32
    %13 = vector.broadcast %cst_4 : f32 to vector<16x1xf32>
    %14 = arith.divf %12, %13 : vector<16x1xf32>
    %15 = vector.broadcast %7 : vector<16x1xf32> to vector<16x32xf32>
    %16 = arith.subf %3, %15 : vector<16x32xf32>
    %cst_5 = arith.constant 9.99999974E-6 : f32
    %17 = vector.broadcast %cst_5 : f32 to vector<16x1xf32>
    %18 = arith.addf %14, %17 : vector<16x1xf32>
    %19 = math.rsqrt %18 : vector<16x1xf32>
    %20 = vector.broadcast %19 : vector<16x1xf32> to vector<16x32xf32>
    %21 = arith.mulf %16, %20 : vector<16x32xf32>
    %c0_6 = arith.constant 0 : index
    %c0_7 = arith.constant 0 : index
    %c0_8 = arith.constant 0 : index
    %22 = vector.load %arg9[%c0_6, %c0_7, %c0_8] : memref<1x1x32xf32, #tpu.memory_space<vmem>>, vector<1x1x32xf32>
    %23 = vector.shape_cast %22 : vector<1x1x32xf32> to vector<1x32xf32>
    %24 = vector.broadcast %23 : vector<1x32xf32> to vector<16x32xf32>
    %25 = arith.mulf %21, %24 : vector<16x32xf32>
    %c0_9 = arith.constant 0 : index
    %c0_10 = arith.constant 0 : index
    %c0_11 = arith.constant 0 : index
    %26 = vector.load %arg10[%c0_9, %c0_10, %c0_11] : memref<1x1x32xf32, #tpu.memory_space<vmem>>, vector<1x1x32xf32>
    %27 = vector.shape_cast %26 : vector<1x1x32xf32> to vector<1x32xf32>
    %28 = vector.broadcast %27 : vector<1x32xf32> to vector<16x32xf32>
    %29 = arith.addf %25, %28 : vector<16x32xf32>
    %c0_12 = arith.constant 0 : index
    %c0_13 = arith.constant 0 : index
    %c0_14 = arith.constant 0 : index
    %30 = vector.load %arg5[%c0_12, %c0_13, %c0_14] : memref<1x32x32xf32, #tpu.memory_space<vmem>>, vector<1x32x32xf32>
    %31 = vector.shape_cast %30 : vector<1x32x32xf32> to vector<32x32xf32>
    %cst_15 = arith.constant dense<0.000000e+00> : vector<16x32xf32>
    %32 = tpu.matmul %29, %31, %cst_15 {dimension_numbers = #tpu.dot_dimension_numbers<[1], [0], [0], [1], [0, 0, 1, 1], [], []>} : vector<16x32xf32>, vector<32x32xf32>, vector<16x32xf32> -> vector<16x32xf32>
    %33 = vector.shape_cast %32 : vector<16x32xf32> to vector<2x8x32xf32>
    %c0_16 = arith.constant 0 : index
    %c0_17 = arith.constant 0 : index
    %c0_18 = arith.constant 0 : index
    %34 = vector.load %arg6[%c0_16, %c0_17, %c0_18] : memref<1x32x32xf32, #tpu.memory_space<vmem>>, vector<1x32x32xf32>
    %35 = vector.shape_cast %34 : vector<1x32x32xf32> to vector<32x32xf32>
    %cst_19 = arith.constant dense<0.000000e+00> : vector<16x32xf32>
    %36 = tpu.matmul %29, %35, %cst_19 {dimension_numbers = #tpu.dot_dimension_numbers<[1], [0], [0], [1], [0, 0, 1, 1], [], []>} : vector<16x32xf32>, vector<32x32xf32>, vector<16x32xf32> -> vector<16x32xf32>
    %37 = vector.shape_cast %36 : vector<16x32xf32> to vector<2x8x32xf32>
    %c0_20 = arith.constant 0 : index
    %c0_21 = arith.constant 0 : index
    %c0_22 = arith.constant 0 : index
    %38 = vector.load %arg7[%c0_20, %c0_21, %c0_22] : memref<1x32x32xf32, #tpu.memory_space<vmem>>, vector<1x32x32xf32>
    %39 = vector.shape_cast %38 : vector<1x32x32xf32> to vector<32x32xf32>
    %cst_23 = arith.constant dense<0.000000e+00> : vector<16x32xf32>
    %40 = tpu.matmul %29, %39, %cst_23 {dimension_numbers = #tpu.dot_dimension_numbers<[1], [0], [0], [1], [0, 0, 1, 1], [], []>} : vector<16x32xf32>, vector<32x32xf32>, vector<16x32xf32> -> vector<16x32xf32>
    %41 = vector.shape_cast %40 : vector<16x32xf32> to vector<2x8x32xf32>
    "tpu.trace_start"() <{level = 10 : i32, message = "bqd,bkd->bqk"}> : () -> ()
    %cst_24 = arith.constant dense<0.000000e+00> : vector<2x8x8xf32>
    %42 = tpu.matmul %33, %37, %cst_24 {dimension_numbers = #tpu.dot_dimension_numbers<[2], [2], [1], [1], [0, 0, 0, 1, 1, 1], [0], [0]>} : vector<2x8x32xf32>, vector<2x8x32xf32>, vector<2x8x8xf32> -> vector<2x8x8xf32>
    "tpu.trace_stop"() : () -> ()
    %cst_25 = arith.constant 0.176776692 : f32
    %43 = vector.broadcast %cst_25 : f32 to vector<2x8x8xf32>
    %44 = arith.mulf %42, %43 : vector<2x8x8xf32>
    %cst_26 = arith.constant dense<0xFF800000> : vector<2x8xf32>
    %45 = vector.multi_reduction <maximumf>, %44, %cst_26 [2] : vector<2x8x8xf32> to vector<2x8xf32>
    %46 = vector.shape_cast %45 : vector<2x8xf32> to vector<2x8x1xf32>
    %47 = vector.broadcast %46 : vector<2x8x1xf32> to vector<2x8x8xf32>
    %48 = arith.subf %44, %47 : vector<2x8x8xf32>
    %49 = math.exp %48 : vector<2x8x8xf32>
    %cst_27 = arith.constant dense<0.000000e+00> : vector<2x8xf32>
    %50 = vector.multi_reduction <add>, %49, %cst_27 [2] : vector<2x8x8xf32> to vector<2x8xf32>
    %51 = vector.shape_cast %50 : vector<2x8xf32> to vector<2x8x1xf32>
    %52 = tpu.reciprocal %51 {approx = true} : vector<2x8x1xf32> -> vector<2x8x1xf32>
    %53 = vector.broadcast %52 : vector<2x8x1xf32> to vector<2x8x8xf32>
    %54 = arith.mulf %49, %53 : vector<2x8x8xf32>
    "tpu.trace_start"() <{level = 10 : i32, message = "bqk,bkd->bqd"}> : () -> ()
    %cst_28 = arith.constant dense<0.000000e+00> : vector<2x8x32xf32>
    %55 = tpu.matmul %54, %41, %cst_28 {dimension_numbers = #tpu.dot_dimension_numbers<[2], [1], [1], [2], [0, 0, 0, 1, 1, 2], [0], [0]>} : vector<2x8x8xf32>, vector<2x8x32xf32>, vector<2x8x32xf32> -> vector<2x8x32xf32>
    "tpu.trace_stop"() : () -> ()
    %56 = vector.shape_cast %55 : vector<2x8x32xf32> to vector<16x32xf32>
    %c0_29 = arith.constant 0 : index
    %c0_30 = arith.constant 0 : index
    %c0_31 = arith.constant 0 : index
    %57 = vector.load %arg8[%c0_29, %c0_30, %c0_31] : memref<1x32x32xf32, #tpu.memory_space<vmem>>, vector<1x32x32xf32>
    %58 = vector.shape_cast %57 : vector<1x32x32xf32> to vector<32x32xf32>
    %cst_32 = arith.constant dense<0.000000e+00> : vector<16x32xf32>
    %59 = tpu.matmul %56, %58, %cst_32 {dimension_numbers = #tpu.dot_dimension_numbers<[1], [0], [0], [1], [0, 0, 1, 1], [], []>} : vector<16x32xf32>, vector<32x32xf32>, vector<16x32xf32> -> vector<16x32xf32>
    %60 = arith.addf %3, %59 : vector<16x32xf32>
    %cst_33 = arith.constant dense<0.000000e+00> : vector<16xf32>
    %61 = vector.multi_reduction <add>, %60, %cst_33 [1] : vector<16x32xf32> to vector<16xf32>
    %62 = vector.shape_cast %61 : vector<16xf32> to vector<16x1xf32>
    %cst_34 = arith.constant 3.200000e+01 : f32
    %63 = vector.broadcast %cst_34 : f32 to vector<16x1xf32>
    %64 = arith.divf %62, %63 : vector<16x1xf32>
    %65 = vector.broadcast %64 : vector<16x1xf32> to vector<16x32xf32>
    %66 = arith.subf %60, %65 : vector<16x32xf32>
    %67 = arith.mulf %66, %66 : vector<16x32xf32>
    %cst_35 = arith.constant dense<0.000000e+00> : vector<16xf32>
    %68 = vector.multi_reduction <add>, %67, %cst_35 [1] : vector<16x32xf32> to vector<16xf32>
    %69 = vector.shape_cast %68 : vector<16xf32> to vector<16x1xf32>
    %cst_36 = arith.constant 3.200000e+01 : f32
    %70 = vector.broadcast %cst_36 : f32 to vector<16x1xf32>
    %71 = arith.divf %69, %70 : vector<16x1xf32>
    %72 = vector.broadcast %64 : vector<16x1xf32> to vector<16x32xf32>
    %73 = arith.subf %60, %72 : vector<16x32xf32>
    %cst_37 = arith.constant 9.99999974E-6 : f32
    %74 = vector.broadcast %cst_37 : f32 to vector<16x1xf32>
    %75 = arith.addf %71, %74 : vector<16x1xf32>
    %76 = math.rsqrt %75 : vector<16x1xf32>
    %77 = vector.broadcast %76 : vector<16x1xf32> to vector<16x32xf32>
    %78 = arith.mulf %73, %77 : vector<16x32xf32>
    %c0_38 = arith.constant 0 : index
    %c0_39 = arith.constant 0 : index
    %c0_40 = arith.constant 0 : index
    %79 = vector.load %arg11[%c0_38, %c0_39, %c0_40] : memref<1x1x32xf32, #tpu.memory_space<vmem>>, vector<1x1x32xf32>
    %80 = vector.shape_cast %79 : vector<1x1x32xf32> to vector<1x32xf32>
    %81 = vector.broadcast %80 : vector<1x32xf32> to vector<16x32xf32>
    %82 = arith.mulf %78, %81 : vector<16x32xf32>
    %c0_41 = arith.constant 0 : index
    %c0_42 = arith.constant 0 : index
    %c0_43 = arith.constant 0 : index
    %83 = vector.load %arg12[%c0_41, %c0_42, %c0_43] : memref<1x1x32xf32, #tpu.memory_space<vmem>>, vector<1x1x32xf32>
    %84 = vector.shape_cast %83 : vector<1x1x32xf32> to vector<1x32xf32>
    %85 = vector.broadcast %84 : vector<1x32xf32> to vector<16x32xf32>
    %86 = arith.addf %82, %85 : vector<16x32xf32>
    %c0_44 = arith.constant 0 : index
    %c0_45 = arith.constant 0 : index
    %c0_46 = arith.constant 0 : index
    %87 = vector.load %arg13[%c0_44, %c0_45, %c0_46] : memref<1x32x64xf32, #tpu.memory_space<vmem>>, vector<1x32x64xf32>
    %88 = vector.shape_cast %87 : vector<1x32x64xf32> to vector<32x64xf32>
    %cst_47 = arith.constant dense<0.000000e+00> : vector<16x64xf32>
    %89 = tpu.matmul %86, %88, %cst_47 {dimension_numbers = #tpu.dot_dimension_numbers<[1], [0], [0], [1], [0, 0, 1, 1], [], []>} : vector<16x32xf32>, vector<32x64xf32>, vector<16x64xf32> -> vector<16x64xf32>
    %c0_48 = arith.constant 0 : index
    %c0_49 = arith.constant 0 : index
    %c0_50 = arith.constant 0 : index
    %90 = vector.load %arg14[%c0_48, %c0_49, %c0_50] : memref<1x1x64xf32, #tpu.memory_space<vmem>>, vector<1x1x64xf32>
    %91 = vector.shape_cast %90 : vector<1x1x64xf32> to vector<1x64xf32>
    %92 = vector.broadcast %91 : vector<1x64xf32> to vector<16x64xf32>
    %93 = arith.addf %89, %92 : vector<16x64xf32>
    %cst_51 = arith.constant 0.000000e+00 : f32
    %94 = vector.broadcast %cst_51 : f32 to vector<16x64xf32>
    %95 = arith.maximumf %93, %94 : vector<16x64xf32>
    %c0_52 = arith.constant 0 : index
    %c0_53 = arith.constant 0 : index
    %c0_54 = arith.constant 0 : index
    %96 = vector.load %arg15[%c0_52, %c0_53, %c0_54] : memref<1x64x32xf32, #tpu.memory_space<vmem>>, vector<1x64x32xf32>
    %97 = vector.shape_cast %96 : vector<1x64x32xf32> to vector<64x32xf32>
    %cst_55 = arith.constant dense<0.000000e+00> : vector<16x32xf32>
    %98 = tpu.matmul %95, %97, %cst_55 {dimension_numbers = #tpu.dot_dimension_numbers<[1], [0], [0], [1], [0, 0, 1, 1], [], []>} : vector<16x64xf32>, vector<64x32xf32>, vector<16x32xf32> -> vector<16x32xf32>
    %c0_56 = arith.constant 0 : index
    %c0_57 = arith.constant 0 : index
    %c0_58 = arith.constant 0 : index
    %99 = vector.load %arg16[%c0_56, %c0_57, %c0_58] : memref<1x1x32xf32, #tpu.memory_space<vmem>>, vector<1x1x32xf32>
    %100 = vector.shape_cast %99 : vector<1x1x32xf32> to vector<1x32xf32>
    %101 = vector.broadcast %100 : vector<1x32xf32> to vector<16x32xf32>
    %102 = arith.addf %98, %101 : vector<16x32xf32>
    %103 = arith.addf %60, %102 : vector<16x32xf32>
    %c0_59 = arith.constant 0 : index
    %c0_60 = arith.constant 0 : index
    %104 = vector.load %arg32[%c0_59, %c0_60] : memref<16x32xf32, #tpu.memory_space<vmem>>, vector<16x32xf32>
    tpu.vector_store %arg32[%c0_59, %c0_60], %103 {strides = array<i32>} : memref<16x32xf32, #tpu.memory_space<vmem>>, vector<16x32xf32>,
    %c1_i32 = arith.constant 1 : i32
    %105 = arith.cmpi eq, %arg0, %c1_i32 : i32
    %106 = arith.extui %105 : i1 to i32
    %c0_i32_61 = arith.constant 0 : i32
    %107 = arith.cmpi ne, %106, %c0_i32_61 : i32
    scf.if %107 {
      %c0_62 = arith.constant 0 : index
      %c0_63 = arith.constant 0 : index
      %108 = vector.load %arg17[%c0_62, %c0_63] : memref<2x16xf32, #tpu.memory_space<vmem>>, vector<2x16xf32>
      %c0_64 = arith.constant 0 : index
      %c0_65 = arith.constant 0 : index
      %109 = vector.load %arg32[%c0_64, %c0_65] : memref<16x32xf32, #tpu.memory_space<vmem>>, vector<16x32xf32>
      %cst_66 = arith.constant dense<0.000000e+00> : vector<2x32xf32>
      %110 = tpu.matmul %108, %109, %cst_66 {dimension_numbers = #tpu.dot_dimension_numbers<[1], [0], [0], [1], [0, 0, 1, 1], [], []>} : vector<2x16xf32>, vector<16x32xf32>, vector<2x32xf32> -> vector<2x32xf32>
      %c0_67 = arith.constant 0 : index
      %c0_68 = arith.constant 0 : index
      %111 = vector.load %arg18[%c0_67, %c0_68] : memref<32x32xf32, #tpu.memory_space<vmem>>, vector<32x32xf32>
      %cst_69 = arith.constant dense<0.000000e+00> : vector<2x32xf32>
      %112 = tpu.matmul %110, %111, %cst_69 {dimension_numbers = #tpu.dot_dimension_numbers<[1], [0], [0], [1], [0, 0, 1, 1], [], []>} : vector<2x32xf32>, vector<32x32xf32>, vector<2x32xf32> -> vector<2x32xf32>
      %c0_70 = arith.constant 0 : index
      %c0_71 = arith.constant 0 : index
      %113 = vector.load %arg19[%c0_70, %c0_71] : memref<1x32xf32, #tpu.memory_space<vmem>>, vector<1x32xf32>
      %114 = vector.broadcast %113 : vector<1x32xf32> to vector<2x32xf32>
      %115 = arith.addf %112, %114 : vector<2x32xf32>
      %c0_72 = arith.constant 0 : index
      %c0_73 = arith.constant 0 : index
      %116 = vector.load %arg20[%c0_72, %c0_73] : memref<2x16xf32, #tpu.memory_space<vmem>>, vector<2x16xf32>
      %c0_74 = arith.constant 0 : index
      %c0_75 = arith.constant 0 : index
      %117 = vector.load %arg21[%c0_74, %c0_75] : memref<16x32xf32, #tpu.memory_space<vmem>>, vector<16x32xf32>
      %cst_76 = arith.constant dense<0.000000e+00> : vector<2x32xf32>
      %118 = tpu.matmul %116, %117, %cst_76 {dimension_numbers = #tpu.dot_dimension_numbers<[1], [0], [0], [1], [0, 0, 1, 1], [], []>} : vector<2x16xf32>, vector<16x32xf32>, vector<2x32xf32> -> vector<2x32xf32>
      %c0_77 = arith.constant 0 : index
      %c0_78 = arith.constant 0 : index
      %119 = vector.load %arg22[%c0_77, %c0_78] : memref<1x32xf32, #tpu.memory_space<vmem>>, vector<1x32xf32>
      %120 = vector.broadcast %119 : vector<1x32xf32> to vector<2x32xf32>
      %121 = arith.addf %118, %120 : vector<2x32xf32>
      %cst_79 = arith.constant 0.000000e+00 : f32
      %122 = vector.broadcast %cst_79 : f32 to vector<2x32xf32>
      %123 = arith.maximumf %121, %122 : vector<2x32xf32>
      %c0_80 = arith.constant 0 : index
      %c0_81 = arith.constant 0 : index
      %124 = vector.load %arg23[%c0_80, %c0_81] : memref<32x32xf32, #tpu.memory_space<vmem>>, vector<32x32xf32>
      %cst_82 = arith.constant dense<0.000000e+00> : vector<2x32xf32>
      %125 = tpu.matmul %123, %124, %cst_82 {dimension_numbers = #tpu.dot_dimension_numbers<[1], [0], [0], [1], [0, 0, 1, 1], [], []>} : vector<2x32xf32>, vector<32x32xf32>, vector<2x32xf32> -> vector<2x32xf32>
      %c0_83 = arith.constant 0 : index
      %c0_84 = arith.constant 0 : index
      %126 = vector.load %arg24[%c0_83, %c0_84] : memref<1x32xf32, #tpu.memory_space<vmem>>, vector<1x32xf32>
      %127 = vector.broadcast %126 : vector<1x32xf32> to vector<2x32xf32>
      %128 = arith.addf %125, %127 : vector<2x32xf32>
      %c0_85 = arith.constant 0 : index
      %c0_86 = arith.constant 0 : index
      %129 = vector.load %arg25[%c0_85, %c0_86] : memref<8x8xf32, #tpu.memory_space<vmem>>, vector<8x8xf32>
      %c0_87 = arith.constant 0 : index
      %c0_88 = arith.constant 0 : index
      %130 = vector.load %arg27[%c0_87, %c0_88] : memref<8x32xf32, #tpu.memory_space<vmem>>, vector<8x32xf32>
      %cst_89 = arith.constant dense<0.000000e+00> : vector<8x32xf32>
      %131 = tpu.matmul %129, %130, %cst_89 {dimension_numbers = #tpu.dot_dimension_numbers<[1], [0], [0], [1], [0, 0, 1, 1], [], []>} : vector<8x8xf32>, vector<8x32xf32>, vector<8x32xf32> -> vector<8x32xf32>
      %c0_90 = arith.constant 0 : index
      %c0_91 = arith.constant 0 : index
      %132 = vector.load %arg28[%c0_90, %c0_91] : memref<1x32xf32, #tpu.memory_space<vmem>>, vector<1x32xf32>
      %133 = vector.broadcast %132 : vector<1x32xf32> to vector<8x32xf32>
      %134 = arith.addf %131, %133 : vector<8x32xf32>
      %cst_92 = arith.constant 0.000000e+00 : f32
      %135 = vector.broadcast %cst_92 : f32 to vector<8x32xf32>
      %136 = arith.maximumf %134, %135 : vector<8x32xf32>
      %c0_93 = arith.constant 0 : index
      %c0_94 = arith.constant 0 : index
      %137 = vector.load %arg29[%c0_93, %c0_94] : memref<32x32xf32, #tpu.memory_space<vmem>>, vector<32x32xf32>
      %cst_95 = arith.constant dense<0.000000e+00> : vector<8x32xf32>
      %138 = tpu.matmul %136, %137, %cst_95 {dimension_numbers = #tpu.dot_dimension_numbers<[1], [0], [0], [1], [0, 0, 1, 1], [], []>} : vector<8x32xf32>, vector<32x32xf32>, vector<8x32xf32> -> vector<8x32xf32>
      %c0_96 = arith.constant 0 : index
      %c0_97 = arith.constant 0 : index
      %139 = vector.load %arg30[%c0_96, %c0_97] : memref<1x32xf32, #tpu.memory_space<vmem>>, vector<1x32xf32>
      %140 = vector.broadcast %139 : vector<1x32xf32> to vector<8x32xf32>
      %141 = arith.addf %138, %140 : vector<8x32xf32>
      %c0_98 = arith.constant 0 : index
      %c0_99 = arith.constant 0 : index
      %142 = vector.load %arg26[%c0_98, %c0_99] : memref<2x8xf32, #tpu.memory_space<vmem>>, vector<2x8xf32>
      %cst_100 = arith.constant dense<0.000000e+00> : vector<2x32xf32>
      %143 = tpu.matmul %142, %141, %cst_100 {dimension_numbers = #tpu.dot_dimension_numbers<[1], [0], [0], [1], [0, 0, 1, 1], [], []>} : vector<2x8xf32>, vector<8x32xf32>, vector<2x32xf32> -> vector<2x32xf32>
      %144 = arith.addf %115, %128 : vector<2x32xf32>
      %145 = arith.addf %144, %143 : vector<2x32xf32>
      %c0_101 = arith.constant 0 : index
      %c0_102 = arith.constant 0 : index
      %146 = vector.load %arg31[%c0_101, %c0_102] : memref<2x32xf32, #tpu.memory_space<vmem>>, vector<2x32xf32>
      tpu.vector_store %arg31[%c0_101, %c0_102], %145 {strides = array<i32>} : memref<2x32xf32, #tpu.memory_space<vmem>>, vector<2x32xf32>,
    } else {
    }
    return
  }
  func.func @transform_0(%arg0: i32) -> (i32, i32) {
    %c0_i32 = arith.constant 0 : i32
    %c0_i32_0 = arith.constant 0 : i32
    %c0_i32_1 = arith.constant 0 : i32
    return %c0_i32, %c0_i32_0 : i32, i32
  }
  func.func @transform_1(%arg0: i32) -> (i32, i32) {
    %c0_i32 = arith.constant 0 : i32
    %c0_i32_0 = arith.constant 0 : i32
    %c0_i32_1 = arith.constant 0 : i32
    return %c0_i32, %c0_i32_0 : i32, i32
  }
  func.func @transform_2(%arg0: i32) -> (i32, i32) {
    %c0_i32 = arith.constant 0 : i32
    %c0_i32_0 = arith.constant 0 : i32
    %c0_i32_1 = arith.constant 0 : i32
    return %c0_i32, %c0_i32_0 : i32, i32
  }
  func.func @transform_3(%arg0: i32) -> (i32, i32) {
    %c0_i32 = arith.constant 0 : i32
    %c0_i32_0 = arith.constant 0 : i32
    %c0_i32_1 = arith.constant 0 : i32
    return %c0_i32, %c0_i32_0 : i32, i32
  }
  func.func @transform_4(%arg0: i32) -> (i32, i32, i32) {
    %c0_i32 = arith.constant 0 : i32
    %c0_i32_0 = arith.constant 0 : i32
    %c0_i32_1 = arith.constant 0 : i32
    return %arg0, %c0_i32, %c0_i32_0 : i32, i32, i32
  }
  func.func @transform_5(%arg0: i32) -> (i32, i32, i32) {
    %c0_i32 = arith.constant 0 : i32
    %c0_i32_0 = arith.constant 0 : i32
    %c0_i32_1 = arith.constant 0 : i32
    return %arg0, %c0_i32, %c0_i32_0 : i32, i32, i32
  }
  func.func @transform_6(%arg0: i32) -> (i32, i32, i32) {
    %c0_i32 = arith.constant 0 : i32
    %c0_i32_0 = arith.constant 0 : i32
    %c0_i32_1 = arith.constant 0 : i32
    return %arg0, %c0_i32, %c0_i32_0 : i32, i32, i32
  }
  func.func @transform_7(%arg0: i32) -> (i32, i32, i32) {
    %c0_i32 = arith.constant 0 : i32
    %c0_i32_0 = arith.constant 0 : i32
    %c0_i32_1 = arith.constant 0 : i32
    return %arg0, %c0_i32, %c0_i32_0 : i32, i32, i32
  }
  func.func @transform_8(%arg0: i32) -> (i32, i32, i32) {
    %c0_i32 = arith.constant 0 : i32
    %c0_i32_0 = arith.constant 0 : i32
    %c0_i32_1 = arith.constant 0 : i32
    return %arg0, %c0_i32, %c0_i32_0 : i32, i32, i32
  }
  func.func @transform_9(%arg0: i32) -> (i32, i32, i32) {
    %c0_i32 = arith.constant 0 : i32
    %c0_i32_0 = arith.constant 0 : i32
    %c0_i32_1 = arith.constant 0 : i32
    return %arg0, %c0_i32, %c0_i32_0 : i32, i32, i32
  }
  func.func @transform_10(%arg0: i32) -> (i32, i32, i32) {
    %c0_i32 = arith.constant 0 : i32
    %c0_i32_0 = arith.constant 0 : i32
    %c0_i32_1 = arith.constant 0 : i32
    return %arg0, %c0_i32, %c0_i32_0 : i32, i32, i32
  }
  func.func @transform_11(%arg0: i32) -> (i32, i32, i32) {
    %c0_i32 = arith.constant 0 : i32
    %c0_i32_0 = arith.constant 0 : i32
    %c0_i32_1 = arith.constant 0 : i32
    return %arg0, %c0_i32, %c0_i32_0 : i32, i32, i32
  }
  func.func @transform_12(%arg0: i32) -> (i32, i32, i32) {
    %c0_i32 = arith.constant 0 : i32
    %c0_i32_0 = arith.constant 0 : i32
    %c0_i32_1 = arith.constant 0 : i32
    return %arg0, %c0_i32, %c0_i32_0 : i32, i32, i32
  }
  func.func @transform_13(%arg0: i32) -> (i32, i32, i32) {
    %c0_i32 = arith.constant 0 : i32
    %c0_i32_0 = arith.constant 0 : i32
    %c0_i32_1 = arith.constant 0 : i32
    return %arg0, %c0_i32, %c0_i32_0 : i32, i32, i32
  }
  func.func @transform_14(%arg0: i32) -> (i32, i32, i32) {
    %c0_i32 = arith.constant 0 : i32
    %c0_i32_0 = arith.constant 0 : i32
    %c0_i32_1 = arith.constant 0 : i32
    return %arg0, %c0_i32, %c0_i32_0 : i32, i32, i32
  }
  func.func @transform_15(%arg0: i32) -> (i32, i32, i32) {
    %c0_i32 = arith.constant 0 : i32
    %c0_i32_0 = arith.constant 0 : i32
    %c0_i32_1 = arith.constant 0 : i32
    return %arg0, %c0_i32, %c0_i32_0 : i32, i32, i32
  }
  func.func @transform_16(%arg0: i32) -> (i32, i32) {
    %c0_i32 = arith.constant 0 : i32
    %c0_i32_0 = arith.constant 0 : i32
    %c0_i32_1 = arith.constant 0 : i32
    return %c0_i32, %c0_i32_0 : i32, i32
  }
  func.func @transform_17(%arg0: i32) -> (i32, i32) {
    %c0_i32 = arith.constant 0 : i32
    %c0_i32_0 = arith.constant 0 : i32
    %c0_i32_1 = arith.constant 0 : i32
    return %c0_i32, %c0_i32_0 : i32, i32
  }
  func.func @transform_18(%arg0: i32) -> (i32, i32) {
    %c0_i32 = arith.constant 0 : i32
    %c0_i32_0 = arith.constant 0 : i32
    %c0_i32_1 = arith.constant 0 : i32
    return %c0_i32, %c0_i32_0 : i32, i32
  }
  func.func @transform_19(%arg0: i32) -> (i32, i32) {
    %c0_i32 = arith.constant 0 : i32
    %c0_i32_0 = arith.constant 0 : i32
    %c0_i32_1 = arith.constant 0 : i32
    return %c0_i32, %c0_i32_0 : i32, i32
  }
  func.func @transform_20(%arg0: i32) -> (i32, i32) {
    %c0_i32 = arith.constant 0 : i32
    %c0_i32_0 = arith.constant 0 : i32
    %c0_i32_1 = arith.constant 0 : i32
    return %c0_i32, %c0_i32_0 : i32, i32
  }
  func.func @transform_21(%arg0: i32) -> (i32, i32) {
    %c0_i32 = arith.constant 0 : i32
    %c0_i32_0 = arith.constant 0 : i32
    %c0_i32_1 = arith.constant 0 : i32
    return %c0_i32, %c0_i32_0 : i32, i32
  }
  func.func @transform_22(%arg0: i32) -> (i32, i32) {
    %c0_i32 = arith.constant 0 : i32
    %c0_i32_0 = arith.constant 0 : i32
    %c0_i32_1 = arith.constant 0 : i32
    return %c0_i32, %c0_i32_0 : i32, i32
  }
  func.func @transform_23(%arg0: i32) -> (i32, i32) {
    %c0_i32 = arith.constant 0 : i32
    %c0_i32_0 = arith.constant 0 : i32
    %c0_i32_1 = arith.constant 0 : i32
    return %c0_i32, %c0_i32_0 : i32, i32
  }
  func.func @transform_24(%arg0: i32) -> (i32, i32) {
    %c0_i32 = arith.constant 0 : i32
    %c0_i32_0 = arith.constant 0 : i32
    %c0_i32_1 = arith.constant 0 : i32
    return %c0_i32, %c0_i32_0 : i32, i32
  }
  func.func @transform_25(%arg0: i32) -> (i32, i32) {
    %c0_i32 = arith.constant 0 : i32
    %c0_i32_0 = arith.constant 0 : i32
    %c0_i32_1 = arith.constant 0 : i32
    return %c0_i32, %c0_i32_0 : i32, i32
  }
  func.func @transform_26(%arg0: i32) -> (i32, i32) {
    %c0_i32 = arith.constant 0 : i32
    %c0_i32_0 = arith.constant 0 : i32
    %c0_i32_1 = arith.constant 0 : i32
    return %c0_i32, %c0_i32_0 : i32, i32
  }
  func.func @transform_27(%arg0: i32) -> (i32, i32) {
    %c0_i32 = arith.constant 0 : i32
    %c0_i32_0 = arith.constant 0 : i32
    %c0_i32_1 = arith.constant 0 : i32
    return %c0_i32, %c0_i32_0 : i32, i32
  }
  func.func @transform_28(%arg0: i32) -> (i32, i32) {
    %c0_i32 = arith.constant 0 : i32
    %c0_i32_0 = arith.constant 0 : i32
    %c0_i32_1 = arith.constant 0 : i32
    return %c0_i32, %c0_i32_0 : i32, i32
  }
  func.func @transform_29(%arg0: i32) -> (i32, i32) {
    %c0_i32 = arith.constant 0 : i32
    %c0_i32_0 = arith.constant 0 : i32
    %c0_i32_1 = arith.constant 0 : i32
    return %c0_i32, %c0_i32_0 : i32, i32
  }
  func.func @transform_30(%arg0: i32) -> (i32, i32) {
    %c0_i32 = arith.constant 0 : i32
    %c0_i32_0 = arith.constant 0 : i32
    %c0_i32_1 = arith.constant 0 : i32
    return %c0_i32, %c0_i32_0 : i32, i32
  }
}

</mosaic_0001>

<llo_original>
// kernel: tpu_custom_call.1
$region0: #{tpu_custom_call.1}
  #allocation0 [shape = 'u32[]', space=smem, size = 0x4, offset = 0x4, fixed_abs, tag = 'smem constant byte address 0x4 - core index']
  #allocation1 [shape = 'u32[144,128]{1,0:T(1,128)}', space=vmem, size = 0x12000, scoped, tag = 'internal scratch']
  #allocation2 [shape = 'f32[16,32]{1,0:T(8,128)}', space=vmem, size = 0x2000, scoped, tag = 'scratch operand']
  %s0 = inlined_call_operand.smem [shape: u32[31], index: -1, kind: input, shape index: {}]
  %s1 = sld [smem:[%s0]]
  %s2 = scalar_lea.smem %s0, 1
  %s3 = sld [smem:[%s2]]
  %s4 = scalar_lea.smem %s0, 2
  %s5 = sld [smem:[%s4]]
  %s6 = scalar_lea.smem %s0, 3
  %s7 = sld [smem:[%s6]]
  %s8 = scalar_lea.smem %s0, 4
  %s9 = sld [smem:[%s8]]
  %s10 = scalar_lea.smem %s0, 5
  %s11 = sld [smem:[%s10]]
  %s12 = scalar_lea.smem %s0, 6
  %s13 = sld [smem:[%s12]]
  %s14 = scalar_lea.smem %s0, 7
  %s15 = sld [smem:[%s14]]
  %s16 = scalar_lea.smem %s0, 8
  %s17 = sld [smem:[%s16]]
  %s18 = scalar_lea.smem %s0, 9
  %s19 = sld [smem:[%s18]]
  %s20 = scalar_lea.smem %s0, 10
  %s21 = sld [smem:[%s20]]
  %s22 = scalar_lea.smem %s0, 11
  %s23 = sld [smem:[%s22]]
  %s24 = scalar_lea.smem %s0, 12
  %s25 = sld [smem:[%s24]]
  %s26 = scalar_lea.smem %s0, 13
  %s27 = sld [smem:[%s26]]
  %s28 = scalar_lea.smem %s0, 14
  %s29 = sld [smem:[%s28]]
  %s30 = scalar_lea.smem %s0, 15
  %s31 = sld [smem:[%s30]]
  %s32 = scalar_lea.smem %s0, 16
  %s33 = sld [smem:[%s32]]
  %s34 = scalar_lea.smem %s0, 17
  %s35 = sld [smem:[%s34]]
  %s36 = scalar_lea.smem %s0, 18
  %s37 = sld [smem:[%s36]]
  %s38 = scalar_lea.smem %s0, 19
  %s39 = sld [smem:[%s38]]
  %s40 = scalar_lea.smem %s0, 20
  %s41 = sld [smem:[%s40]]
  %s42 = scalar_lea.smem %s0, 21
  %s43 = sld [smem:[%s42]]
  %s44 = scalar_lea.smem %s0, 22
  %s45 = sld [smem:[%s44]]
  %s46 = scalar_lea.smem %s0, 23
  %s47 = sld [smem:[%s46]]
  %s48 = scalar_lea.smem %s0, 24
  %s49 = sld [smem:[%s48]]
  %s50 = scalar_lea.smem %s0, 25
  %s51 = sld [smem:[%s50]]
  %s52 = scalar_lea.smem %s0, 26
  %s53 = sld [smem:[%s52]]
  %s54 = scalar_lea.smem %s0, 27
  %s55 = sld [smem:[%s54]]
  %s56 = scalar_lea.smem %s0, 28
  %s57 = sld [smem:[%s56]]
  %s58 = scalar_lea.smem %s0, 29
  %s59 = sld [smem:[%s58]]
  %s60 = scalar_lea.smem %s0, 30
  %s61 = sld [smem:[%s60]]
  %s62 = sld [smem:[#allocation0]]
  $region241: #{tpu_custom_call.1} parent=0
    _
  %s64 = ssub.s32 1, %s62
  %s65 = scalar_select 0, %s64, %s62
  $region1: #{tpu_custom_call.1} parent=0
    #allocation3 [shape = 'u8[8192]{0}', space=vmem, size = 0x2000, scoped, tag = 'input window, operand 0, single buffered']
    #allocation4 [shape = 's32[2]{0}', space=sflag, size = 0x8, scoped, tag = 'scoped memory for tpu_custom_call.1']
    #allocation5 [shape = 's32[2]{0}', space=sflag, size = 0x8, scoped, tag = 'scoped memory for tpu_custom_call.1']
    #allocation6 [shape = 'u8[4096]{0}', space=vmem, size = 0x1000, scoped, tag = 'input window, operand 2, single buffered']
    #allocation7 [shape = 's32[1]{0}', space=sflag, size = 0x4, scoped, tag = 'scoped memory for tpu_custom_call.1']
    #allocation8 [shape = 'u8[512]{0}', space=vmem, size = 0x400, scoped, tag = 'input window, operand 3, single buffered']
    #allocation9 [shape = 'u8[32768]{0}', space=vmem, size = 0x8000, scoped, tag = 'input window, operand 7']
    #allocation10 [shape = 's32[2]{0}', space=sflag, size = 0x8, scoped, tag = 'scoped memory for tpu_custom_call.1']
    #allocation11 [shape = 'u8[1024]{0}', space=vmem, size = 0x400, scoped, tag = 'input window, operand 8']
    #allocation12 [shape = 'u8[1024]{0}', space=vmem, size = 0x400, scoped, tag = 'input window, operand 9']
    #allocation13 [shape = 's32[2]{0}', space=sflag, size = 0x8, scoped, tag = 'scoped memory for tpu_custom_call.1']
    #allocation14 [shape = 'u8[1024]{0}', space=vmem, size = 0x400, scoped, tag = 'input window, operand 10']
    #allocation15 [shape = 'u8[1024]{0}', space=vmem, size = 0x400, scoped, tag = 'input window, operand 11']
    #allocation16 [shape = 's32[2]{0}', space=sflag, size = 0x8, scoped, tag = 'scoped memory for tpu_custom_call.1']
    #allocation17 [shape = 'u8[32768]{0}', space=vmem, size = 0x8000, scoped, tag = 'input window, operand 12']
    #allocation18 [shape = 'u8[1024]{0}', space=vmem, size = 0x400, scoped, tag = 'input window, operand 13']
    #allocation19 [shape = 's32[2]{0}', space=sflag, size = 0x8, scoped, tag = 'scoped memory for tpu_custom_call.1']
    #allocation20 [shape = 'u8[1024]{0}', space=vmem, size = 0x400, scoped, tag = 'input window, operand 15']
    #allocation21 [shape = 'u8[1024]{0}', space=vmem, size = 0x400, scoped, tag = 'input window, operand 16, single buffered']
    #allocation22 [shape = 's32[1]{0}', space=sflag, size = 0x4, scoped, tag = 'scoped memory for tpu_custom_call.1']
    #allocation23 [shape = 'u8[512]{0}', space=vmem, size = 0x400, scoped, tag = 'input window, operand 18, single buffered']
    #allocation24 [shape = 'u8[1024]{0}', space=vmem, size = 0x400, scoped, tag = 'input window, operand 19, single buffered']
    #allocation25 [shape = 's32[1]{0}', space=sflag, size = 0x4, scoped, tag = 'scoped memory for tpu_custom_call.1']
    #allocation26 [shape = 'u8[8192]{0}', space=vmem, size = 0x2000, scoped, tag = 'input window, operand 20, single buffered']
    #allocation27 [shape = 'u8[512]{0}', space=vmem, size = 0x400, scoped, tag = 'input window, operand 21, single buffered']
    #allocation28 [shape = 's32[1]{0}', space=sflag, size = 0x4, scoped, tag = 'scoped memory for tpu_custom_call.1']
    #allocation29 [shape = 'u8[512]{0}', space=vmem, size = 0x400, scoped, tag = 'input window, operand 23, single buffered']
    #allocation30 [shape = 'u8[4096]{0}', space=vmem, size = 0x1000, scoped, tag = 'input window, operand 24, single buffered']
    #allocation31 [shape = 's32[1]{0}', space=sflag, size = 0x4, scoped, tag = 'scoped memory for tpu_custom_call.1']
    #allocation32 [shape = 'u8[4096]{0}', space=vmem, size = 0x1000, scoped, tag = 'input window, operand 26, single buffered']
    #allocation33 [shape = 'u8[16384]{0}', space=vmem, size = 0x4000, scoped, tag = 'input window, operand 28, single buffered']
    #allocation34 [shape = 's32[1]{0}', space=sflag, size = 0x4, scoped, tag = 'scoped memory for tpu_custom_call.1']
    #allocation35 [shape = 'u8[1024]{0}', space=vmem, size = 0x400, scoped, tag = 'output window, operand 0, single buffered']
    %66 = vsyncpa [#allocation4], 0
    %67 = vsyncpa [#allocation7], 0
    %68 = vsyncpa [#allocation10], 0
    %s69 = scalar_lea.sflag [#allocation10], 1
    %70 = vsyncpa %s69, 0
    %71 = vsyncpa [#allocation13], 0
    %s72 = scalar_lea.sflag [#allocation13], 1
    %73 = vsyncpa %s72, 0
    %74 = vsyncpa [#allocation16], 0
    %s75 = scalar_lea.sflag [#allocation16], 1
    %76 = vsyncpa %s75, 0
    %77 = vsyncpa [#allocation19], 0
    %s78 = scalar_lea.sflag [#allocation19], 1
    %79 = vsyncpa %s78, 0
    %80 = vsyncpa [#allocation22], 0
    %81 = vsyncpa [#allocation25], 0
    %82 = vsyncpa [#allocation28], 0
    %83 = vsyncpa [#allocation31], 0
    %84 = vsyncpa [#allocation34], 0
    %85 = vsyncpa [#allocation5], 0
    loop: start=0, step=1, limit=4
    $region2: #{tpu_custom_call.1} parent=1 // loop_pre_header
      _
    $region3: #{tpu_custom_call.1} parent=1 // loop_header
      %s87 = sphi 0, %s91
      %p88 = scmp.ge.s32.totalorder %s87, 4
      %s95 = sphi 0, %s95
      %s97 = sphi 0, %s95
      %s98 = sphi 0, %s97
      %s112 = sphi 0, %s98
      %s116 = sphi 0, %s116
      %s118 = sphi 0, %s116
      %s119 = sphi 0, %s118
      %s133 = sphi 0, %s119
      %s137 = sphi 0, %s137
      %s139 = sphi 0, %s137
      %s140 = sphi 0, %s139
      %s154 = sphi 0, %s140
      %s158 = sphi 0, %s158
      %s160 = sphi 0, %s158
      %s161 = sphi 0, %s160
      %s175 = sphi 0, %s161
      %s181 = sphi 0, %s183
      %s184 = sphi 0, %s181
      %s185 = sphi 0, %s184
      %s201 = sphi 0, %s185
      %s207 = sphi 0, %s209
      %s210 = sphi 0, %s207
      %s211 = sphi 0, %s210
      %s227 = sphi 0, %s211
      %s233 = sphi 0, %s235
      %s236 = sphi 0, %s233
      %s237 = sphi 0, %s236
      %s253 = sphi 0, %s237
      %s259 = sphi 0, %s261
      %s262 = sphi 0, %s259
      %s263 = sphi 0, %s262
      %s279 = sphi 0, %s263
      %s285 = sphi 0, %s287
      %s288 = sphi 0, %s285
      %s289 = sphi 0, %s288
      %s305 = sphi 0, %s289
      %s311 = sphi 0, %s313
      %s314 = sphi 0, %s311
      %s315 = sphi 0, %s314
      %s331 = sphi 0, %s315
      %s337 = sphi 0, %s339
      %s340 = sphi 0, %s337
      %s341 = sphi 0, %s340
      %s357 = sphi 0, %s341
      %s363 = sphi 0, %s365
      %s366 = sphi 0, %s363
      %s367 = sphi 0, %s366
      %s383 = sphi 0, %s367
      %s389 = sphi 0, %s391
      %s392 = sphi 0, %s389
      %s393 = sphi 0, %s392
      %s409 = sphi 0, %s393
      %s415 = sphi 0, %s417
      %s418 = sphi 0, %s415
      %s419 = sphi 0, %s418
      %s435 = sphi 0, %s419
      %s441 = sphi 0, %s443
      %s444 = sphi 0, %s441
      %s445 = sphi 0, %s444
      %s461 = sphi 0, %s445
      %s467 = sphi 0, %s469
      %s470 = sphi 0, %s467
      %s471 = sphi 0, %s470
      %s487 = sphi 0, %s471
      %s491 = sphi 0, %s491
      %s493 = sphi 0, %s491
      %s494 = sphi 0, %s493
      %s508 = sphi 0, %s494
      %s512 = sphi 0, %s512
      %s514 = sphi 0, %s512
      %s515 = sphi 0, %s514
      %s529 = sphi 0, %s515
      %s533 = sphi 0, %s533
      %s535 = sphi 0, %s533
      %s536 = sphi 0, %s535
      %s550 = sphi 0, %s536
      %s554 = sphi 0, %s554
      %s556 = sphi 0, %s554
      %s557 = sphi 0, %s556
      %s571 = sphi 0, %s557
      %s575 = sphi 0, %s575
      %s577 = sphi 0, %s575
      %s578 = sphi 0, %s577
      %s592 = sphi 0, %s578
      %s596 = sphi 0, %s596
      %s598 = sphi 0, %s596
      %s599 = sphi 0, %s598
      %s613 = sphi 0, %s599
      %s617 = sphi 0, %s617
      %s619 = sphi 0, %s617
      %s620 = sphi 0, %s619
      %s634 = sphi 0, %s620
      %s638 = sphi 0, %s638
      %s640 = sphi 0, %s638
      %s641 = sphi 0, %s640
      %s655 = sphi 0, %s641
      %s659 = sphi 0, %s659
      %s661 = sphi 0, %s659
      %s662 = sphi 0, %s661
      %s676 = sphi 0, %s662
      %s680 = sphi 0, %s680
      %s682 = sphi 0, %s680
      %s683 = sphi 0, %s682
      %s697 = sphi 0, %s683
      %s701 = sphi 0, %s701
      %s703 = sphi 0, %s701
      %s704 = sphi 0, %s703
      %s718 = sphi 0, %s704
      %s722 = sphi 0, %s722
      %s724 = sphi 0, %s722
      %s725 = sphi 0, %s724
      %s739 = sphi 0, %s725
      %s743 = sphi 0, %s743
      %s745 = sphi 0, %s743
      %s746 = sphi 0, %s745
      %s760 = sphi 0, %s746
      %s764 = sphi 0, %s764
      %s766 = sphi 0, %s764
      %s767 = sphi 0, %s766
      %s781 = sphi 0, %s767
      %s785 = sphi 0, %s785
      %s787 = sphi 0, %s785
      %s788 = sphi 0, %s787
      %s802 = sphi 0, %s788
    $region4: #{tpu_custom_call.1} parent=1 // loop_header_branch
      %90 = sbr.rel (%p88) target = $region8
    $region5: #{tpu_custom_call.1} parent=1 // loop_body
      %s92 = ssub.s32 %s87, 1
      %s93 = ssub.s32 %s87, 2
      %s94 = sadd.s32 %s87, 1
      %s96 = sadd.s32 %s95, 1
      %p99 = scmp.eq.s32.totalorder %s87, 1
      %p100 = scmp.ne.s32.totalorder %s95, %s97
      %p101 = scmp.eq.s32.totalorder %s87, 0
      %p102 = por %p100, %p101
      %p103 = scmp.ne.s32.totalorder %s95, %s97
      %p104 = scmp.eq.s32.totalorder %s92, 1
      %p105 = por %p103, %p104
      %p106 = scmp.ne.s32.totalorder %s97, %s98
      %p107 = scmp.eq.s32.totalorder %s92, 0
      %p108 = por %p106, %p107
      %p109 = scmp.ne.s32.totalorder %s97, %s98
      %p110 = scmp.eq.s32.totalorder %s93, 1
      %p111 = por %p109, %p110
      %p113 = scmp.ne.s32.totalorder %s98, %s112
      %p114 = scmp.eq.s32.totalorder %s93, 0
      %p115 = por %p113, %p114
      %s117 = sadd.s32 %s116, 1
      %p120 = scmp.eq.s32.totalorder %s87, 1
      %p121 = scmp.ne.s32.totalorder %s116, %s118
      %p122 = scmp.eq.s32.totalorder %s87, 0
      %p123 = por %p121, %p122
      %p124 = scmp.ne.s32.totalorder %s116, %s118
      %p125 = scmp.eq.s32.totalorder %s92, 1
      %p126 = por %p124, %p125
      %p127 = scmp.ne.s32.totalorder %s118, %s119
      %p128 = scmp.eq.s32.totalorder %s92, 0
      %p129 = por %p127, %p128
      %p130 = scmp.ne.s32.totalorder %s118, %s119
      %p131 = scmp.eq.s32.totalorder %s93, 1
      %p132 = por %p130, %p131
      %p134 = scmp.ne.s32.totalorder %s119, %s133
      %p135 = scmp.eq.s32.totalorder %s93, 0
      %p136 = por %p134, %p135
      %s138 = sadd.s32 %s137, 1
      %p141 = scmp.eq.s32.totalorder %s87, 1
      %p142 = scmp.ne.s32.totalorder %s137, %s139
      %p143 = scmp.eq.s32.totalorder %s87, 0
      %p144 = por %p142, %p143
      %p145 = scmp.ne.s32.totalorder %s137, %s139
      %p146 = scmp.eq.s32.totalorder %s92, 1
      %p147 = por %p145, %p146
      %p148 = scmp.ne.s32.totalorder %s139, %s140
      %p149 = scmp.eq.s32.totalorder %s92, 0
      %p150 = por %p148, %p149
      %p151 = scmp.ne.s32.totalorder %s139, %s140
      %p152 = scmp.eq.s32.totalorder %s93, 1
      %p153 = por %p151, %p152
      %p155 = scmp.ne.s32.totalorder %s140, %s154
      %p156 = scmp.eq.s32.totalorder %s93, 0
      %p157 = por %p155, %p156
      %s159 = sadd.s32 %s158, 1
      %p162 = scmp.eq.s32.totalorder %s87, 1
      %p163 = scmp.ne.s32.totalorder %s158, %s160
      %p164 = scmp.eq.s32.totalorder %s87, 0
      %p165 = por %p163, %p164
      %p166 = scmp.ne.s32.totalorder %s158, %s160
      %p167 = scmp.eq.s32.totalorder %s92, 1
      %p168 = por %p166, %p167
      %p169 = scmp.ne.s32.totalorder %s160, %s161
      %p170 = scmp.eq.s32.totalorder %s92, 0
      %p171 = por %p169, %p170
      %p172 = scmp.ne.s32.totalorder %s160, %s161
      %p173 = scmp.eq.s32.totalorder %s93, 1
      %p174 = por %p172, %p173
      %p176 = scmp.ne.s32.totalorder %s161, %s175
      %p177 = scmp.eq.s32.totalorder %s93, 0
      %p178 = por %p176, %p177
      %s179 = ssub.s32 %s87, %s94
      %p180 = scmp.eq.s32.totalorder %s179, 0
      %s182 = sadd.s32 %s181, 1
      %s183 = scalar_select %p180, %s181, %s182
      %p186 = pneg %p180
      %p187 = scmp.eq.s32.totalorder %s87, 1
      %p188 = por %p186, %p187
      %p189 = scmp.ne.s32.totalorder %s181, %s184
      %p190 = scmp.eq.s32.totalorder %s87, 0
      %p191 = por %p189, %p190
      %p192 = scmp.ne.s32.totalorder %s181, %s184
      %p193 = scmp.eq.s32.totalorder %s92, 1
      %p194 = por %p192, %p193
      %p195 = scmp.ne.s32.totalorder %s184, %s185
      %p196 = scmp.eq.s32.totalorder %s92, 0
      %p197 = por %p195, %p196
      %p198 = scmp.ne.s32.totalorder %s184, %s185
      %p199 = scmp.eq.s32.totalorder %s93, 1
      %p200 = por %p198, %p199
      %p202 = scmp.ne.s32.totalorder %s185, %s201
      %p203 = scmp.eq.s32.totalorder %s93, 0
      %p204 = por %p202, %p203
      %s205 = ssub.s32 %s87, %s94
      %p206 = scmp.eq.s32.totalorder %s205, 0
      %s208 = sadd.s32 %s207, 1
      %s209 = scalar_select %p206, %s207, %s208
      %p212 = pneg %p206
      %p213 = scmp.eq.s32.totalorder %s87, 1
      %p214 = por %p212, %p213
      %p215 = scmp.ne.s32.totalorder %s207, %s210
      %p216 = scmp.eq.s32.totalorder %s87, 0
      %p217 = por %p215, %p216
      %p218 = scmp.ne.s32.totalorder %s207, %s210
      %p219 = scmp.eq.s32.totalorder %s92, 1
      %p220 = por %p218, %p219
      %p221 = scmp.ne.s32.totalorder %s210, %s211
      %p222 = scmp.eq.s32.totalorder %s92, 0
      %p223 = por %p221, %p222
      %p224 = scmp.ne.s32.totalorder %s210, %s211
      %p225 = scmp.eq.s32.totalorder %s93, 1
      %p226 = por %p224, %p225
      %p228 = scmp.ne.s32.totalorder %s211, %s227
      %p229 = scmp.eq.s32.totalorder %s93, 0
      %p230 = por %p228, %p229
      %s231 = ssub.s32 %s87, %s94
      %p232 = scmp.eq.s32.totalorder %s231, 0
      %s234 = sadd.s32 %s233, 1
      %s235 = scalar_select %p232, %s233, %s234
      %p238 = pneg %p232
      %p239 = scmp.eq.s32.totalorder %s87, 1
      %p240 = por %p238, %p239
      %p241 = scmp.ne.s32.totalorder %s233, %s236
      %p242 = scmp.eq.s32.totalorder %s87, 0
      %p243 = por %p241, %p242
      %p244 = scmp.ne.s32.totalorder %s233, %s236
      %p245 = scmp.eq.s32.totalorder %s92, 1
      %p246 = por %p244, %p245
      %p247 = scmp.ne.s32.totalorder %s236, %s237
      %p248 = scmp.eq.s32.totalorder %s92, 0
      %p249 = por %p247, %p248
      %p250 = scmp.ne.s32.totalorder %s236, %s237
      %p251 = scmp.eq.s32.totalorder %s93, 1
      %p252 = por %p250, %p251
      %p254 = scmp.ne.s32.totalorder %s237, %s253
      %p255 = scmp.eq.s32.totalorder %s93, 0
      %p256 = por %p254, %p255
      %s257 = ssub.s32 %s87, %s94
      %p258 = scmp.eq.s32.totalorder %s257, 0
      %s260 = sadd.s32 %s259, 1
      %s261 = scalar_select %p258, %s259, %s260
      %p264 = pneg %p258
      %p265 = scmp.eq.s32.totalorder %s87, 1
      %p266 = por %p264, %p265
      %p267 = scmp.ne.s32.totalorder %s259, %s262
      %p268 = scmp.eq.s32.totalorder %s87, 0
      %p269 = por %p267, %p268
      %p270 = scmp.ne.s32.totalorder %s259, %s262
      %p271 = scmp.eq.s32.totalorder %s92, 1
      %p272 = por %p270, %p271
      %p273 = scmp.ne.s32.totalorder %s262, %s263
      %p274 = scmp.eq.s32.totalorder %s92, 0
      %p275 = por %p273, %p274
      %p276 = scmp.ne.s32.totalorder %s262, %s263
      %p277 = scmp.eq.s32.totalorder %s93, 1
      %p278 = por %p276, %p277
      %p280 = scmp.ne.s32.totalorder %s263, %s279
      %p281 = scmp.eq.s32.totalorder %s93, 0
      %p282 = por %p280, %p281
      %s283 = ssub.s32 %s87, %s94
      %p284 = scmp.eq.s32.totalorder %s283, 0
      %s286 = sadd.s32 %s285, 1
      %s287 = scalar_select %p284, %s285, %s286
      %p290 = pneg %p284
      %p291 = scmp.eq.s32.totalorder %s87, 1
      %p292 = por %p290, %p291
      %p293 = scmp.ne.s32.totalorder %s285, %s288
      %p294 = scmp.eq.s32.totalorder %s87, 0
      %p295 = por %p293, %p294
      %p296 = scmp.ne.s32.totalorder %s285, %s288
      %p297 = scmp.eq.s32.totalorder %s92, 1
      %p298 = por %p296, %p297
      %p299 = scmp.ne.s32.totalorder %s288, %s289
      %p300 = scmp.eq.s32.totalorder %s92, 0
      %p301 = por %p299, %p300
      %p302 = scmp.ne.s32.totalorder %s288, %s289
      %p303 = scmp.eq.s32.totalorder %s93, 1
      %p304 = por %p302, %p303
      %p306 = scmp.ne.s32.totalorder %s289, %s305
      %p307 = scmp.eq.s32.totalorder %s93, 0
      %p308 = por %p306, %p307
      %s309 = ssub.s32 %s87, %s94
      %p310 = scmp.eq.s32.totalorder %s309, 0
      %s312 = sadd.s32 %s311, 1
      %s313 = scalar_select %p310, %s311, %s312
      %p316 = pneg %p310
      %p317 = scmp.eq.s32.totalorder %s87, 1
      %p318 = por %p316, %p317
      %p319 = scmp.ne.s32.totalorder %s311, %s314
      %p320 = scmp.eq.s32.totalorder %s87, 0
      %p321 = por %p319, %p320
      %p322 = scmp.ne.s32.totalorder %s311, %s314
      %p323 = scmp.eq.s32.totalorder %s92, 1
      %p324 = por %p322, %p323
      %p325 = scmp.ne.s32.totalorder %s314, %s315
      %p326 = scmp.eq.s32.totalorder %s92, 0
      %p327 = por %p325, %p326
      %p328 = scmp.ne.s32.totalorder %s314, %s315
      %p329 = scmp.eq.s32.totalorder %s93, 1
      %p330 = por %p328, %p329
      %p332 = scmp.ne.s32.totalorder %s315, %s331
      %p333 = scmp.eq.s32.totalorder %s93, 0
      %p334 = por %p332, %p333
      %s335 = ssub.s32 %s87, %s94
      %p336 = scmp.eq.s32.totalorder %s335, 0
      %s338 = sadd.s32 %s337, 1
      %s339 = scalar_select %p336, %s337, %s338
      %p342 = pneg %p336
      %p343 = scmp.eq.s32.totalorder %s87, 1
      %p344 = por %p342, %p343
      %p345 = scmp.ne.s32.totalorder %s337, %s340
      %p346 = scmp.eq.s32.totalorder %s87, 0
      %p347 = por %p345, %p346
      %p348 = scmp.ne.s32.totalorder %s337, %s340
      %p349 = scmp.eq.s32.totalorder %s92, 1
      %p350 = por %p348, %p349
      %p351 = scmp.ne.s32.totalorder %s340, %s341
      %p352 = scmp.eq.s32.totalorder %s92, 0
      %p353 = por %p351, %p352
      %p354 = scmp.ne.s32.totalorder %s340, %s341
      %p355 = scmp.eq.s32.totalorder %s93, 1
      %p356 = por %p354, %p355
      %p358 = scmp.ne.s32.totalorder %s341, %s357
      %p359 = scmp.eq.s32.totalorder %s93, 0
      %p360 = por %p358, %p359
      %s361 = ssub.s32 %s87, %s94
      %p362 = scmp.eq.s32.totalorder %s361, 0
      %s364 = sadd.s32 %s363, 1
      %s365 = scalar_select %p362, %s363, %s364
      %p368 = pneg %p362
      %p369 = scmp.eq.s32.totalorder %s87, 1
      %p370 = por %p368, %p369
      %p371 = scmp.ne.s32.totalorder %s363, %s366
      %p372 = scmp.eq.s32.totalorder %s87, 0
      %p373 = por %p371, %p372
      %p374 = scmp.ne.s32.totalorder %s363, %s366
      %p375 = scmp.eq.s32.totalorder %s92, 1
      %p376 = por %p374, %p375
      %p377 = scmp.ne.s32.totalorder %s366, %s367
      %p378 = scmp.eq.s32.totalorder %s92, 0
      %p379 = por %p377, %p378
      %p380 = scmp.ne.s32.totalorder %s366, %s367
      %p381 = scmp.eq.s32.totalorder %s93, 1
      %p382 = por %p380, %p381
      %p384 = scmp.ne.s32.totalorder %s367, %s383
      %p385 = scmp.eq.s32.totalorder %s93, 0
      %p386 = por %p384, %p385
      %s387 = ssub.s32 %s87, %s94
      %p388 = scmp.eq.s32.totalorder %s387, 0
      %s390 = sadd.s32 %s389, 1
      %s391 = scalar_select %p388, %s389, %s390
      %p394 = pneg %p388
      %p395 = scmp.eq.s32.totalorder %s87, 1
      %p396 = por %p394, %p395
      %p397 = scmp.ne.s32.totalorder %s389, %s392
      %p398 = scmp.eq.s32.totalorder %s87, 0
      %p399 = por %p397, %p398
      %p400 = scmp.ne.s32.totalorder %s389, %s392
      %p401 = scmp.eq.s32.totalorder %s92, 1
      %p402 = por %p400, %p401
      %p403 = scmp.ne.s32.totalorder %s392, %s393
      %p404 = scmp.eq.s32.totalorder %s92, 0
      %p405 = por %p403, %p404
      %p406 = scmp.ne.s32.totalorder %s392, %s393
      %p407 = scmp.eq.s32.totalorder %s93, 1
      %p408 = por %p406, %p407
      %p410 = scmp.ne.s32.totalorder %s393, %s409
      %p411 = scmp.eq.s32.totalorder %s93, 0
      %p412 = por %p410, %p411
      %s413 = ssub.s32 %s87, %s94
      %p414 = scmp.eq.s32.totalorder %s413, 0
      %s416 = sadd.s32 %s415, 1
      %s417 = scalar_select %p414, %s415, %s416
      %p420 = pneg %p414
      %p421 = scmp.eq.s32.totalorder %s87, 1
      %p422 = por %p420, %p421
      %p423 = scmp.ne.s32.totalorder %s415, %s418
      %p424 = scmp.eq.s32.totalorder %s87, 0
      %p425 = por %p423, %p424
      %p426 = scmp.ne.s32.totalorder %s415, %s418
      %p427 = scmp.eq.s32.totalorder %s92, 1
      %p428 = por %p426, %p427
      %p429 = scmp.ne.s32.totalorder %s418, %s419
      %p430 = scmp.eq.s32.totalorder %s92, 0
      %p431 = por %p429, %p430
      %p432 = scmp.ne.s32.totalorder %s418, %s419
      %p433 = scmp.eq.s32.totalorder %s93, 1
      %p434 = por %p432, %p433
      %p436 = scmp.ne.s32.totalorder %s419, %s435
      %p437 = scmp.eq.s32.totalorder %s93, 0
      %p438 = por %p436, %p437
      %s439 = ssub.s32 %s87, %s94
      %p440 = scmp.eq.s32.totalorder %s439, 0
      %s442 = sadd.s32 %s441, 1
      %s443 = scalar_select %p440, %s441, %s442
      %p446 = pneg %p440
      %p447 = scmp.eq.s32.totalorder %s87, 1
      %p448 = por %p446, %p447
      %p449 = scmp.ne.s32.totalorder %s441, %s444
      %p450 = scmp.eq.s32.totalorder %s87, 0
      %p451 = por %p449, %p450
      %p452 = scmp.ne.s32.totalorder %s441, %s444
      %p453 = scmp.eq.s32.totalorder %s92, 1
      %p454 = por %p452, %p453
      %p455 = scmp.ne.s32.totalorder %s444, %s445
      %p456 = scmp.eq.s32.totalorder %s92, 0
      %p457 = por %p455, %p456
      %p458 = scmp.ne.s32.totalorder %s444, %s445
      %p459 = scmp.eq.s32.totalorder %s93, 1
      %p460 = por %p458, %p459
      %p462 = scmp.ne.s32.totalorder %s445, %s461
      %p463 = scmp.eq.s32.totalorder %s93, 0
      %p464 = por %p462, %p463
      %s465 = ssub.s32 %s87, %s94
      %p466 = scmp.eq.s32.totalorder %s465, 0
      %s468 = sadd.s32 %s467, 1
      %s469 = scalar_select %p466, %s467, %s468
      %p472 = pneg %p466
      %p473 = scmp.eq.s32.totalorder %s87, 1
      %p474 = por %p472, %p473
      %p475 = scmp.ne.s32.totalorder %s467, %s470
      %p476 = scmp.eq.s32.totalorder %s87, 0
      %p477 = por %p475, %p476
      %p478 = scmp.ne.s32.totalorder %s467, %s470
      %p479 = scmp.eq.s32.totalorder %s92, 1
      %p480 = por %p478, %p479
      %p481 = scmp.ne.s32.totalorder %s470, %s471
      %p482 = scmp.eq.s32.totalorder %s92, 0
      %p483 = por %p481, %p482
      %p484 = scmp.ne.s32.totalorder %s470, %s471
      %p485 = scmp.eq.s32.totalorder %s93, 1
      %p486 = por %p484, %p485
      %p488 = scmp.ne.s32.totalorder %s471, %s487
      %p489 = scmp.eq.s32.totalorder %s93, 0
      %p490 = por %p488, %p489
      %s492 = sadd.s32 %s491, 1
      %p495 = scmp.eq.s32.totalorder %s87, 1
      %p496 = scmp.ne.s32.totalorder %s491, %s493
      %p497 = scmp.eq.s32.totalorder %s87, 0
      %p498 = por %p496, %p497
      %p499 = scmp.ne.s32.totalorder %s491, %s493
      %p500 = scmp.eq.s32.totalorder %s92, 1
      %p501 = por %p499, %p500
      %p502 = scmp.ne.s32.totalorder %s493, %s494
      %p503 = scmp.eq.s32.totalorder %s92, 0
      %p504 = por %p502, %p503
      %p505 = scmp.ne.s32.totalorder %s493, %s494
      %p506 = scmp.eq.s32.totalorder %s93, 1
      %p507 = por %p505, %p506
      %p509 = scmp.ne.s32.totalorder %s494, %s508
      %p510 = scmp.eq.s32.totalorder %s93, 0
      %p511 = por %p509, %p510
      %s513 = sadd.s32 %s512, 1
      %p516 = scmp.eq.s32.totalorder %s87, 1
      %p517 = scmp.ne.s32.totalorder %s512, %s514
      %p518 = scmp.eq.s32.totalorder %s87, 0
      %p519 = por %p517, %p518
      %p520 = scmp.ne.s32.totalorder %s512, %s514
      %p521 = scmp.eq.s32.totalorder %s92, 1
      %p522 = por %p520, %p521
      %p523 = scmp.ne.s32.totalorder %s514, %s515
      %p524 = scmp.eq.s32.totalorder %s92, 0
      %p525 = por %p523, %p524
      %p526 = scmp.ne.s32.totalorder %s514, %s515
      %p527 = scmp.eq.s32.totalorder %s93, 1
      %p528 = por %p526, %p527
      %p530 = scmp.ne.s32.totalorder %s515, %s529
      %p531 = scmp.eq.s32.totalorder %s93, 0
      %p532 = por %p530, %p531
      %s534 = sadd.s32 %s533, 1
      %p537 = scmp.eq.s32.totalorder %s87, 1
      %p538 = scmp.ne.s32.totalorder %s533, %s535
      %p539 = scmp.eq.s32.totalorder %s87, 0
      %p540 = por %p538, %p539
      %p541 = scmp.ne.s32.totalorder %s533, %s535
      %p542 = scmp.eq.s32.totalorder %s92, 1
      %p543 = por %p541, %p542
      %p544 = scmp.ne.s32.totalorder %s535, %s536
      %p545 = scmp.eq.s32.totalorder %s92, 0
      %p546 = por %p544, %p545
      %p547 = scmp.ne.s32.totalorder %s535, %s536
      %p548 = scmp.eq.s32.totalorder %s93, 1
      %p549 = por %p547, %p548
      %p551 = scmp.ne.s32.totalorder %s536, %s550
      %p552 = scmp.eq.s32.totalorder %s93, 0
      %p553 = por %p551, %p552
      %s555 = sadd.s32 %s554, 1
      %p558 = scmp.eq.s32.totalorder %s87, 1
      %p559 = scmp.ne.s32.totalorder %s554, %s556
      %p560 = scmp.eq.s32.totalorder %s87, 0
      %p561 = por %p559, %p560
      %p562 = scmp.ne.s32.totalorder %s554, %s556
      %p563 = scmp.eq.s32.totalorder %s92, 1
      %p564 = por %p562, %p563
      %p565 = scmp.ne.s32.totalorder %s556, %s557
      %p566 = scmp.eq.s32.totalorder %s92, 0
      %p567 = por %p565, %p566
      %p568 = scmp.ne.s32.totalorder %s556, %s557
      %p569 = scmp.eq.s32.totalorder %s93, 1
      %p570 = por %p568, %p569
      %p572 = scmp.ne.s32.totalorder %s557, %s571
      %p573 = scmp.eq.s32.totalorder %s93, 0
      %p574 = por %p572, %p573
      %s576 = sadd.s32 %s575, 1
      %p579 = scmp.eq.s32.totalorder %s87, 1
      %p580 = scmp.ne.s32.totalorder %s575, %s577
      %p581 = scmp.eq.s32.totalorder %s87, 0
      %p582 = por %p580, %p581
      %p583 = scmp.ne.s32.totalorder %s575, %s577
      %p584 = scmp.eq.s32.totalorder %s92, 1
      %p585 = por %p583, %p584
      %p586 = scmp.ne.s32.totalorder %s577, %s578
      %p587 = scmp.eq.s32.totalorder %s92, 0
      %p588 = por %p586, %p587
      %p589 = scmp.ne.s32.totalorder %s577, %s578
      %p590 = scmp.eq.s32.totalorder %s93, 1
      %p591 = por %p589, %p590
      %p593 = scmp.ne.s32.totalorder %s578, %s592
      %p594 = scmp.eq.s32.totalorder %s93, 0
      %p595 = por %p593, %p594
      %s597 = sadd.s32 %s596, 1
      %p600 = scmp.eq.s32.totalorder %s87, 1
      %p601 = scmp.ne.s32.totalorder %s596, %s598
      %p602 = scmp.eq.s32.totalorder %s87, 0
      %p603 = por %p601, %p602
      %p604 = scmp.ne.s32.totalorder %s596, %s598
      %p605 = scmp.eq.s32.totalorder %s92, 1
      %p606 = por %p604, %p605
      %p607 = scmp.ne.s32.totalorder %s598, %s599
      %p608 = scmp.eq.s32.totalorder %s92, 0
      %p609 = por %p607, %p608
      %p610 = scmp.ne.s32.totalorder %s598, %s599
      %p611 = scmp.eq.s32.totalorder %s93, 1
      %p612 = por %p610, %p611
      %p614 = scmp.ne.s32.totalorder %s599, %s613
      %p615 = scmp.eq.s32.totalorder %s93, 0
      %p616 = por %p614, %p615
      %s618 = sadd.s32 %s617, 1
      %p621 = scmp.eq.s32.totalorder %s87, 1
      %p622 = scmp.ne.s32.totalorder %s617, %s619
      %p623 = scmp.eq.s32.totalorder %s87, 0
      %p624 = por %p622, %p623
      %p625 = scmp.ne.s32.totalorder %s617, %s619
      %p626 = scmp.eq.s32.totalorder %s92, 1
      %p627 = por %p625, %p626
      %p628 = scmp.ne.s32.totalorder %s619, %s620
      %p629 = scmp.eq.s32.totalorder %s92, 0
      %p630 = por %p628, %p629
      %p631 = scmp.ne.s32.totalorder %s619, %s620
      %p632 = scmp.eq.s32.totalorder %s93, 1
      %p633 = por %p631, %p632
      %p635 = scmp.ne.s32.totalorder %s620, %s634
      %p636 = scmp.eq.s32.totalorder %s93, 0
      %p637 = por %p635, %p636
      %s639 = sadd.s32 %s638, 1
      %p642 = scmp.eq.s32.totalorder %s87, 1
      %p643 = scmp.ne.s32.totalorder %s638, %s640
      %p644 = scmp.eq.s32.totalorder %s87, 0
      %p645 = por %p643, %p644
      %p646 = scmp.ne.s32.totalorder %s638, %s640
      %p647 = scmp.eq.s32.totalorder %s92, 1
      %p648 = por %p646, %p647
      %p649 = scmp.ne.s32.totalorder %s640, %s641
      %p650 = scmp.eq.s32.totalorder %s92, 0
      %p651 = por %p649, %p650
      %p652 = scmp.ne.s32.totalorder %s640, %s641
      %p653 = scmp.eq.s32.totalorder %s93, 1
      %p654 = por %p652, %p653
      %p656 = scmp.ne.s32.totalorder %s641, %s655
      %p657 = scmp.eq.s32.totalorder %s93, 0
      %p658 = por %p656, %p657
      %s660 = sadd.s32 %s659, 1
      %p663 = scmp.eq.s32.totalorder %s87, 1
      %p664 = scmp.ne.s32.totalorder %s659, %s661
      %p665 = scmp.eq.s32.totalorder %s87, 0
      %p666 = por %p664, %p665
      %p667 = scmp.ne.s32.totalorder %s659, %s661
      %p668 = scmp.eq.s32.totalorder %s92, 1
      %p669 = por %p667, %p668
      %p670 = scmp.ne.s32.totalorder %s661, %s662
      %p671 = scmp.eq.s32.totalorder %s92, 0
      %p672 = por %p670, %p671
      %p673 = scmp.ne.s32.totalorder %s661, %s662
      %p674 = scmp.eq.s32.totalorder %s93, 1
      %p675 = por %p673, %p674
      %p677 = scmp.ne.s32.totalorder %s662, %s676
      %p678 = scmp.eq.s32.totalorder %s93, 0
      %p679 = por %p677, %p678
      %s681 = sadd.s32 %s680, 1
      %p684 = scmp.eq.s32.totalorder %s87, 1
      %p685 = scmp.ne.s32.totalorder %s680, %s682
      %p686 = scmp.eq.s32.totalorder %s87, 0
      %p687 = por %p685, %p686
      %p688 = scmp.ne.s32.totalorder %s680, %s682
      %p689 = scmp.eq.s32.totalorder %s92, 1
      %p690 = por %p688, %p689
      %p691 = scmp.ne.s32.totalorder %s682, %s683
      %p692 = scmp.eq.s32.totalorder %s92, 0
      %p693 = por %p691, %p692
      %p694 = scmp.ne.s32.totalorder %s682, %s683
      %p695 = scmp.eq.s32.totalorder %s93, 1
      %p696 = por %p694, %p695
      %p698 = scmp.ne.s32.totalorder %s683, %s697
      %p699 = scmp.eq.s32.totalorder %s93, 0
      %p700 = por %p698, %p699
      %s702 = sadd.s32 %s701, 1
      %p705 = scmp.eq.s32.totalorder %s87, 1
      %p706 = scmp.ne.s32.totalorder %s701, %s703
      %p707 = scmp.eq.s32.totalorder %s87, 0
      %p708 = por %p706, %p707
      %p709 = scmp.ne.s32.totalorder %s701, %s703
      %p710 = scmp.eq.s32.totalorder %s92, 1
      %p711 = por %p709, %p710
      %p712 = scmp.ne.s32.totalorder %s703, %s704
      %p713 = scmp.eq.s32.totalorder %s92, 0
      %p714 = por %p712, %p713
      %p715 = scmp.ne.s32.totalorder %s703, %s704
      %p716 = scmp.eq.s32.totalorder %s93, 1
      %p717 = por %p715, %p716
      %p719 = scmp.ne.s32.totalorder %s704, %s718
      %p720 = scmp.eq.s32.totalorder %s93, 0
      %p721 = por %p719, %p720
      %s723 = sadd.s32 %s722, 1
      %p726 = scmp.eq.s32.totalorder %s87, 1
      %p727 = scmp.ne.s32.totalorder %s722, %s724
      %p728 = scmp.eq.s32.totalorder %s87, 0
      %p729 = por %p727, %p728
      %p730 = scmp.ne.s32.totalorder %s722, %s724
      %p731 = scmp.eq.s32.totalorder %s92, 1
      %p732 = por %p730, %p731
      %p733 = scmp.ne.s32.totalorder %s724, %s725
      %p734 = scmp.eq.s32.totalorder %s92, 0
      %p735 = por %p733, %p734
      %p736 = scmp.ne.s32.totalorder %s724, %s725
      %p737 = scmp.eq.s32.totalorder %s93, 1
      %p738 = por %p736, %p737
      %p740 = scmp.ne.s32.totalorder %s725, %s739
      %p741 = scmp.eq.s32.totalorder %s93, 0
      %p742 = por %p740, %p741
      %s744 = sadd.s32 %s743, 1
      %p747 = scmp.eq.s32.totalorder %s87, 1
      %p748 = scmp.ne.s32.totalorder %s743, %s745
      %p749 = scmp.eq.s32.totalorder %s87, 0
      %p750 = por %p748, %p749
      %p751 = scmp.ne.s32.totalorder %s743, %s745
      %p752 = scmp.eq.s32.totalorder %s92, 1
      %p753 = por %p751, %p752
      %p754 = scmp.ne.s32.totalorder %s745, %s746
      %p755 = scmp.eq.s32.totalorder %s92, 0
      %p756 = por %p754, %p755
      %p757 = scmp.ne.s32.totalorder %s745, %s746
      %p758 = scmp.eq.s32.totalorder %s93, 1
      %p759 = por %p757, %p758
      %p761 = scmp.ne.s32.totalorder %s746, %s760
      %p762 = scmp.eq.s32.totalorder %s93, 0
      %p763 = por %p761, %p762
      %s765 = sadd.s32 %s764, 1
      %p768 = scmp.eq.s32.totalorder %s87, 1
      %p769 = scmp.ne.s32.totalorder %s764, %s766
      %p770 = scmp.eq.s32.totalorder %s87, 0
      %p771 = por %p769, %p770
      %p772 = scmp.ne.s32.totalorder %s764, %s766
      %p773 = scmp.eq.s32.totalorder %s92, 1
      %p774 = por %p772, %p773
      %p775 = scmp.ne.s32.totalorder %s766, %s767
      %p776 = scmp.eq.s32.totalorder %s92, 0
      %p777 = por %p775, %p776
      %p778 = scmp.ne.s32.totalorder %s766, %s767
      %p779 = scmp.eq.s32.totalorder %s93, 1
      %p780 = por %p778, %p779
      %p782 = scmp.ne.s32.totalorder %s767, %s781
      %p783 = scmp.eq.s32.totalorder %s93, 0
      %p784 = por %p782, %p783
      %s786 = sadd.s32 %s785, 1
      %p789 = scmp.eq.s32.totalorder %s87, 1
      %p790 = scmp.ne.s32.totalorder %s785, %s787
      %p791 = scmp.eq.s32.totalorder %s87, 0
      %p792 = por %p790, %p791
      %p793 = scmp.ne.s32.totalorder %s785, %s787
      %p794 = scmp.eq.s32.totalorder %s92, 1
      %p795 = por %p793, %p794
      %p796 = scmp.ne.s32.totalorder %s787, %s788
      %p797 = scmp.eq.s32.totalorder %s92, 0
      %p798 = por %p796, %p797
      %p799 = scmp.ne.s32.totalorder %s787, %s788
      %p800 = scmp.eq.s32.totalorder %s93, 1
      %p801 = por %p799, %p800
      %p803 = scmp.ne.s32.totalorder %s788, %s802
      %p804 = scmp.eq.s32.totalorder %s93, 0
      %p805 = por %p803, %p804
      %p806 = scmp.le.s32.totalorder 1, %s87
      %p807 = scmp.lt.s32.totalorder %s87, 3
      %p808 = pnand %p806, %p807
      %p809 = pneg %p808
      // Predicated region
      $region9: #{tpu_custom_call.1} parent=5 // pred_check
        _
      $region10: #{tpu_custom_call.1} parent=5 // pred_check_branch
        %811 = sbr.rel (%p808) target = $region12
      $region11: #{tpu_custom_call.1} parent=5 // pred_region
        %s812 = ssub.s32 %s87, 1
        // Predicated region
        $region13: #{tpu_custom_call.1} parent=11 // pred_check
          %p813 = pneg %p108
        $region14: #{tpu_custom_call.1} parent=11 // pred_check_branch
          %815 = sbr.rel (%p813) target = $region16
        $region15: #{tpu_custom_call.1} parent=11 // pred_region
          %s817 = ssub.s32 256, 256
          %818 = vsyncadd [#allocation4], %s817
          %s819 = sshll.u32 [#allocation3], 4
          %s820 = int_to_ptr.vmem [resolvable:$true] %s819
          %825 = dma.hbm_to_vmem [thread:$0]  %s1, 256, %s820, [#allocation4], 128, 128, 8
        $region16: #{tpu_custom_call.1} parent=11 // pred_fallthru
          _
        // Predicated region
        $region17: #{tpu_custom_call.1} parent=11 // pred_check
          %p826 = pneg %p129
        $region18: #{tpu_custom_call.1} parent=11 // pred_check_branch
          %828 = sbr.rel (%p826) target = $region20
        $region19: #{tpu_custom_call.1} parent=11 // pred_region
          _
        $region20: #{tpu_custom_call.1} parent=11 // pred_fallthru
          _
        // Predicated region
        $region21: #{tpu_custom_call.1} parent=11 // pred_check
          %p829 = pneg %p150
        $region22: #{tpu_custom_call.1} parent=11 // pred_check_branch
          %831 = sbr.rel (%p829) target = $region24
        $region23: #{tpu_custom_call.1} parent=11 // pred_region
          %s833 = ssub.s32 128, 128
          %834 = vsyncadd [#allocation7], %s833
          %s836 = sshll.u32 [#allocation6], 4
          %s837 = int_to_ptr.vmem [resolvable:$true] %s836
          %839 = dma.hbm_to_vmem [thread:$0]  %s5, 128, %s837, [#allocation7]
        $region24: #{tpu_custom_call.1} parent=11 // pred_fallthru
          _
        // Predicated region
        $region25: #{tpu_custom_call.1} parent=11 // pred_check
          %p840 = pneg %p171
        $region26: #{tpu_custom_call.1} parent=11 // pred_check_branch
          %842 = sbr.rel (%p840) target = $region28
        $region27: #{tpu_custom_call.1} parent=11 // pred_region
          %s844 = ssub.s32 16, 16
          %845 = vsyncadd [#allocation7], %s844
          %s847 = sshll.u32 [#allocation8], 4
          %s848 = int_to_ptr.vmem [resolvable:$true] %s847
          %850 = dma.hbm_to_vmem [thread:$0]  %s7, 16, %s848, [#allocation7]
        $region28: #{tpu_custom_call.1} parent=11 // pred_fallthru
          _
        // Predicated region
        $region29: #{tpu_custom_call.1} parent=11 // pred_check
          %p851 = pneg %p504
        $region30: #{tpu_custom_call.1} parent=11 // pred_check_branch
          %853 = sbr.rel (%p851) target = $region32
        $region31: #{tpu_custom_call.1} parent=11 // pred_region
          %s855 = ssub.s32 32, 32
          %856 = vsyncadd [#allocation22], %s855
          %s858 = sshll.u32 [#allocation21], 4
          %s859 = int_to_ptr.vmem [resolvable:$true] %s858
          %861 = dma.hbm_to_vmem [thread:$0]  %s33, 32, %s859, [#allocation22]
        $region32: #{tpu_custom_call.1} parent=11 // pred_fallthru
          _
        // Predicated region
        $region33: #{tpu_custom_call.1} parent=11 // pred_check
          %p862 = pneg %p525
        $region34: #{tpu_custom_call.1} parent=11 // pred_check_branch
          %864 = sbr.rel (%p862) target = $region36
        $region35: #{tpu_custom_call.1} parent=11 // pred_region
          _
        $region36: #{tpu_custom_call.1} parent=11 // pred_fallthru
          _
        // Predicated region
        $region37: #{tpu_custom_call.1} parent=11 // pred_check
          %p865 = pneg %p546
        $region38: #{tpu_custom_call.1} parent=11 // pred_check_branch
          %867 = sbr.rel (%p865) target = $region40
        $region39: #{tpu_custom_call.1} parent=11 // pred_region
          %s869 = ssub.s32 16, 16
          %870 = vsyncadd [#allocation22], %s869
          %s872 = sshll.u32 [#allocation23], 4
          %s873 = int_to_ptr.vmem [resolvable:$true] %s872
          %875 = dma.hbm_to_vmem [thread:$0]  %s37, 16, %s873, [#allocation22]
        $region40: #{tpu_custom_call.1} parent=11 // pred_fallthru
          _
        // Predicated region
        $region41: #{tpu_custom_call.1} parent=11 // pred_check
          %p876 = pneg %p567
        $region42: #{tpu_custom_call.1} parent=11 // pred_check_branch
          %878 = sbr.rel (%p876) target = $region44
        $region43: #{tpu_custom_call.1} parent=11 // pred_region
          %s880 = ssub.s32 32, 32
          %881 = vsyncadd [#allocation25], %s880
          %s883 = sshll.u32 [#allocation24], 4
          %s884 = int_to_ptr.vmem [resolvable:$true] %s883
          %886 = dma.hbm_to_vmem [thread:$0]  %s39, 32, %s884, [#allocation25]
        $region44: #{tpu_custom_call.1} parent=11 // pred_fallthru
          _
        // Predicated region
        $region45: #{tpu_custom_call.1} parent=11 // pred_check
          %p887 = pneg %p588
        $region46: #{tpu_custom_call.1} parent=11 // pred_check_branch
          %889 = sbr.rel (%p887) target = $region48
        $region47: #{tpu_custom_call.1} parent=11 // pred_region
          %s891 = ssub.s32 256, 256
          %892 = vsyncadd [#allocation25], %s891
          %s893 = sshll.u32 [#allocation26], 4
          %s894 = int_to_ptr.vmem [resolvable:$true] %s893
          %899 = dma.hbm_to_vmem [thread:$0]  %s41, 256, %s894, [#allocation25], 128, 128, 8
        $region48: #{tpu_custom_call.1} parent=11 // pred_fallthru
          _
        // Predicated region
        $region49: #{tpu_custom_call.1} parent=11 // pred_check
          %p900 = pneg %p609
        $region50: #{tpu_custom_call.1} parent=11 // pred_check_branch
          %902 = sbr.rel (%p900) target = $region52
        $region51: #{tpu_custom_call.1} parent=11 // pred_region
          %s904 = ssub.s32 16, 16
          %905 = vsyncadd [#allocation28], %s904
          %s907 = sshll.u32 [#allocation27], 4
          %s908 = int_to_ptr.vmem [resolvable:$true] %s907
          %910 = dma.hbm_to_vmem [thread:$0]  %s43, 16, %s908, [#allocation28]
        $region52: #{tpu_custom_call.1} parent=11 // pred_fallthru
          _
        // Predicated region
        $region53: #{tpu_custom_call.1} parent=11 // pred_check
          %p911 = pneg %p630
        $region54: #{tpu_custom_call.1} parent=11 // pred_check_branch
          %913 = sbr.rel (%p911) target = $region56
        $region55: #{tpu_custom_call.1} parent=11 // pred_region
          _
        $region56: #{tpu_custom_call.1} parent=11 // pred_fallthru
          _
        // Predicated region
        $region57: #{tpu_custom_call.1} parent=11 // pred_check
          %p914 = pneg %p651
        $region58: #{tpu_custom_call.1} parent=11 // pred_check_branch
          %916 = sbr.rel (%p914) target = $region60
        $region59: #{tpu_custom_call.1} parent=11 // pred_region
          %s918 = ssub.s32 16, 16
          %919 = vsyncadd [#allocation28], %s918
          %s921 = sshll.u32 [#allocation29], 4
          %s922 = int_to_ptr.vmem [resolvable:$true] %s921
          %924 = dma.hbm_to_vmem [thread:$0]  %s47, 16, %s922, [#allocation28]
        $region60: #{tpu_custom_call.1} parent=11 // pred_fallthru
          _
        // Predicated region
        $region61: #{tpu_custom_call.1} parent=11 // pred_check
          %p925 = pneg %p672
        $region62: #{tpu_custom_call.1} parent=11 // pred_check_branch
          %927 = sbr.rel (%p925) target = $region64
        $region63: #{tpu_custom_call.1} parent=11 // pred_region
          %s929 = ssub.s32 128, 128
          %930 = vsyncadd [#allocation31], %s929
          %s932 = sshll.u32 [#allocation30], 4
          %s933 = int_to_ptr.vmem [resolvable:$true] %s932
          %935 = dma.hbm_to_vmem [thread:$0]  %s49, 128, %s933, [#allocation31]
        $region64: #{tpu_custom_call.1} parent=11 // pred_fallthru
          _
        // Predicated region
        $region65: #{tpu_custom_call.1} parent=11 // pred_check
          %p936 = pneg %p693
        $region66: #{tpu_custom_call.1} parent=11 // pred_check_branch
          %938 = sbr.rel (%p936) target = $region68
        $region67: #{tpu_custom_call.1} parent=11 // pred_region
          _
        $region68: #{tpu_custom_call.1} parent=11 // pred_fallthru
          _
        // Predicated region
        $region69: #{tpu_custom_call.1} parent=11 // pred_check
          %p939 = pneg %p714
        $region70: #{tpu_custom_call.1} parent=11 // pred_check_branch
          %941 = sbr.rel (%p939) target = $region72
        $region71: #{tpu_custom_call.1} parent=11 // pred_region
          %s943 = ssub.s32 128, 128
          %944 = vsyncadd [#allocation31], %s943
          %s946 = sshll.u32 [#allocation32], 4
          %s947 = int_to_ptr.vmem [resolvable:$true] %s946
          %949 = dma.hbm_to_vmem [thread:$0]  %s53, 128, %s947, [#allocation31]
        $region72: #{tpu_custom_call.1} parent=11 // pred_fallthru
          _
        // Predicated region
        $region73: #{tpu_custom_call.1} parent=11 // pred_check
          %p950 = pneg %p735
        $region74: #{tpu_custom_call.1} parent=11 // pred_check_branch
          %952 = sbr.rel (%p950) target = $region76
        $region75: #{tpu_custom_call.1} parent=11 // pred_region
          _
        $region76: #{tpu_custom_call.1} parent=11 // pred_fallthru
          _
        // Predicated region
        $region77: #{tpu_custom_call.1} parent=11 // pred_check
          %p953 = pneg %p756
        $region78: #{tpu_custom_call.1} parent=11 // pred_check_branch
          %955 = sbr.rel (%p953) target = $region80
        $region79: #{tpu_custom_call.1} parent=11 // pred_region
          %s957 = ssub.s32 512, 512
          %958 = vsyncadd [#allocation34], %s957
          %s959 = sshll.u32 [#allocation33], 4
          %s960 = int_to_ptr.vmem [resolvable:$true] %s959
          %965 = dma.hbm_to_vmem [thread:$0]  %s57, 512, %s960, [#allocation34], 128, 128, 8
        $region80: #{tpu_custom_call.1} parent=11 // pred_fallthru
          _
        // Predicated region
        $region81: #{tpu_custom_call.1} parent=11 // pred_check
          %p966 = pneg %p777
        $region82: #{tpu_custom_call.1} parent=11 // pred_check_branch
          %968 = sbr.rel (%p966) target = $region84
        $region83: #{tpu_custom_call.1} parent=11 // pred_region
          _
        $region84: #{tpu_custom_call.1} parent=11 // pred_fallthru
          _
      $region12: #{tpu_custom_call.1} parent=5 // pred_fallthru
        _
      %p969 = scmp.lt.s32.totalorder %s87, 2
      // Predicated region
      $region85: #{tpu_custom_call.1} parent=5 // pred_check
        %p970 = pneg %p969
      $region86: #{tpu_custom_call.1} parent=5 // pred_check_branch
        %972 = sbr.rel (%p970) target = $region88
      $region87: #{tpu_custom_call.1} parent=5 // pred_region
        // Predicated region
        $region89: #{tpu_custom_call.1} parent=87 // pred_check
          %p973 = pneg %p191
        $region90: #{tpu_custom_call.1} parent=87 // pred_check_branch
          %975 = sbr.rel (%p973) target = $region92
        $region91: #{tpu_custom_call.1} parent=87 // pred_region
          %p976 = scmp.lt.s32.totalorder %s87, 1
          %s977 = scalar_select %p976, %s87, 1
          %s978 = smul.addr %s977, 4
          %s979 = smul.addr %s978, 8
          %s980 = scalar_lea.vmem %s9, %s979
        $region92: #{tpu_custom_call.1} parent=87 // pred_fallthru
          _
        // Predicated region
        $region93: #{tpu_custom_call.1} parent=87 // pred_check
          %p981 = pneg %p217
        $region94: #{tpu_custom_call.1} parent=87 // pred_check_branch
          %983 = sbr.rel (%p981) target = $region96
        $region95: #{tpu_custom_call.1} parent=87 // pred_region
          %p984 = scmp.lt.s32.totalorder %s87, 1
          %s985 = scalar_select %p984, %s87, 1
          %s986 = smul.addr %s985, 4
          %s987 = smul.addr %s986, 8
          %s988 = scalar_lea.vmem %s11, %s987
        $region96: #{tpu_custom_call.1} parent=87 // pred_fallthru
          _
        // Predicated region
        $region97: #{tpu_custom_call.1} parent=87 // pred_check
          %p989 = pneg %p243
        $region98: #{tpu_custom_call.1} parent=87 // pred_check_branch
          %991 = sbr.rel (%p989) target = $region100
        $region99: #{tpu_custom_call.1} parent=87 // pred_region
          %p992 = scmp.lt.s32.totalorder %s87, 1
          %s993 = scalar_select %p992, %s87, 1
          %s994 = smul.addr %s993, 4
          %s995 = smul.addr %s994, 8
          %s996 = scalar_lea.vmem %s13, %s995
        $region100: #{tpu_custom_call.1} parent=87 // pred_fallthru
          _
        // Predicated region
        $region101: #{tpu_custom_call.1} parent=87 // pred_check
          %p997 = pneg %p269
        $region102: #{tpu_custom_call.1} parent=87 // pred_check_branch
          %999 = sbr.rel (%p997) target = $region104
        $region103: #{tpu_custom_call.1} parent=87 // pred_region
          %s1000 = sand.u32 %s87, 1
          %s1001 = scalar_lea.sflag [#allocation10], %s1000
          %s1002 = sand.u32 %s259, 1
          %s1003 = smul.addr %s1002, 32
          %s1004 = scalar_lea.vmem [#allocation9], %s1003
          %s1006 = ssub.s32 512, 512
          %1007 = vsyncadd %s1001, %s1006
          %s1008 = smul.addr %s87, 4
          %s1009 = smul.addr %s1008, 128
          %s1010 = scalar_lea.hbm %s15, %s1009
          %s1011 = sshll.u32 %s1004, 4
          %s1012 = int_to_ptr.vmem [resolvable:$true] %s1011
          %1017 = dma.hbm_to_vmem [thread:$0]  %s1010, 512, %s1012, %s1001, 128, 128, 8
        $region104: #{tpu_custom_call.1} parent=87 // pred_fallthru
          _
        // Predicated region
        $region105: #{tpu_custom_call.1} parent=87 // pred_check
          %p1018 = pneg %p295
        $region106: #{tpu_custom_call.1} parent=87 // pred_check_branch
          %1020 = sbr.rel (%p1018) target = $region108
        $region107: #{tpu_custom_call.1} parent=87 // pred_region
          %s1021 = sand.u32 %s87, 1
          %s1022 = scalar_lea.sflag [#allocation10], %s1021
          %s1023 = sand.u32 %s285, 1
          %s1024 = scalar_lea.vmem [#allocation11], %s1023
          %s1026 = ssub.s32 16, 16
          %1027 = vsyncadd %s1022, %s1026
          %s1028 = smul.addr %s87, 16
          %s1029 = scalar_lea.hbm %s17, %s1028
          %s1031 = sshll.u32 %s1024, 4
          %s1032 = int_to_ptr.vmem [resolvable:$true] %s1031
          %1034 = dma.hbm_to_vmem [thread:$0]  %s1029, 16, %s1032, %s1022
        $region108: #{tpu_custom_call.1} parent=87 // pred_fallthru
          _
        // Predicated region
        $region109: #{tpu_custom_call.1} parent=87 // pred_check
          %p1035 = pneg %p321
        $region110: #{tpu_custom_call.1} parent=87 // pred_check_branch
          %1037 = sbr.rel (%p1035) target = $region112
        $region111: #{tpu_custom_call.1} parent=87 // pred_region
          %s1038 = sand.u32 %s87, 1
          %s1039 = scalar_lea.sflag [#allocation13], %s1038
          %s1040 = sand.u32 %s311, 1
          %s1041 = scalar_lea.vmem [#allocation12], %s1040
          %s1043 = ssub.s32 16, 16
          %1044 = vsyncadd %s1039, %s1043
          %s1045 = smul.addr %s87, 16
          %s1046 = scalar_lea.hbm %s19, %s1045
          %s1048 = sshll.u32 %s1041, 4
          %s1049 = int_to_ptr.vmem [resolvable:$true] %s1048
          %1051 = dma.hbm_to_vmem [thread:$0]  %s1046, 16, %s1049, %s1039
        $region112: #{tpu_custom_call.1} parent=87 // pred_fallthru
          _
        // Predicated region
        $region113: #{tpu_custom_call.1} parent=87 // pred_check
          %p1052 = pneg %p347
        $region114: #{tpu_custom_call.1} parent=87 // pred_check_branch
          %1054 = sbr.rel (%p1052) target = $region116
        $region115: #{tpu_custom_call.1} parent=87 // pred_region
          %s1055 = sand.u32 %s87, 1
          %s1056 = scalar_lea.sflag [#allocation13], %s1055
          %s1057 = sand.u32 %s337, 1
          %s1058 = scalar_lea.vmem [#allocation14], %s1057
          %s1060 = ssub.s32 16, 16
          %1061 = vsyncadd %s1056, %s1060
          %s1062 = smul.addr %s87, 16
          %s1063 = scalar_lea.hbm %s21, %s1062
          %s1065 = sshll.u32 %s1058, 4
          %s1066 = int_to_ptr.vmem [resolvable:$true] %s1065
          %1068 = dma.hbm_to_vmem [thread:$0]  %s1063, 16, %s1066, %s1056
        $region116: #{tpu_custom_call.1} parent=87 // pred_fallthru
          _
        // Predicated region
        $region117: #{tpu_custom_call.1} parent=87 // pred_check
          %p1069 = pneg %p373
        $region118: #{tpu_custom_call.1} parent=87 // pred_check_branch
          %1071 = sbr.rel (%p1069) target = $region120
        $region119: #{tpu_custom_call.1} parent=87 // pred_region
          %s1072 = sand.u32 %s87, 1
          %s1073 = scalar_lea.sflag [#allocation16], %s1072
          %s1074 = sand.u32 %s363, 1
          %s1075 = scalar_lea.vmem [#allocation15], %s1074
          %s1077 = ssub.s32 16, 16
          %1078 = vsyncadd %s1073, %s1077
          %s1079 = smul.addr %s87, 16
          %s1080 = scalar_lea.hbm %s23, %s1079
          %s1082 = sshll.u32 %s1075, 4
          %s1083 = int_to_ptr.vmem [resolvable:$true] %s1082
          %1085 = dma.hbm_to_vmem [thread:$0]  %s1080, 16, %s1083, %s1073
        $region120: #{tpu_custom_call.1} parent=87 // pred_fallthru
          _
        // Predicated region
        $region121: #{tpu_custom_call.1} parent=87 // pred_check
          %p1086 = pneg %p399
        $region122: #{tpu_custom_call.1} parent=87 // pred_check_branch
          %1088 = sbr.rel (%p1086) target = $region124
        $region123: #{tpu_custom_call.1} parent=87 // pred_region
          %s1089 = sand.u32 %s87, 1
          %s1090 = scalar_lea.sflag [#allocation16], %s1089
          %s1091 = sand.u32 %s389, 1
          %s1092 = smul.addr %s1091, 32
          %s1093 = scalar_lea.vmem [#allocation17], %s1092
          %s1095 = ssub.s32 512, 512
          %1096 = vsyncadd %s1090, %s1095
          %s1097 = smul.addr %s87, 4
          %s1098 = smul.addr %s1097, 128
          %s1099 = scalar_lea.hbm %s25, %s1098
          %s1100 = sshll.u32 %s1093, 4
          %s1101 = int_to_ptr.vmem [resolvable:$true] %s1100
          %1106 = dma.hbm_to_vmem [thread:$0]  %s1099, 512, %s1101, %s1090, 128, 128, 8
        $region124: #{tpu_custom_call.1} parent=87 // pred_fallthru
          _
        // Predicated region
        $region125: #{tpu_custom_call.1} parent=87 // pred_check
          %p1107 = pneg %p425
        $region126: #{tpu_custom_call.1} parent=87 // pred_check_branch
          %1109 = sbr.rel (%p1107) target = $region128
        $region127: #{tpu_custom_call.1} parent=87 // pred_region
          %s1110 = sand.u32 %s87, 1
          %s1111 = scalar_lea.sflag [#allocation19], %s1110
          %s1112 = sand.u32 %s415, 1
          %s1113 = scalar_lea.vmem [#allocation18], %s1112
          %s1115 = ssub.s32 16, 16
          %1116 = vsyncadd %s1111, %s1115
          %s1117 = smul.addr %s87, 16
          %s1118 = scalar_lea.hbm %s27, %s1117
          %s1120 = sshll.u32 %s1113, 4
          %s1121 = int_to_ptr.vmem [resolvable:$true] %s1120
          %1123 = dma.hbm_to_vmem [thread:$0]  %s1118, 16, %s1121, %s1111
        $region128: #{tpu_custom_call.1} parent=87 // pred_fallthru
          _
        // Predicated region
        $region129: #{tpu_custom_call.1} parent=87 // pred_check
          %p1124 = pneg %p451
        $region130: #{tpu_custom_call.1} parent=87 // pred_check_branch
          %1126 = sbr.rel (%p1124) target = $region132
        $region131: #{tpu_custom_call.1} parent=87 // pred_region
          %p1127 = scmp.lt.s32.totalorder %s87, 1
          %s1128 = scalar_select %p1127, %s87, 1
          %s1129 = smul.addr %s1128, 8
          %s1130 = smul.addr %s1129, 8
          %s1131 = scalar_lea.vmem %s29, %s1130
        $region132: #{tpu_custom_call.1} parent=87 // pred_fallthru
          _
        // Predicated region
        $region133: #{tpu_custom_call.1} parent=87 // pred_check
          %p1132 = pneg %p477
        $region134: #{tpu_custom_call.1} parent=87 // pred_check_branch
          %1134 = sbr.rel (%p1132) target = $region136
        $region135: #{tpu_custom_call.1} parent=87 // pred_region
          %s1135 = sand.u32 %s87, 1
          %s1136 = scalar_lea.sflag [#allocation19], %s1135
          %s1137 = sand.u32 %s467, 1
          %s1138 = scalar_lea.vmem [#allocation20], %s1137
          %s1140 = ssub.s32 16, 16
          %1141 = vsyncadd %s1136, %s1140
          %s1142 = smul.addr %s87, 16
          %s1143 = scalar_lea.hbm %s31, %s1142
          %s1145 = sshll.u32 %s1138, 4
          %s1146 = int_to_ptr.vmem [resolvable:$true] %s1145
          %1148 = dma.hbm_to_vmem [thread:$0]  %s1143, 16, %s1146, %s1136
        $region136: #{tpu_custom_call.1} parent=87 // pred_fallthru
          _
      $region88: #{tpu_custom_call.1} parent=5 // pred_fallthru
        _
      %p1149 = scmp.le.s32.totalorder 1, %s87
      %p1150 = scmp.lt.s32.totalorder %s87, 3
      %p1151 = pnand %p1149, %p1150
      %p1152 = pneg %p1151
      // Predicated region
      $region137: #{tpu_custom_call.1} parent=5 // pred_check
        _
      $region138: #{tpu_custom_call.1} parent=5 // pred_check_branch
        %1154 = sbr.rel (%p1151) target = $region140
      $region139: #{tpu_custom_call.1} parent=5 // pred_region
        %s1155 = ssub.s32 %s87, 1
        // Predicated region
        $region141: #{tpu_custom_call.1} parent=139 // pred_check
          %p1156 = pneg %p108
        $region142: #{tpu_custom_call.1} parent=139 // pred_check_branch
          %1158 = sbr.rel (%p1156) target = $region144
        $region143: #{tpu_custom_call.1} parent=139 // pred_region
          %1159 = dma.done [#allocation4], 256
        $region144: #{tpu_custom_call.1} parent=139 // pred_fallthru
          _
        // Predicated region
        $region145: #{tpu_custom_call.1} parent=139 // pred_check
          %p1160 = pneg %p150
        $region146: #{tpu_custom_call.1} parent=139 // pred_check_branch
          %1162 = sbr.rel (%p1160) target = $region148
        $region147: #{tpu_custom_call.1} parent=139 // pred_region
          %1163 = dma.done [#allocation7], 128
        $region148: #{tpu_custom_call.1} parent=139 // pred_fallthru
          _
        // Predicated region
        $region149: #{tpu_custom_call.1} parent=139 // pred_check
          %p1164 = pneg %p171
        $region150: #{tpu_custom_call.1} parent=139 // pred_check_branch
          %1166 = sbr.rel (%p1164) target = $region152
        $region151: #{tpu_custom_call.1} parent=139 // pred_region
          %1167 = dma.done [#allocation7], 16
        $region152: #{tpu_custom_call.1} parent=139 // pred_fallthru
          _
        %s1168 = sand.u32 %s92, 1
        %s1169 = scalar_lea.sflag [#allocation10], %s1168
        %s1170 = sand.u32 %s262, 1
        %s1171 = smul.addr %s1170, 32
        %s1172 = scalar_lea.vmem [#allocation9], %s1171
        // Predicated region
        $region153: #{tpu_custom_call.1} parent=139 // pred_check
          %p1173 = pneg %p275
        $region154: #{tpu_custom_call.1} parent=139 // pred_check_branch
          %1175 = sbr.rel (%p1173) target = $region156
        $region155: #{tpu_custom_call.1} parent=139 // pred_region
          %1176 = dma.done %s1169, 512
        $region156: #{tpu_custom_call.1} parent=139 // pred_fallthru
          _
        %s1177 = sand.u32 %s92, 1
        %s1178 = scalar_lea.sflag [#allocation10], %s1177
        %s1179 = sand.u32 %s288, 1
        %s1180 = scalar_lea.vmem [#allocation11], %s1179
        // Predicated region
        $region157: #{tpu_custom_call.1} parent=139 // pred_check
          %p1181 = pneg %p301
        $region158: #{tpu_custom_call.1} parent=139 // pred_check_branch
          %1183 = sbr.rel (%p1181) target = $region160
        $region159: #{tpu_custom_call.1} parent=139 // pred_region
          %1184 = dma.done %s1178, 16
        $region160: #{tpu_custom_call.1} parent=139 // pred_fallthru
          _
        %s1185 = sand.u32 %s92, 1
        %s1186 = scalar_lea.sflag [#allocation13], %s1185
        %s1187 = sand.u32 %s314, 1
        %s1188 = scalar_lea.vmem [#allocation12], %s1187
        // Predicated region
        $region161: #{tpu_custom_call.1} parent=139 // pred_check
          %p1189 = pneg %p327
        $region162: #{tpu_custom_call.1} parent=139 // pred_check_branch
          %1191 = sbr.rel (%p1189) target = $region164
        $region163: #{tpu_custom_call.1} parent=139 // pred_region
          %1192 = dma.done %s1186, 16
        $region164: #{tpu_custom_call.1} parent=139 // pred_fallthru
          _
        %s1193 = sand.u32 %s92, 1
        %s1194 = scalar_lea.sflag [#allocation13], %s1193
        %s1195 = sand.u32 %s340, 1
        %s1196 = scalar_lea.vmem [#allocation14], %s1195
        // Predicated region
        $region165: #{tpu_custom_call.1} parent=139 // pred_check
          %p1197 = pneg %p353
        $region166: #{tpu_custom_call.1} parent=139 // pred_check_branch
          %1199 = sbr.rel (%p1197) target = $region168
        $region167: #{tpu_custom_call.1} parent=139 // pred_region
          %1200 = dma.done %s1194, 16
        $region168: #{tpu_custom_call.1} parent=139 // pred_fallthru
          _
        %s1201 = sand.u32 %s92, 1
        %s1202 = scalar_lea.sflag [#allocation16], %s1201
        %s1203 = sand.u32 %s366, 1
        %s1204 = scalar_lea.vmem [#allocation15], %s1203
        // Predicated region
        $region169: #{tpu_custom_call.1} parent=139 // pred_check
          %p1205 = pneg %p379
        $region170: #{tpu_custom_call.1} parent=139 // pred_check_branch
          %1207 = sbr.rel (%p1205) target = $region172
        $region171: #{tpu_custom_call.1} parent=139 // pred_region
          %1208 = dma.done %s1202, 16
        $region172: #{tpu_custom_call.1} parent=139 // pred_fallthru
          _
        %s1209 = sand.u32 %s92, 1
        %s1210 = scalar_lea.sflag [#allocation16], %s1209
        %s1211 = sand.u32 %s392, 1
        %s1212 = smul.addr %s1211, 32
        %s1213 = scalar_lea.vmem [#allocation17], %s1212
        // Predicated region
        $region173: #{tpu_custom_call.1} parent=139 // pred_check
          %p1214 = pneg %p405
        $region174: #{tpu_custom_call.1} parent=139 // pred_check_branch
          %1216 = sbr.rel (%p1214) target = $region176
        $region175: #{tpu_custom_call.1} parent=139 // pred_region
          %1217 = dma.done %s1210, 512
        $region176: #{tpu_custom_call.1} parent=139 // pred_fallthru
          _
        %s1218 = sand.u32 %s92, 1
        %s1219 = scalar_lea.sflag [#allocation19], %s1218
        %s1220 = sand.u32 %s418, 1
        %s1221 = scalar_lea.vmem [#allocation18], %s1220
        // Predicated region
        $region177: #{tpu_custom_call.1} parent=139 // pred_check
          %p1222 = pneg %p431
        $region178: #{tpu_custom_call.1} parent=139 // pred_check_branch
          %1224 = sbr.rel (%p1222) target = $region180
        $region179: #{tpu_custom_call.1} parent=139 // pred_region
          %1225 = dma.done %s1219, 16
        $region180: #{tpu_custom_call.1} parent=139 // pred_fallthru
          _
        %s1226 = sand.u32 %s92, 1
        %s1227 = scalar_lea.sflag [#allocation19], %s1226
        %s1228 = sand.u32 %s470, 1
        %s1229 = scalar_lea.vmem [#allocation20], %s1228
        // Predicated region
        $region181: #{tpu_custom_call.1} parent=139 // pred_check
          %p1230 = pneg %p483
        $region182: #{tpu_custom_call.1} parent=139 // pred_check_branch
          %1232 = sbr.rel (%p1230) target = $region184
        $region183: #{tpu_custom_call.1} parent=139 // pred_region
          %1233 = dma.done %s1227, 16
        $region184: #{tpu_custom_call.1} parent=139 // pred_fallthru
          _
        // Predicated region
        $region185: #{tpu_custom_call.1} parent=139 // pred_check
          %p1234 = pneg %p504
        $region186: #{tpu_custom_call.1} parent=139 // pred_check_branch
          %1236 = sbr.rel (%p1234) target = $region188
        $region187: #{tpu_custom_call.1} parent=139 // pred_region
          %1237 = dma.done [#allocation22], 32
        $region188: #{tpu_custom_call.1} parent=139 // pred_fallthru
          _
        // Predicated region
        $region189: #{tpu_custom_call.1} parent=139 // pred_check
          %p1238 = pneg %p546
        $region190: #{tpu_custom_call.1} parent=139 // pred_check_branch
          %1240 = sbr.rel (%p1238) target = $region192
        $region191: #{tpu_custom_call.1} parent=139 // pred_region
          %1241 = dma.done [#allocation22], 16
        $region192: #{tpu_custom_call.1} parent=139 // pred_fallthru
          _
        // Predicated region
        $region193: #{tpu_custom_call.1} parent=139 // pred_check
          %p1242 = pneg %p567
        $region194: #{tpu_custom_call.1} parent=139 // pred_check_branch
          %1244 = sbr.rel (%p1242) target = $region196
        $region195: #{tpu_custom_call.1} parent=139 // pred_region
          %1245 = dma.done [#allocation25], 32
        $region196: #{tpu_custom_call.1} parent=139 // pred_fallthru
          _
        // Predicated region
        $region197: #{tpu_custom_call.1} parent=139 // pred_check
          %p1246 = pneg %p588
        $region198: #{tpu_custom_call.1} parent=139 // pred_check_branch
          %1248 = sbr.rel (%p1246) target = $region200
        $region199: #{tpu_custom_call.1} parent=139 // pred_region
          %1249 = dma.done [#allocation25], 256
        $region200: #{tpu_custom_call.1} parent=139 // pred_fallthru
          _
        // Predicated region
        $region201: #{tpu_custom_call.1} parent=139 // pred_check
          %p1250 = pneg %p609
        $region202: #{tpu_custom_call.1} parent=139 // pred_check_branch
          %1252 = sbr.rel (%p1250) target = $region204
        $region203: #{tpu_custom_call.1} parent=139 // pred_region
          %1253 = dma.done [#allocation28], 16
        $region204: #{tpu_custom_call.1} parent=139 // pred_fallthru
          _
        // Predicated region
        $region205: #{tpu_custom_call.1} parent=139 // pred_check
          %p1254 = pneg %p651
        $region206: #{tpu_custom_call.1} parent=139 // pred_check_branch
          %1256 = sbr.rel (%p1254) target = $region208
        $region207: #{tpu_custom_call.1} parent=139 // pred_region
          %1257 = dma.done [#allocation28], 16
        $region208: #{tpu_custom_call.1} parent=139 // pred_fallthru
          _
        // Predicated region
        $region209: #{tpu_custom_call.1} parent=139 // pred_check
          %p1258 = pneg %p672
        $region210: #{tpu_custom_call.1} parent=139 // pred_check_branch
          %1260 = sbr.rel (%p1258) target = $region212
        $region211: #{tpu_custom_call.1} parent=139 // pred_region
          %1261 = dma.done [#allocation31], 128
        $region212: #{tpu_custom_call.1} parent=139 // pred_fallthru
          _
        // Predicated region
        $region213: #{tpu_custom_call.1} parent=139 // pred_check
          %p1262 = pneg %p714
        $region214: #{tpu_custom_call.1} parent=139 // pred_check_branch
          %1264 = sbr.rel (%p1262) target = $region216
        $region215: #{tpu_custom_call.1} parent=139 // pred_region
          %1265 = dma.done [#allocation31], 128
        $region216: #{tpu_custom_call.1} parent=139 // pred_fallthru
          _
        // Predicated region
        $region217: #{tpu_custom_call.1} parent=139 // pred_check
          %p1266 = pneg %p756
        $region218: #{tpu_custom_call.1} parent=139 // pred_check_branch
          %1268 = sbr.rel (%p1266) target = $region220
        $region219: #{tpu_custom_call.1} parent=139 // pred_region
          %1269 = dma.done [#allocation34], 512
        $region220: #{tpu_custom_call.1} parent=139 // pred_fallthru
          _
        %p1270 = pneg %p108
        %p1271 = pneg %p105
        %p1272 = pneg %p129
        %p1273 = pneg %p126
        %p1274 = pneg %p150
        %p1275 = pneg %p147
        %p1276 = pneg %p171
        %p1277 = pneg %p168
        %p1278 = scmp.lt.s32.totalorder %s92, 1
        %s1279 = scalar_select %p1278, %s92, 1
        %s1280 = smul.addr %s1279, 4
        %s1281 = smul.addr %s1280, 8
        %s1282 = scalar_lea.vmem %s9, %s1281
        %p1283 = pneg %p197
        %p1284 = pneg %p194
        %p1285 = scmp.lt.s32.totalorder %s92, 1
        %s1286 = scalar_select %p1285, %s92, 1
        %s1287 = smul.addr %s1286, 4
        %s1288 = smul.addr %s1287, 8
        %s1289 = scalar_lea.vmem %s11, %s1288
        %p1290 = pneg %p223
        %p1291 = pneg %p220
        %p1292 = scmp.lt.s32.totalorder %s92, 1
        %s1293 = scalar_select %p1292, %s92, 1
        %s1294 = smul.addr %s1293, 4
        %s1295 = smul.addr %s1294, 8
        %s1296 = scalar_lea.vmem %s13, %s1295
        %p1297 = pneg %p249
        %p1298 = pneg %p246
        %s1299 = sand.u32 %s92, 1
        %s1300 = scalar_lea.sflag [#allocation10], %s1299
        %s1301 = sand.u32 %s262, 1
        %s1302 = smul.addr %s1301, 32
        %s1303 = scalar_lea.vmem [#allocation9], %s1302
        %p1304 = pneg %p275
        %p1305 = pneg %p272
        %s1306 = sand.u32 %s92, 1
        %s1307 = scalar_lea.sflag [#allocation10], %s1306
        %s1308 = sand.u32 %s288, 1
        %s1309 = scalar_lea.vmem [#allocation11], %s1308
        %p1310 = pneg %p301
        %p1311 = pneg %p298
        %s1312 = sand.u32 %s92, 1
        %s1313 = scalar_lea.sflag [#allocation13], %s1312
        %s1314 = sand.u32 %s314, 1
        %s1315 = scalar_lea.vmem [#allocation12], %s1314
        %p1316 = pneg %p327
        %p1317 = pneg %p324
        %s1318 = sand.u32 %s92, 1
        %s1319 = scalar_lea.sflag [#allocation13], %s1318
        %s1320 = sand.u32 %s340, 1
        %s1321 = scalar_lea.vmem [#allocation14], %s1320
        %p1322 = pneg %p353
        %p1323 = pneg %p350
        %s1324 = sand.u32 %s92, 1
        %s1325 = scalar_lea.sflag [#allocation16], %s1324
        %s1326 = sand.u32 %s366, 1
        %s1327 = scalar_lea.vmem [#allocation15], %s1326
        %p1328 = pneg %p379
        %p1329 = pneg %p376
        %s1330 = sand.u32 %s92, 1
        %s1331 = scalar_lea.sflag [#allocation16], %s1330
        %s1332 = sand.u32 %s392, 1
        %s1333 = smul.addr %s1332, 32
        %s1334 = scalar_lea.vmem [#allocation17], %s1333
        %p1335 = pneg %p405
        %p1336 = pneg %p402
        %s1337 = sand.u32 %s92, 1
        %s1338 = scalar_lea.sflag [#allocation19], %s1337
        %s1339 = sand.u32 %s418, 1
        %s1340 = scalar_lea.vmem [#allocation18], %s1339
        %p1341 = pneg %p431
        %p1342 = pneg %p428
        %p1343 = scmp.lt.s32.totalorder %s92, 1
        %s1344 = scalar_select %p1343, %s92, 1
        %s1345 = smul.addr %s1344, 8
        %s1346 = smul.addr %s1345, 8
        %s1347 = scalar_lea.vmem %s29, %s1346
        %p1348 = pneg %p457
        %p1349 = pneg %p454
        %s1350 = sand.u32 %s92, 1
        %s1351 = scalar_lea.sflag [#allocation19], %s1350
        %s1352 = sand.u32 %s470, 1
        %s1353 = scalar_lea.vmem [#allocation20], %s1352
        %p1354 = pneg %p483
        %p1355 = pneg %p480
        %p1356 = pneg %p504
        %p1357 = pneg %p501
        %p1358 = pneg %p525
        %p1359 = pneg %p522
        %p1360 = pneg %p546
        %p1361 = pneg %p543
        %p1362 = pneg %p567
        %p1363 = pneg %p564
        %p1364 = pneg %p588
        %p1365 = pneg %p585
        %p1366 = pneg %p609
        %p1367 = pneg %p606
        %p1368 = pneg %p630
        %p1369 = pneg %p627
        %p1370 = pneg %p651
        %p1371 = pneg %p648
        %p1372 = pneg %p672
        %p1373 = pneg %p669
        %p1374 = pneg %p693
        %p1375 = pneg %p690
        %p1376 = pneg %p714
        %p1377 = pneg %p711
        %p1378 = pneg %p735
        %p1379 = pneg %p732
        %p1380 = pneg %p756
        %p1381 = pneg %p753
        %p1382 = pneg %p777
        %p1383 = pneg %p774
        %p1384 = pneg %p798
        %p1385 = pneg %p795
        %p1386 = scmp.lt.s32.totalorder %s92, 1
        %s1387 = scalar_select %p1386, %s92, 1
        %s1388 = smul.addr %s1387, 4
        %s1389 = smul.addr %s1388, 8
        %s1390 = scalar_lea.vmem %s9, %s1389
        %p1391 = scmp.lt.s32.totalorder %s92, 1
        %s1392 = scalar_select %p1391, %s92, 1
        %s1393 = smul.addr %s1392, 4
        %s1394 = smul.addr %s1393, 8
        %s1395 = scalar_lea.vmem %s11, %s1394
        %p1396 = scmp.lt.s32.totalorder %s92, 1
        %s1397 = scalar_select %p1396, %s92, 1
        %s1398 = smul.addr %s1397, 4
        %s1399 = smul.addr %s1398, 8
        %s1400 = scalar_lea.vmem %s13, %s1399
        %p1401 = scmp.lt.s32.totalorder %s92, 1
        %s1402 = scalar_select %p1401, %s92, 1
        %s1403 = smul.addr %s1402, 8
        %s1404 = smul.addr %s1403, 8
        %s1405 = scalar_lea.vmem %s29, %s1404
        %p1406 = scmp.eq.s32.totalorder %s92, 0
        // Predicated region
        $region221: #{tpu_custom_call.1} parent=139 // pred_check
          %p1407 = pneg %p1406
        $region222: #{tpu_custom_call.1} parent=139 // pred_check_branch
          %1409 = sbr.rel (%p1407) target = $region224
        $region223: #{tpu_custom_call.1} parent=139 // pred_region
          %v1410 = vld [vmem:[%s3] sm:$0xff]
          %v1411 = vld [vmem:[%s3 + $0x8] sm:$0xff]
          %v1412 = vld [vmem:[#allocation6] sm:$0xff]
          %v1413 = vld [vmem:[#allocation8] sm:$0x1]
          %v1415 = vlaneseq
          %v1416 = vshrl.u32 %v1415, 7
          %v1417 = vsub.s32 0, %v1416
          %v1418 = vrot.slane %v1413, %v1417
          %vm1420 = vcmask 64512
          %v1422 = vsel %vm1420, %v1410, 0
          %v1425 = vsel %vm1420, %v1411, 0
          %1427 = vmatprep.subr.mxu0 0.0
          %1428 = vmatpush1.msra.mxu0 0.0
          %1429 = vmatprep.subr.mxu0 0.0
          %1430 = vmatpush1.msra.mxu0 0.0
          %1431 = vmatprep.subr.mxu0 0.0
          %1432 = vmatpush1.msra.mxu0 0.0
          %1433 = vmatprep.subr.mxu0 0.0
          %1434 = vmatpush1.msra.mxu0 0.0
          %1435 = vmatprep.subr.mxu0 0.0
          %1436 = vmatpush1.msra.mxu0 0.0
          %1437 = vmatprep.subr.mxu0 0.0
          %1438 = vmatpush1.msra.mxu0 0.0
          %1439 = vmatprep.subr.mxu0 0.0
          %1440 = vmatpush1.msra.mxu0 0.0
          %1441 = vmatprep.subr.mxu0 0.0
          %1442 = vmatpush1.msra.mxu0 0.0
          %1443 = vmatprep.subr.mxu0 0.0
          %1444 = vmatpush1.msra.mxu0 0.0
          %1445 = vmatprep.subr.mxu0 0.0
          %1446 = vmatpush1.msra.mxu0 0.0
          %1447 = vmatprep.subr.mxu0 0.0
          %1448 = vmatpush1.msra.mxu0 0.0
          %1449 = vmatprep.subr.mxu0 0.0
          %1450 = vmatpush1.msra.mxu0 0.0
          %1451 = vmatprep.subr.mxu0 0.0
          %1452 = vmatpush1.msra.mxu0 0.0
          %1453 = vmatprep.subr.mxu0 0.0
          %1454 = vmatpush1.msra.mxu0 0.0
          %1455 = vmatprep.subr.mxu0 0.0
          %1456 = vmatpush1.msra.mxu0 0.0
          %1457 = vmatprep.subr.mxu0 0.0
          %1458 = vmatpush1.msra.mxu0 %v1412
          %1459 = vmatprep.subr.mxu0 0.0
          %1460 = vmatpush2.msra.mxu0 0.0
          %1461 = vmatprep.subr.mxu0 0.0
          %1462 = vmatpush2.msra.mxu0 0.0
          %1463 = vmatprep.subr.mxu0 0.0
          %1464 = vmatpush2.msra.mxu0 0.0
          %1465 = vmatprep.subr.mxu0 0.0
          %1466 = vmatpush2.msra.mxu0 0.0
          %1467 = vmatprep.subr.mxu0 0.0
          %1468 = vmatpush2.msra.mxu0 0.0
          %1469 = vmatprep.subr.mxu0 0.0
          %1470 = vmatpush2.msra.mxu0 0.0
          %1471 = vmatprep.subr.mxu0 0.0
          %1472 = vmatpush2.msra.mxu0 0.0
          %1473 = vmatprep.subr.mxu0 0.0
          %1474 = vmatpush2.msra.mxu0 0.0
          %1475 = vmatprep.subr.mxu0 0.0
          %1476 = vmatpush2.msra.mxu0 0.0
          %1477 = vmatprep.subr.mxu0 0.0
          %1478 = vmatpush2.msra.mxu0 0.0
          %1479 = vmatprep.subr.mxu0 0.0
          %1480 = vmatpush2.msra.mxu0 0.0
          %1481 = vmatprep.subr.mxu0 0.0
          %1482 = vmatpush2.msra.mxu0 0.0
          %1483 = vmatprep.subr.mxu0 0.0
          %1484 = vmatpush2.msra.mxu0 0.0
          %1485 = vmatprep.subr.mxu0 0.0
          %1486 = vmatpush2.msra.mxu0 0.0
          %1487 = vmatprep.subr.mxu0 0.0
          %1488 = vmatpush2.msra.mxu0 0.0
          %1489 = vmatprep.subr.mxu0 0.0
          %1490 = vmatpush2.msra.mxu0 0.0
          %1491 = vmatprep.mubr.f32.mxu0 0.0
          %1492 = vmatmul.mubr.f32.gmra.mxu0 %v1422
          %v1493 = vpop.f32.mrf.mxu0
          %v1494 = vadd.f32 %v1418, %v1493
          %v1495 = vpop.f32.mrf.mxu0
          %1496 = vmatprep.mubr.f32.mxu0 0.0
          %1497 = vmatmul.mubr.f32.gmra.mxu0 %v1425
          %v1498 = vpop.f32.mrf.mxu0
          %v1499 = vadd.f32 %v1418, %v1498
          %v1500 = vpop.f32.mrf.mxu0
          %1501 = vdwg.mxu0
          %v1502 = vld [vmem:[#allocation3] sm:$0xff]
          %v1503 = vld [vmem:[#allocation3 + $0x8] sm:$0xff]
          %v1504 = vadd.f32 %v1502, %v1494
          %v1505 = vadd.f32 %v1503, %v1499
          %vm1506 = vcmask 261120
          %1507 = vst.msk [vmem:[#allocation2] sm:$0xff] %vm1506, %v1504
          %1508 = vst.msk [vmem:[#allocation2 + $0x8] sm:$0xff] %vm1506, %v1505
        $region224: #{tpu_custom_call.1} parent=139 // pred_fallthru
          _
        %v1509 = vld [vmem:[#allocation2] sm:$0xff]
        %v1510 = vld [vmem:[#allocation2 + $0x8] sm:$0xff]
        %vm1511 = vcmask 261120
        %v1512 = vsel %vm1511, %v1509, 0.0
        %1513 = vadd.xlane.f32.xlu0 %v1512
        %v1514 = vpop.xlane.xlu0 %1513
        %v1515 = vsel %vm1511, %v1510, 0.0
        %1516 = vadd.xlane.f32.xlu0 %v1515
        %v1517 = vpop.xlane.xlu0 %1516
        %v1518 = vrcp.pop 32.0
        %v1519 = vmul.f32 %v1514, %v1518
        %v1520 = vmul.f32 %v1517, %v1518
        %v1521 = vsub.f32 %v1509, %v1519
        %v1522 = vsub.f32 %v1510, %v1520
        %v1523 = vmul.f32 %v1521, %v1521
        %v1524 = vmul.f32 %v1522, %v1522
        %v1525 = vsel %vm1511, %v1523, 0.0
        %1526 = vadd.xlane.f32.xlu0 %v1525
        %v1527 = vpop.xlane.xlu0 %1526
        %v1528 = vsel %vm1511, %v1524, 0.0
        %1529 = vadd.xlane.f32.xlu0 %v1528
        %v1530 = vpop.xlane.xlu0 %1529
        %v1531 = vmul.f32 %v1527, %v1518
        %v1532 = vmul.f32 %v1530, %v1518
        %v1533 = vadd.f32 %v1531, 1e-05
        %v1534 = vadd.f32 %v1532, 1e-05
        %v1535 = vrsqrt.pop %v1533
        %v1536 = vrsqrt.pop %v1534
        %v1537 = vmul.f32 %v1521, %v1535
        %v1538 = vmul.f32 %v1522, %v1536
        %v1539 = vld [vmem:[%s1180] sm:$0x1]
        %v1541 = vlaneseq
        %v1542 = vshrl.u32 %v1541, 7
        %v1543 = vsub.s32 0, %v1542
        %v1544 = vrot.slane %v1539, %v1543
        %v1546 = vmul.f32 %v1537, %v1544
        %v1547 = vmul.f32 %v1538, %v1544
        %v1548 = vld [vmem:[%s1188] sm:$0x1]
        %v1550 = vlaneseq
        %v1551 = vshrl.u32 %v1550, 7
        %v1552 = vsub.s32 0, %v1551
        %v1553 = vrot.slane %v1548, %v1552
        %v1555 = vadd.f32 %v1546, %v1553
        %v1556 = vadd.f32 %v1547, %v1553
        %v1557 = vld [vmem:[%s1390] sm:$0xff]
        %v1558 = vld [vmem:[%s1390 + $0x8] sm:$0xff]
        %v1559 = vld [vmem:[%s1390 + $0x10] sm:$0xff]
        %v1560 = vld [vmem:[%s1390 + $0x18] sm:$0xff]
        %v1562 = vsel %vm1511, %v1555, 0
        %v1565 = vsel %vm1511, %v1556, 0
        %1567 = vmatprep.subr.mxu0 0.0
        %1568 = vmatpush1.msra.mxu0 0.0
        %1569 = vmatprep.subr.mxu0 0.0
        %1570 = vmatpush1.msra.mxu0 0.0
        %1571 = vmatprep.subr.mxu0 0.0
        %1572 = vmatpush1.msra.mxu0 0.0
        %1573 = vmatprep.subr.mxu0 0.0
        %1574 = vmatpush1.msra.mxu0 0.0
        %1575 = vmatprep.subr.mxu0 0.0
        %1576 = vmatpush1.msra.mxu0 0.0
        %1577 = vmatprep.subr.mxu0 0.0
        %1578 = vmatpush1.msra.mxu0 0.0
        %1579 = vmatprep.subr.mxu0 0.0
        %1580 = vmatpush1.msra.mxu0 0.0
        %1581 = vmatprep.subr.mxu0 0.0
        %1582 = vmatpush1.msra.mxu0 0.0
        %1583 = vmatprep.subr.mxu0 0.0
        %1584 = vmatpush1.msra.mxu0 0.0
        %1585 = vmatprep.subr.mxu0 0.0
        %1586 = vmatpush1.msra.mxu0 0.0
        %1587 = vmatprep.subr.mxu0 0.0
        %1588 = vmatpush1.msra.mxu0 0.0
        %1589 = vmatprep.subr.mxu0 0.0
        %1590 = vmatpush1.msra.mxu0 0.0
        %1591 = vmatprep.subr.mxu0 0.0
        %1592 = vmatpush1.msra.mxu0 %v1560
        %1593 = vmatprep.subr.mxu0 0.0
        %1594 = vmatpush1.msra.mxu0 %v1559
        %1595 = vmatprep.subr.mxu0 0.0
        %1596 = vmatpush1.msra.mxu0 %v1558
        %1597 = vmatprep.subr.mxu0 0.0
        %1598 = vmatpush1.msra.mxu0 %v1557
        %1599 = vmatprep.subr.mxu0 0.0
        %1600 = vmatpush2.msra.mxu0 0.0
        %1601 = vmatprep.subr.mxu0 0.0
        %1602 = vmatpush2.msra.mxu0 0.0
        %1603 = vmatprep.subr.mxu0 0.0
        %1604 = vmatpush2.msra.mxu0 0.0
        %1605 = vmatprep.subr.mxu0 0.0
        %1606 = vmatpush2.msra.mxu0 0.0
        %1607 = vmatprep.subr.mxu0 0.0
        %1608 = vmatpush2.msra.mxu0 0.0
        %1609 = vmatprep.subr.mxu0 0.0
        %1610 = vmatpush2.msra.mxu0 0.0
        %1611 = vmatprep.subr.mxu0 0.0
        %1612 = vmatpush2.msra.mxu0 0.0
        %1613 = vmatprep.subr.mxu0 0.0
        %1614 = vmatpush2.msra.mxu0 0.0
        %1615 = vmatprep.subr.mxu0 0.0
        %1616 = vmatpush2.msra.mxu0 0.0
        %1617 = vmatprep.subr.mxu0 0.0
        %1618 = vmatpush2.msra.mxu0 0.0
        %1619 = vmatprep.subr.mxu0 0.0
        %1620 = vmatpush2.msra.mxu0 0.0
        %1621 = vmatprep.subr.mxu0 0.0
        %1622 = vmatpush2.msra.mxu0 0.0
        %1623 = vmatprep.subr.mxu0 0.0
        %1624 = vmatpush2.msra.mxu0 0.0
        %1625 = vmatprep.subr.mxu0 0.0
        %1626 = vmatpush2.msra.mxu0 0.0
        %1627 = vmatprep.subr.mxu0 0.0
        %1628 = vmatpush2.msra.mxu0 0.0
        %1629 = vmatprep.subr.mxu0 0.0
        %1630 = vmatpush2.msra.mxu0 0.0
        %1631 = vmatprep.mubr.f32.mxu0 0.0
        %1632 = vmatmul.mubr.f32.gmra.mxu0 %v1562
        %v1633 = vpop.f32.mrf.mxu0
        %v1634 = vadd.f32 0.0, %v1633
        %v1635 = vpop.f32.mrf.mxu0
        %1636 = vmatprep.mubr.f32.mxu0 0.0
        %1637 = vmatmul.mubr.f32.gmra.mxu0 %v1565
        %v1638 = vpop.f32.mrf.mxu0
        %v1639 = vadd.f32 0.0, %v1638
        %v1640 = vpop.f32.mrf.mxu0
        %1641 = vdwg.mxu0
        %v1642 = vld [vmem:[%s1395] sm:$0xff]
        %v1643 = vld [vmem:[%s1395 + $0x8] sm:$0xff]
        %v1644 = vld [vmem:[%s1395 + $0x10] sm:$0xff]
        %v1645 = vld [vmem:[%s1395 + $0x18] sm:$0xff]
        %1646 = vmatprep.subr.mxu0 0.0
        %1647 = vmatpush1.msra.mxu0 0.0
        %1648 = vmatprep.subr.mxu0 0.0
        %1649 = vmatpush1.msra.mxu0 0.0
        %1650 = vmatprep.subr.mxu0 0.0
        %1651 = vmatpush1.msra.mxu0 0.0
        %1652 = vmatprep.subr.mxu0 0.0
        %1653 = vmatpush1.msra.mxu0 0.0
        %1654 = vmatprep.subr.mxu0 0.0
        %1655 = vmatpush1.msra.mxu0 0.0
        %1656 = vmatprep.subr.mxu0 0.0
        %1657 = vmatpush1.msra.mxu0 0.0
        %1658 = vmatprep.subr.mxu0 0.0
        %1659 = vmatpush1.msra.mxu0 0.0
        %1660 = vmatprep.subr.mxu0 0.0
        %1661 = vmatpush1.msra.mxu0 0.0
        %1662 = vmatprep.subr.mxu0 0.0
        %1663 = vmatpush1.msra.mxu0 0.0
        %1664 = vmatprep.subr.mxu0 0.0
        %1665 = vmatpush1.msra.mxu0 0.0
        %1666 = vmatprep.subr.mxu0 0.0
        %1667 = vmatpush1.msra.mxu0 0.0
        %1668 = vmatprep.subr.mxu0 0.0
        %1669 = vmatpush1.msra.mxu0 0.0
        %1670 = vmatprep.subr.mxu0 0.0
        %1671 = vmatpush1.msra.mxu0 %v1645
        %1672 = vmatprep.subr.mxu0 0.0
        %1673 = vmatpush1.msra.mxu0 %v1644
        %1674 = vmatprep.subr.mxu0 0.0
        %1675 = vmatpush1.msra.mxu0 %v1643
        %1676 = vmatprep.subr.mxu0 0.0
        %1677 = vmatpush1.msra.mxu0 %v1642
        %1678 = vmatprep.subr.mxu0 0.0
        %1679 = vmatpush2.msra.mxu0 0.0
        %1680 = vmatprep.subr.mxu0 0.0
        %1681 = vmatpush2.msra.mxu0 0.0
        %1682 = vmatprep.subr.mxu0 0.0
        %1683 = vmatpush2.msra.mxu0 0.0
        %1684 = vmatprep.subr.mxu0 0.0
        %1685 = vmatpush2.msra.mxu0 0.0
        %1686 = vmatprep.subr.mxu0 0.0
        %1687 = vmatpush2.msra.mxu0 0.0
        %1688 = vmatprep.subr.mxu0 0.0
        %1689 = vmatpush2.msra.mxu0 0.0
        %1690 = vmatprep.subr.mxu0 0.0
        %1691 = vmatpush2.msra.mxu0 0.0
        %1692 = vmatprep.subr.mxu0 0.0
        %1693 = vmatpush2.msra.mxu0 0.0
        %1694 = vmatprep.subr.mxu0 0.0
        %1695 = vmatpush2.msra.mxu0 0.0
        %1696 = vmatprep.subr.mxu0 0.0
        %1697 = vmatpush2.msra.mxu0 0.0
        %1698 = vmatprep.subr.mxu0 0.0
        %1699 = vmatpush2.msra.mxu0 0.0
        %1700 = vmatprep.subr.mxu0 0.0
        %1701 = vmatpush2.msra.mxu0 0.0
        %1702 = vmatprep.subr.mxu0 0.0
        %1703 = vmatpush2.msra.mxu0 0.0
        %1704 = vmatprep.subr.mxu0 0.0
        %1705 = vmatpush2.msra.mxu0 0.0
        %1706 = vmatprep.subr.mxu0 0.0
        %1707 = vmatpush2.msra.mxu0 0.0
        %1708 = vmatprep.subr.mxu0 0.0
        %1709 = vmatpush2.msra.mxu0 0.0
        %1710 = vmatprep.mubr.f32.mxu0 0.0
        %1711 = vmatmul.mubr.f32.gmra.mxu0 %v1562
        %v1712 = vpop.f32.mrf.mxu0
        %v1713 = vadd.f32 0.0, %v1712
        %v1714 = vpop.f32.mrf.mxu0
        %1715 = vmatprep.mubr.f32.mxu0 0.0
        %1716 = vmatmul.mubr.f32.gmra.mxu0 %v1565
        %v1717 = vpop.f32.mrf.mxu0
        %v1718 = vadd.f32 0.0, %v1717
        %v1719 = vpop.f32.mrf.mxu0
        %1720 = vdwg.mxu0
        %v1721 = vld [vmem:[%s1400] sm:$0xff]
        %v1722 = vld [vmem:[%s1400 + $0x8] sm:$0xff]
        %v1723 = vld [vmem:[%s1400 + $0x10] sm:$0xff]
        %v1724 = vld [vmem:[%s1400 + $0x18] sm:$0xff]
        %1725 = vmatprep.subr.mxu0 0.0
        %1726 = vmatpush1.msra.mxu0 0.0
        %1727 = vmatprep.subr.mxu0 0.0
        %1728 = vmatpush1.msra.mxu0 0.0
        %1729 = vmatprep.subr.mxu0 0.0
        %1730 = vmatpush1.msra.mxu0 0.0
        %1731 = vmatprep.subr.mxu0 0.0
        %1732 = vmatpush1.msra.mxu0 0.0
        %1733 = vmatprep.subr.mxu0 0.0
        %1734 = vmatpush1.msra.mxu0 0.0
        %1735 = vmatprep.subr.mxu0 0.0
        %1736 = vmatpush1.msra.mxu0 0.0
        %1737 = vmatprep.subr.mxu0 0.0
        %1738 = vmatpush1.msra.mxu0 0.0
        %1739 = vmatprep.subr.mxu0 0.0
        %1740 = vmatpush1.msra.mxu0 0.0
        %1741 = vmatprep.subr.mxu0 0.0
        %1742 = vmatpush1.msra.mxu0 0.0
        %1743 = vmatprep.subr.mxu0 0.0
        %1744 = vmatpush1.msra.mxu0 0.0
        %1745 = vmatprep.subr.mxu0 0.0
        %1746 = vmatpush1.msra.mxu0 0.0
        %1747 = vmatprep.subr.mxu0 0.0
        %1748 = vmatpush1.msra.mxu0 0.0
        %1749 = vmatprep.subr.mxu0 0.0
        %1750 = vmatpush1.msra.mxu0 %v1724
        %1751 = vmatprep.subr.mxu0 0.0
        %1752 = vmatpush1.msra.mxu0 %v1723
        %1753 = vmatprep.subr.mxu0 0.0
        %1754 = vmatpush1.msra.mxu0 %v1722
        %1755 = vmatprep.subr.mxu0 0.0
        %1756 = vmatpush1.msra.mxu0 %v1721
        %1757 = vmatprep.subr.mxu0 0.0
        %1758 = vmatpush2.msra.mxu0 0.0
        %1759 = vmatprep.subr.mxu0 0.0
        %1760 = vmatpush2.msra.mxu0 0.0
        %1761 = vmatprep.subr.mxu0 0.0
        %1762 = vmatpush2.msra.mxu0 0.0
        %1763 = vmatprep.subr.mxu0 0.0
        %1764 = vmatpush2.msra.mxu0 0.0
        %1765 = vmatprep.subr.mxu0 0.0
        %1766 = vmatpush2.msra.mxu0 0.0
        %1767 = vmatprep.subr.mxu0 0.0
        %1768 = vmatpush2.msra.mxu0 0.0
        %1769 = vmatprep.subr.mxu0 0.0
        %1770 = vmatpush2.msra.mxu0 0.0
        %1771 = vmatprep.subr.mxu0 0.0
        %1772 = vmatpush2.msra.mxu0 0.0
        %1773 = vmatprep.subr.mxu0 0.0
        %1774 = vmatpush2.msra.mxu0 0.0
        %1775 = vmatprep.subr.mxu0 0.0
        %1776 = vmatpush2.msra.mxu0 0.0
        %1777 = vmatprep.subr.mxu0 0.0
        %1778 = vmatpush2.msra.mxu0 0.0
        %1779 = vmatprep.subr.mxu0 0.0
        %1780 = vmatpush2.msra.mxu0 0.0
        %1781 = vmatprep.subr.mxu0 0.0
        %1782 = vmatpush2.msra.mxu0 0.0
        %1783 = vmatprep.subr.mxu0 0.0
        %1784 = vmatpush2.msra.mxu0 0.0
        %1785 = vmatprep.subr.mxu0 0.0
        %1786 = vmatpush2.msra.mxu0 0.0
        %1787 = vmatprep.subr.mxu0 0.0
        %1788 = vmatpush2.msra.mxu0 0.0
        %1789 = vmatprep.mubr.f32.mxu0 0.0
        %1790 = vmatmul.mubr.f32.gmra.mxu0 %v1562
        %v1791 = vpop.f32.mrf.mxu0
        %v1792 = vadd.f32 0.0, %v1791
        %v1793 = vpop.f32.mrf.mxu0
        %1794 = vmatprep.mubr.f32.mxu0 0.0
        %1795 = vmatmul.mubr.f32.gmra.mxu0 %v1565
        %v1796 = vpop.f32.mrf.mxu0
        %v1797 = vadd.f32 0.0, %v1796
        %v1798 = vpop.f32.mrf.mxu0
        %1799 = vdwg.mxu0
        %v1801 = vsel %vm1511, %v1634, 0
        %v1804 = vsel %vm1511, %v1713, 0
        %1806 = vmatprep.subr.mxu0 0.0
        %1807 = vmatpush1.xpose.msra.mxu0 0.0
        %1808 = vmatprep.subr.mxu0 0.0
        %1809 = vmatpush1.xpose.msra.mxu0 0.0
        %1810 = vmatprep.subr.mxu0 0.0
        %1811 = vmatpush1.xpose.msra.mxu0 0.0
        %1812 = vmatprep.subr.mxu0 0.0
        %1813 = vmatpush1.xpose.msra.mxu0 0.0
        %1814 = vmatprep.subr.mxu0 0.0
        %1815 = vmatpush1.xpose.msra.mxu0 0.0
        %1816 = vmatprep.subr.mxu0 0.0
        %1817 = vmatpush1.xpose.msra.mxu0 0.0
        %1818 = vmatprep.subr.mxu0 0.0
        %1819 = vmatpush1.xpose.msra.mxu0 0.0
        %1820 = vmatprep.subr.mxu0 0.0
        %1821 = vmatpush1.xpose.msra.mxu0 0.0
        %1822 = vmatprep.subr.mxu0 0.0
        %1823 = vmatpush1.xpose.msra.mxu0 0.0
        %1824 = vmatprep.subr.mxu0 0.0
        %1825 = vmatpush1.xpose.msra.mxu0 0.0
        %1826 = vmatprep.subr.mxu0 0.0
        %1827 = vmatpush1.xpose.msra.mxu0 0.0
        %1828 = vmatprep.subr.mxu0 0.0
        %1829 = vmatpush1.xpose.msra.mxu0 0.0
        %1830 = vmatprep.subr.mxu0 0.0
        %1831 = vmatpush1.xpose.msra.mxu0 0.0
        %1832 = vmatprep.subr.mxu0 0.0
        %1833 = vmatpush1.xpose.msra.mxu0 0.0
        %1834 = vmatprep.subr.mxu0 0.0
        %1835 = vmatpush1.xpose.msra.mxu0 0.0
        %1836 = vmatprep.subr.mxu0 0.0
        %1837 = vmatpush1.xpose.msra.mxu0 %v1804
        %1838 = vmatprep.subr.mxu0 0.0
        %1839 = vmatpush2.xpose.msra.mxu0 0.0
        %1840 = vmatprep.subr.mxu0 0.0
        %1841 = vmatpush2.xpose.msra.mxu0 0.0
        %1842 = vmatprep.subr.mxu0 0.0
        %1843 = vmatpush2.xpose.msra.mxu0 0.0
        %1844 = vmatprep.subr.mxu0 0.0
        %1845 = vmatpush2.xpose.msra.mxu0 0.0
        %1846 = vmatprep.subr.mxu0 0.0
        %1847 = vmatpush2.xpose.msra.mxu0 0.0
        %1848 = vmatprep.subr.mxu0 0.0
        %1849 = vmatpush2.xpose.msra.mxu0 0.0
        %1850 = vmatprep.subr.mxu0 0.0
        %1851 = vmatpush2.xpose.msra.mxu0 0.0
        %1852 = vmatprep.subr.mxu0 0.0
        %1853 = vmatpush2.xpose.msra.mxu0 0.0
        %1854 = vmatprep.subr.mxu0 0.0
        %1855 = vmatpush2.xpose.msra.mxu0 0.0
        %1856 = vmatprep.subr.mxu0 0.0
        %1857 = vmatpush2.xpose.msra.mxu0 0.0
        %1858 = vmatprep.subr.mxu0 0.0
        %1859 = vmatpush2.xpose.msra.mxu0 0.0
        %1860 = vmatprep.subr.mxu0 0.0
        %1861 = vmatpush2.xpose.msra.mxu0 0.0
        %1862 = vmatprep.subr.mxu0 0.0
        %1863 = vmatpush2.xpose.msra.mxu0 0.0
        %1864 = vmatprep.subr.mxu0 0.0
        %1865 = vmatpush2.xpose.msra.mxu0 0.0
        %1866 = vmatprep.subr.mxu0 0.0
        %1867 = vmatpush2.xpose.msra.mxu0 0.0
        %1868 = vmatprep.subr.mxu0 0.0
        %1869 = vmatpush2.xpose.msra.mxu0 0.0
        %1870 = vmatprep.mubr.f32.mxu0 0.0
        %1871 = vmatmul.mubr.f32.gmra.mxu0 %v1801
        %v1872 = vpop.f32.mrf.mxu0
        %v1873 = vadd.f32 0.0, %v1872
        %v1874 = vpop.f32.mrf.mxu0
        %1875 = vdwg.mxu0
        %v1877 = vsel %vm1511, %v1639, 0
        %v1880 = vsel %vm1511, %v1718, 0
        %1882 = vmatprep.subr.mxu0 0.0
        %1883 = vmatpush1.xpose.msra.mxu0 0.0
        %1884 = vmatprep.subr.mxu0 0.0
        %1885 = vmatpush1.xpose.msra.mxu0 0.0
        %1886 = vmatprep.subr.mxu0 0.0
        %1887 = vmatpush1.xpose.msra.mxu0 0.0
        %1888 = vmatprep.subr.mxu0 0.0
        %1889 = vmatpush1.xpose.msra.mxu0 0.0
        %1890 = vmatprep.subr.mxu0 0.0
        %1891 = vmatpush1.xpose.msra.mxu0 0.0
        %1892 = vmatprep.subr.mxu0 0.0
        %1893 = vmatpush1.xpose.msra.mxu0 0.0
        %1894 = vmatprep.subr.mxu0 0.0
        %1895 = vmatpush1.xpose.msra.mxu0 0.0
        %1896 = vmatprep.subr.mxu0 0.0
        %1897 = vmatpush1.xpose.msra.mxu0 0.0
        %1898 = vmatprep.subr.mxu0 0.0
        %1899 = vmatpush1.xpose.msra.mxu0 0.0
        %1900 = vmatprep.subr.mxu0 0.0
        %1901 = vmatpush1.xpose.msra.mxu0 0.0
        %1902 = vmatprep.subr.mxu0 0.0
        %1903 = vmatpush1.xpose.msra.mxu0 0.0
        %1904 = vmatprep.subr.mxu0 0.0
        %1905 = vmatpush1.xpose.msra.mxu0 0.0
        %1906 = vmatprep.subr.mxu0 0.0
        %1907 = vmatpush1.xpose.msra.mxu0 0.0
        %1908 = vmatprep.subr.mxu0 0.0
        %1909 = vmatpush1.xpose.msra.mxu0 0.0
        %1910 = vmatprep.subr.mxu0 0.0
        %1911 = vmatpush1.xpose.msra.mxu0 0.0
        %1912 = vmatprep.subr.mxu0 0.0
        %1913 = vmatpush1.xpose.msra.mxu0 %v1880
        %1914 = vmatprep.subr.mxu0 0.0
        %1915 = vmatpush2.xpose.msra.mxu0 0.0
        %1916 = vmatprep.subr.mxu0 0.0
        %1917 = vmatpush2.xpose.msra.mxu0 0.0
        %1918 = vmatprep.subr.mxu0 0.0
        %1919 = vmatpush2.xpose.msra.mxu0 0.0
        %1920 = vmatprep.subr.mxu0 0.0
        %1921 = vmatpush2.xpose.msra.mxu0 0.0
        %1922 = vmatprep.subr.mxu0 0.0
        %1923 = vmatpush2.xpose.msra.mxu0 0.0
        %1924 = vmatprep.subr.mxu0 0.0
        %1925 = vmatpush2.xpose.msra.mxu0 0.0
        %1926 = vmatprep.subr.mxu0 0.0
        %1927 = vmatpush2.xpose.msra.mxu0 0.0
        %1928 = vmatprep.subr.mxu0 0.0
        %1929 = vmatpush2.xpose.msra.mxu0 0.0
        %1930 = vmatprep.subr.mxu0 0.0
        %1931 = vmatpush2.xpose.msra.mxu0 0.0
        %1932 = vmatprep.subr.mxu0 0.0
        %1933 = vmatpush2.xpose.msra.mxu0 0.0
        %1934 = vmatprep.subr.mxu0 0.0
        %1935 = vmatpush2.xpose.msra.mxu0 0.0
        %1936 = vmatprep.subr.mxu0 0.0
        %1937 = vmatpush2.xpose.msra.mxu0 0.0
        %1938 = vmatprep.subr.mxu0 0.0
        %1939 = vmatpush2.xpose.msra.mxu0 0.0
        %1940 = vmatprep.subr.mxu0 0.0
        %1941 = vmatpush2.xpose.msra.mxu0 0.0
        %1942 = vmatprep.subr.mxu0 0.0
        %1943 = vmatpush2.xpose.msra.mxu0 0.0
        %1944 = vmatprep.subr.mxu0 0.0
        %1945 = vmatpush2.xpose.msra.mxu0 0.0
        %1946 = vmatprep.mubr.f32.mxu0 0.0
        %1947 = vmatmul.mubr.f32.gmra.mxu0 %v1877
        %v1948 = vpop.f32.mrf.mxu0
        %v1949 = vadd.f32 0.0, %v1948
        %v1950 = vpop.f32.mrf.mxu0
        %1951 = vdwg.mxu0
        %v1952 = vmul.f32 %v1873, 0.17677669
        %v1953 = vmul.f32 %v1949, 0.17677669
        %vm1954 = vcmask 64512
        %v1955 = vsel %vm1954, %v1952, -inf
        %1956 = vmax.xlane.f32.xlu0 %v1955
        %v1957 = vpop.xlane.xlu0 %1956
        %v1958 = vsel %vm1954, %v1953, -inf
        %1959 = vmax.xlane.f32.xlu0 %v1958
        %v1960 = vpop.xlane.xlu0 %1959
        %v1961 = vsub.f32 %v1952, %v1957
        %v1962 = vsub.f32 %v1953, %v1960
        %v1963 = vmul.f32 %v1961, 1.442695
        %v1964 = vpow.pop %v1963
        %v1965 = vmul.f32 %v1962, 1.442695
        %v1966 = vpow.pop %v1965
        %v1967 = vsel %vm1954, %v1964, 0.0
        %1968 = vadd.xlane.f32.xlu0 %v1967
        %v1969 = vpop.xlane.xlu0 %1968
        %v1970 = vsel %vm1954, %v1966, 0.0
        %1971 = vadd.xlane.f32.xlu0 %v1970
        %v1972 = vpop.xlane.xlu0 %1971
        %v1973 = vrcp.pop %v1969
        %v1974 = vrcp.pop %v1972
        %v1975 = vmul.f32 %v1964, %v1973
        %v1976 = vmul.f32 %v1966, %v1974
        %v1978 = vsel %vm1954, %v1975, 0
        %1980 = vmatprep.subr.mxu0 0.0
        %1981 = vmatpush1.msra.mxu0 0.0
        %1982 = vmatprep.subr.mxu0 0.0
        %1983 = vmatpush1.msra.mxu0 0.0
        %1984 = vmatprep.subr.mxu0 0.0
        %1985 = vmatpush1.msra.mxu0 0.0
        %1986 = vmatprep.subr.mxu0 0.0
        %1987 = vmatpush1.msra.mxu0 0.0
        %1988 = vmatprep.subr.mxu0 0.0
        %1989 = vmatpush1.msra.mxu0 0.0
        %1990 = vmatprep.subr.mxu0 0.0
        %1991 = vmatpush1.msra.mxu0 0.0
        %1992 = vmatprep.subr.mxu0 0.0
        %1993 = vmatpush1.msra.mxu0 0.0
        %1994 = vmatprep.subr.mxu0 0.0
        %1995 = vmatpush1.msra.mxu0 0.0
        %1996 = vmatprep.subr.mxu0 0.0
        %1997 = vmatpush1.msra.mxu0 0.0
        %1998 = vmatprep.subr.mxu0 0.0
        %1999 = vmatpush1.msra.mxu0 0.0
        %2000 = vmatprep.subr.mxu0 0.0
        %2001 = vmatpush1.msra.mxu0 0.0
        %2002 = vmatprep.subr.mxu0 0.0
        %2003 = vmatpush1.msra.mxu0 0.0
        %2004 = vmatprep.subr.mxu0 0.0
        %2005 = vmatpush1.msra.mxu0 0.0
        %2006 = vmatprep.subr.mxu0 0.0
        %2007 = vmatpush1.msra.mxu0 0.0
        %2008 = vmatprep.subr.mxu0 0.0
        %2009 = vmatpush1.msra.mxu0 0.0
        %2010 = vmatprep.subr.mxu0 0.0
        %2011 = vmatpush1.msra.mxu0 %v1792
        %2012 = vmatprep.subr.mxu0 0.0
        %2013 = vmatpush2.msra.mxu0 0.0
        %2014 = vmatprep.subr.mxu0 0.0
        %2015 = vmatpush2.msra.mxu0 0.0
        %2016 = vmatprep.subr.mxu0 0.0
        %2017 = vmatpush2.msra.mxu0 0.0
        %2018 = vmatprep.subr.mxu0 0.0
        %2019 = vmatpush2.msra.mxu0 0.0
        %2020 = vmatprep.subr.mxu0 0.0
        %2021 = vmatpush2.msra.mxu0 0.0
        %2022 = vmatprep.subr.mxu0 0.0
        %2023 = vmatpush2.msra.mxu0 0.0
        %2024 = vmatprep.subr.mxu0 0.0
        %2025 = vmatpush2.msra.mxu0 0.0
        %2026 = vmatprep.subr.mxu0 0.0
        %2027 = vmatpush2.msra.mxu0 0.0
        %2028 = vmatprep.subr.mxu0 0.0
        %2029 = vmatpush2.msra.mxu0 0.0
        %2030 = vmatprep.subr.mxu0 0.0
        %2031 = vmatpush2.msra.mxu0 0.0
        %2032 = vmatprep.subr.mxu0 0.0
        %2033 = vmatpush2.msra.mxu0 0.0
        %2034 = vmatprep.subr.mxu0 0.0
        %2035 = vmatpush2.msra.mxu0 0.0
        %2036 = vmatprep.subr.mxu0 0.0
        %2037 = vmatpush2.msra.mxu0 0.0
        %2038 = vmatprep.subr.mxu0 0.0
        %2039 = vmatpush2.msra.mxu0 0.0
        %2040 = vmatprep.subr.mxu0 0.0
        %2041 = vmatpush2.msra.mxu0 0.0
        %2042 = vmatprep.subr.mxu0 0.0
        %2043 = vmatpush2.msra.mxu0 0.0
        %2044 = vmatprep.mubr.f32.mxu0 0.0
        %2045 = vmatmul.mubr.f32.gmra.mxu0 %v1978
        %v2046 = vpop.f32.mrf.mxu0
        %v2047 = vadd.f32 0.0, %v2046
        %v2048 = vpop.f32.mrf.mxu0
        %2049 = vdwg.mxu0
        %v2051 = vsel %vm1954, %v1976, 0
        %2053 = vmatprep.subr.mxu0 0.0
        %2054 = vmatpush1.msra.mxu0 0.0
        %2055 = vmatprep.subr.mxu0 0.0
        %2056 = vmatpush1.msra.mxu0 0.0
        %2057 = vmatprep.subr.mxu0 0.0
        %2058 = vmatpush1.msra.mxu0 0.0
        %2059 = vmatprep.subr.mxu0 0.0
        %2060 = vmatpush1.msra.mxu0 0.0
        %2061 = vmatprep.subr.mxu0 0.0
        %2062 = vmatpush1.msra.mxu0 0.0
        %2063 = vmatprep.subr.mxu0 0.0
        %2064 = vmatpush1.msra.mxu0 0.0
        %2065 = vmatprep.subr.mxu0 0.0
        %2066 = vmatpush1.msra.mxu0 0.0
        %2067 = vmatprep.subr.mxu0 0.0
        %2068 = vmatpush1.msra.mxu0 0.0
        %2069 = vmatprep.subr.mxu0 0.0
        %2070 = vmatpush1.msra.mxu0 0.0
        %2071 = vmatprep.subr.mxu0 0.0
        %2072 = vmatpush1.msra.mxu0 0.0
        %2073 = vmatprep.subr.mxu0 0.0
        %2074 = vmatpush1.msra.mxu0 0.0
        %2075 = vmatprep.subr.mxu0 0.0
        %2076 = vmatpush1.msra.mxu0 0.0
        %2077 = vmatprep.subr.mxu0 0.0
        %2078 = vmatpush1.msra.mxu0 0.0
        %2079 = vmatprep.subr.mxu0 0.0
        %2080 = vmatpush1.msra.mxu0 0.0
        %2081 = vmatprep.subr.mxu0 0.0
        %2082 = vmatpush1.msra.mxu0 0.0
        %2083 = vmatprep.subr.mxu0 0.0
        %2084 = vmatpush1.msra.mxu0 %v1797
        %2085 = vmatprep.subr.mxu0 0.0
        %2086 = vmatpush2.msra.mxu0 0.0
        %2087 = vmatprep.subr.mxu0 0.0
        %2088 = vmatpush2.msra.mxu0 0.0
        %2089 = vmatprep.subr.mxu0 0.0
        %2090 = vmatpush2.msra.mxu0 0.0
        %2091 = vmatprep.subr.mxu0 0.0
        %2092 = vmatpush2.msra.mxu0 0.0
        %2093 = vmatprep.subr.mxu0 0.0
        %2094 = vmatpush2.msra.mxu0 0.0
        %2095 = vmatprep.subr.mxu0 0.0
        %2096 = vmatpush2.msra.mxu0 0.0
        %2097 = vmatprep.subr.mxu0 0.0
        %2098 = vmatpush2.msra.mxu0 0.0
        %2099 = vmatprep.subr.mxu0 0.0
        %2100 = vmatpush2.msra.mxu0 0.0
        %2101 = vmatprep.subr.mxu0 0.0
        %2102 = vmatpush2.msra.mxu0 0.0
        %2103 = vmatprep.subr.mxu0 0.0
        %2104 = vmatpush2.msra.mxu0 0.0
        %2105 = vmatprep.subr.mxu0 0.0
        %2106 = vmatpush2.msra.mxu0 0.0
        %2107 = vmatprep.subr.mxu0 0.0
        %2108 = vmatpush2.msra.mxu0 0.0
        %2109 = vmatprep.subr.mxu0 0.0
        %2110 = vmatpush2.msra.mxu0 0.0
        %2111 = vmatprep.subr.mxu0 0.0
        %2112 = vmatpush2.msra.mxu0 0.0
        %2113 = vmatprep.subr.mxu0 0.0
        %2114 = vmatpush2.msra.mxu0 0.0
        %2115 = vmatprep.subr.mxu0 0.0
        %2116 = vmatpush2.msra.mxu0 0.0
        %2117 = vmatprep.mubr.f32.mxu0 0.0
        %2118 = vmatmul.mubr.f32.gmra.mxu0 %v2051
        %v2119 = vpop.f32.mrf.mxu0
        %v2120 = vadd.f32 0.0, %v2119
        %v2121 = vpop.f32.mrf.mxu0
        %2122 = vdwg.mxu0
        %v2123 = vld [vmem:[%s1172] sm:$0xff]
        %v2124 = vld [vmem:[%s1172 + $0x8] sm:$0xff]
        %v2125 = vld [vmem:[%s1172 + $0x10] sm:$0xff]
        %v2126 = vld [vmem:[%s1172 + $0x18] sm:$0xff]
        %v2128 = vsel %vm1511, %v2047, 0
        %v2131 = vsel %vm1511, %v2120, 0
        %2133 = vmatprep.subr.mxu0 0.0
        %2134 = vmatpush1.msra.mxu0 0.0
        %2135 = vmatprep.subr.mxu0 0.0
        %2136 = vmatpush1.msra.mxu0 0.0
        %2137 = vmatprep.subr.mxu0 0.0
        %2138 = vmatpush1.msra.mxu0 0.0
        %2139 = vmatprep.subr.mxu0 0.0
        %2140 = vmatpush1.msra.mxu0 0.0
        %2141 = vmatprep.subr.mxu0 0.0
        %2142 = vmatpush1.msra.mxu0 0.0
        %2143 = vmatprep.subr.mxu0 0.0
        %2144 = vmatpush1.msra.mxu0 0.0
        %2145 = vmatprep.subr.mxu0 0.0
        %2146 = vmatpush1.msra.mxu0 0.0
        %2147 = vmatprep.subr.mxu0 0.0
        %2148 = vmatpush1.msra.mxu0 0.0
        %2149 = vmatprep.subr.mxu0 0.0
        %2150 = vmatpush1.msra.mxu0 0.0
        %2151 = vmatprep.subr.mxu0 0.0
        %2152 = vmatpush1.msra.mxu0 0.0
        %2153 = vmatprep.subr.mxu0 0.0
        %2154 = vmatpush1.msra.mxu0 0.0
        %2155 = vmatprep.subr.mxu0 0.0
        %2156 = vmatpush1.msra.mxu0 0.0
        %2157 = vmatprep.subr.mxu0 0.0
        %2158 = vmatpush1.msra.mxu0 %v2126
        %2159 = vmatprep.subr.mxu0 0.0
        %2160 = vmatpush1.msra.mxu0 %v2125
        %2161 = vmatprep.subr.mxu0 0.0
        %2162 = vmatpush1.msra.mxu0 %v2124
        %2163 = vmatprep.subr.mxu0 0.0
        %2164 = vmatpush1.msra.mxu0 %v2123
        %2165 = vmatprep.subr.mxu0 0.0
        %2166 = vmatpush2.msra.mxu0 0.0
        %2167 = vmatprep.subr.mxu0 0.0
        %2168 = vmatpush2.msra.mxu0 0.0
        %2169 = vmatprep.subr.mxu0 0.0
        %2170 = vmatpush2.msra.mxu0 0.0
        %2171 = vmatprep.subr.mxu0 0.0
        %2172 = vmatpush2.msra.mxu0 0.0
        %2173 = vmatprep.subr.mxu0 0.0
        %2174 = vmatpush2.msra.mxu0 0.0
        %2175 = vmatprep.subr.mxu0 0.0
        %2176 = vmatpush2.msra.mxu0 0.0
        %2177 = vmatprep.subr.mxu0 0.0
        %2178 = vmatpush2.msra.mxu0 0.0
        %2179 = vmatprep.subr.mxu0 0.0
        %2180 = vmatpush2.msra.mxu0 0.0
        %2181 = vmatprep.subr.mxu0 0.0
        %2182 = vmatpush2.msra.mxu0 0.0
        %2183 = vmatprep.subr.mxu0 0.0
        %2184 = vmatpush2.msra.mxu0 0.0
        %2185 = vmatprep.subr.mxu0 0.0
        %2186 = vmatpush2.msra.mxu0 0.0
        %2187 = vmatprep.subr.mxu0 0.0
        %2188 = vmatpush2.msra.mxu0 0.0
        %2189 = vmatprep.subr.mxu0 0.0
        %2190 = vmatpush2.msra.mxu0 0.0
        %2191 = vmatprep.subr.mxu0 0.0
        %2192 = vmatpush2.msra.mxu0 0.0
        %2193 = vmatprep.subr.mxu0 0.0
        %2194 = vmatpush2.msra.mxu0 0.0
        %2195 = vmatprep.subr.mxu0 0.0
        %2196 = vmatpush2.msra.mxu0 0.0
        %2197 = vmatprep.mubr.f32.mxu0 0.0
        %2198 = vmatmul.mubr.f32.gmra.mxu0 %v2128
        %v2199 = vpop.f32.mrf.mxu0
        %v2200 = vadd.f32 0.0, %v2199
        %v2201 = vpop.f32.mrf.mxu0
        %2202 = vmatprep.mubr.f32.mxu0 0.0
        %2203 = vmatmul.mubr.f32.gmra.mxu0 %v2131
        %v2204 = vpop.f32.mrf.mxu0
        %v2205 = vadd.f32 0.0, %v2204
        %v2206 = vpop.f32.mrf.mxu0
        %2207 = vdwg.mxu0
        %v2208 = vadd.f32 %v1509, %v2200
        %v2209 = vadd.f32 %v1510, %v2205
        %v2210 = vsel %vm1511, %v2208, 0.0
        %2211 = vadd.xlane.f32.xlu0 %v2210
        %v2212 = vpop.xlane.xlu0 %2211
        %v2213 = vsel %vm1511, %v2209, 0.0
        %2214 = vadd.xlane.f32.xlu0 %v2213
        %v2215 = vpop.xlane.xlu0 %2214
        %v2216 = vmul.f32 %v2212, %v1518
        %v2217 = vmul.f32 %v2215, %v1518
        %v2218 = vsub.f32 %v2208, %v2216
        %v2219 = vsub.f32 %v2209, %v2217
        %v2220 = vmul.f32 %v2218, %v2218
        %v2221 = vmul.f32 %v2219, %v2219
        %v2222 = vsel %vm1511, %v2220, 0.0
        %2223 = vadd.xlane.f32.xlu0 %v2222
        %v2224 = vpop.xlane.xlu0 %2223
        %v2225 = vsel %vm1511, %v2221, 0.0
        %2226 = vadd.xlane.f32.xlu0 %v2225
        %v2227 = vpop.xlane.xlu0 %2226
        %v2228 = vmul.f32 %v2224, %v1518
        %v2229 = vmul.f32 %v2227, %v1518
        %v2230 = vadd.f32 %v2228, 1e-05
        %v2231 = vadd.f32 %v2229, 1e-05
        %v2232 = vrsqrt.pop %v2230
        %v2233 = vrsqrt.pop %v2231
        %v2234 = vmul.f32 %v2218, %v2232
        %v2235 = vmul.f32 %v2219, %v2233
        %v2236 = vld [vmem:[%s1196] sm:$0x1]
        %v2238 = vlaneseq
        %v2239 = vshrl.u32 %v2238, 7
        %v2240 = vsub.s32 0, %v2239
        %v2241 = vrot.slane %v2236, %v2240
        %v2243 = vmul.f32 %v2234, %v2241
        %v2244 = vmul.f32 %v2235, %v2241
        %v2245 = vld [vmem:[%s1204] sm:$0x1]
        %v2247 = vlaneseq
        %v2248 = vshrl.u32 %v2247, 7
        %v2249 = vsub.s32 0, %v2248
        %v2250 = vrot.slane %v2245, %v2249
        %v2252 = vadd.f32 %v2243, %v2250
        %v2253 = vadd.f32 %v2244, %v2250
        %v2254 = vld [vmem:[%s1213] sm:$0xff]
        %v2255 = vld [vmem:[%s1213 + $0x8] sm:$0xff]
        %v2256 = vld [vmem:[%s1213 + $0x10] sm:$0xff]
        %v2257 = vld [vmem:[%s1213 + $0x18] sm:$0xff]
        %v2258 = vld [vmem:[%s1221] sm:$0x1]
        %v2260 = vlaneseq
        %v2261 = vshrl.u32 %v2260, 7
        %v2262 = vsub.s32 0, %v2261
        %v2263 = vrot.slane %v2258, %v2262
        %v2266 = vsel %vm1511, %v2252, 0
        %v2269 = vsel %vm1511, %v2253, 0
        %2271 = vmatprep.subr.mxu0 0.0
        %2272 = vmatpush1.msra.mxu0 0.0
        %2273 = vmatprep.subr.mxu0 0.0
        %2274 = vmatpush1.msra.mxu0 0.0
        %2275 = vmatprep.subr.mxu0 0.0
        %2276 = vmatpush1.msra.mxu0 0.0
        %2277 = vmatprep.subr.mxu0 0.0
        %2278 = vmatpush1.msra.mxu0 0.0
        %2279 = vmatprep.subr.mxu0 0.0
        %2280 = vmatpush1.msra.mxu0 0.0
        %2281 = vmatprep.subr.mxu0 0.0
        %2282 = vmatpush1.msra.mxu0 0.0
        %2283 = vmatprep.subr.mxu0 0.0
        %2284 = vmatpush1.msra.mxu0 0.0
        %2285 = vmatprep.subr.mxu0 0.0
        %2286 = vmatpush1.msra.mxu0 0.0
        %2287 = vmatprep.subr.mxu0 0.0
        %2288 = vmatpush1.msra.mxu0 0.0
        %2289 = vmatprep.subr.mxu0 0.0
        %2290 = vmatpush1.msra.mxu0 0.0
        %2291 = vmatprep.subr.mxu0 0.0
        %2292 = vmatpush1.msra.mxu0 0.0
        %2293 = vmatprep.subr.mxu0 0.0
        %2294 = vmatpush1.msra.mxu0 0.0
        %2295 = vmatprep.subr.mxu0 0.0
        %2296 = vmatpush1.msra.mxu0 %v2257
        %2297 = vmatprep.subr.mxu0 0.0
        %2298 = vmatpush1.msra.mxu0 %v2256
        %2299 = vmatprep.subr.mxu0 0.0
        %2300 = vmatpush1.msra.mxu0 %v2255
        %2301 = vmatprep.subr.mxu0 0.0
        %2302 = vmatpush1.msra.mxu0 %v2254
        %2303 = vmatprep.subr.mxu0 0.0
        %2304 = vmatpush2.msra.mxu0 0.0
        %2305 = vmatprep.subr.mxu0 0.0
        %2306 = vmatpush2.msra.mxu0 0.0
        %2307 = vmatprep.subr.mxu0 0.0
        %2308 = vmatpush2.msra.mxu0 0.0
        %2309 = vmatprep.subr.mxu0 0.0
        %2310 = vmatpush2.msra.mxu0 0.0
        %2311 = vmatprep.subr.mxu0 0.0
        %2312 = vmatpush2.msra.mxu0 0.0
        %2313 = vmatprep.subr.mxu0 0.0
        %2314 = vmatpush2.msra.mxu0 0.0
        %2315 = vmatprep.subr.mxu0 0.0
        %2316 = vmatpush2.msra.mxu0 0.0
        %2317 = vmatprep.subr.mxu0 0.0
        %2318 = vmatpush2.msra.mxu0 0.0
        %2319 = vmatprep.subr.mxu0 0.0
        %2320 = vmatpush2.msra.mxu0 0.0
        %2321 = vmatprep.subr.mxu0 0.0
        %2322 = vmatpush2.msra.mxu0 0.0
        %2323 = vmatprep.subr.mxu0 0.0
        %2324 = vmatpush2.msra.mxu0 0.0
        %2325 = vmatprep.subr.mxu0 0.0
        %2326 = vmatpush2.msra.mxu0 0.0
        %2327 = vmatprep.subr.mxu0 0.0
        %2328 = vmatpush2.msra.mxu0 0.0
        %2329 = vmatprep.subr.mxu0 0.0
        %2330 = vmatpush2.msra.mxu0 0.0
        %2331 = vmatprep.subr.mxu0 0.0
        %2332 = vmatpush2.msra.mxu0 0.0
        %2333 = vmatprep.subr.mxu0 0.0
        %2334 = vmatpush2.msra.mxu0 0.0
        %2335 = vmatprep.mubr.f32.mxu0 0.0
        %2336 = vmatmul.mubr.f32.gmra.mxu0 %v2266
        %v2337 = vpop.f32.mrf.mxu0
        %v2338 = vadd.f32 %v2263, %v2337
        %v2339 = vpop.f32.mrf.mxu0
        %2340 = vmatprep.mubr.f32.mxu0 0.0
        %2341 = vmatmul.mubr.f32.gmra.mxu0 %v2269
        %v2342 = vpop.f32.mrf.mxu0
        %v2343 = vadd.f32 %v2263, %v2342
        %v2344 = vpop.f32.mrf.mxu0
        %2345 = vdwg.mxu0
        %v2346 = vmax.f32 %v2338, 0.0
        %v2347 = vmax.f32 %v2343, 0.0
        %v2348 = vld [vmem:[%s1405] sm:$0xff]
        %v2349 = vld [vmem:[%s1405 + $0x8] sm:$0xff]
        %v2350 = vld [vmem:[%s1405 + $0x10] sm:$0xff]
        %v2351 = vld [vmem:[%s1405 + $0x18] sm:$0xff]
        %v2352 = vld [vmem:[%s1405 + $0x20] sm:$0xff]
        %v2353 = vld [vmem:[%s1405 + $0x28] sm:$0xff]
        %v2354 = vld [vmem:[%s1405 + $0x30] sm:$0xff]
        %v2355 = vld [vmem:[%s1405 + $0x38] sm:$0xff]
        %v2356 = vld [vmem:[%s1229] sm:$0x1]
        %v2358 = vlaneseq
        %v2359 = vshrl.u32 %v2358, 7
        %v2360 = vsub.s32 0, %v2359
        %v2361 = vrot.slane %v2356, %v2360
        %vm2363 = vcmask 523264
        %v2365 = vsel %vm2363, %v2346, 0
        %v2368 = vsel %vm2363, %v2347, 0
        %2370 = vmatprep.subr.mxu0 0.0
        %2371 = vmatpush1.msra.mxu0 0.0
        %2372 = vmatprep.subr.mxu0 0.0
        %2373 = vmatpush1.msra.mxu0 0.0
        %2374 = vmatprep.subr.mxu0 0.0
        %2375 = vmatpush1.msra.mxu0 0.0
        %2376 = vmatprep.subr.mxu0 0.0
        %2377 = vmatpush1.msra.mxu0 0.0
        %2378 = vmatprep.subr.mxu0 0.0
        %2379 = vmatpush1.msra.mxu0 0.0
        %2380 = vmatprep.subr.mxu0 0.0
        %2381 = vmatpush1.msra.mxu0 0.0
        %2382 = vmatprep.subr.mxu0 0.0
        %2383 = vmatpush1.msra.mxu0 0.0
        %2384 = vmatprep.subr.mxu0 0.0
        %2385 = vmatpush1.msra.mxu0 0.0
        %2386 = vmatprep.subr.mxu0 0.0
        %2387 = vmatpush1.msra.mxu0 %v2355
        %2388 = vmatprep.subr.mxu0 0.0
        %2389 = vmatpush1.msra.mxu0 %v2354
        %2390 = vmatprep.subr.mxu0 0.0
        %2391 = vmatpush1.msra.mxu0 %v2353
        %2392 = vmatprep.subr.mxu0 0.0
        %2393 = vmatpush1.msra.mxu0 %v2352
        %2394 = vmatprep.subr.mxu0 0.0
        %2395 = vmatpush1.msra.mxu0 %v2351
        %2396 = vmatprep.subr.mxu0 0.0
        %2397 = vmatpush1.msra.mxu0 %v2350
        %2398 = vmatprep.subr.mxu0 0.0
        %2399 = vmatpush1.msra.mxu0 %v2349
        %2400 = vmatprep.subr.mxu0 0.0
        %2401 = vmatpush1.msra.mxu0 %v2348
        %2402 = vmatprep.subr.mxu0 0.0
        %2403 = vmatpush2.msra.mxu0 0.0
        %2404 = vmatprep.subr.mxu0 0.0
        %2405 = vmatpush2.msra.mxu0 0.0
        %2406 = vmatprep.subr.mxu0 0.0
        %2407 = vmatpush2.msra.mxu0 0.0
        %2408 = vmatprep.subr.mxu0 0.0
        %2409 = vmatpush2.msra.mxu0 0.0
        %2410 = vmatprep.subr.mxu0 0.0
        %2411 = vmatpush2.msra.mxu0 0.0
        %2412 = vmatprep.subr.mxu0 0.0
        %2413 = vmatpush2.msra.mxu0 0.0
        %2414 = vmatprep.subr.mxu0 0.0
        %2415 = vmatpush2.msra.mxu0 0.0
        %2416 = vmatprep.subr.mxu0 0.0
        %2417 = vmatpush2.msra.mxu0 0.0
        %2418 = vmatprep.subr.mxu0 0.0
        %2419 = vmatpush2.msra.mxu0 0.0
        %2420 = vmatprep.subr.mxu0 0.0
        %2421 = vmatpush2.msra.mxu0 0.0
        %2422 = vmatprep.subr.mxu0 0.0
        %2423 = vmatpush2.msra.mxu0 0.0
        %2424 = vmatprep.subr.mxu0 0.0
        %2425 = vmatpush2.msra.mxu0 0.0
        %2426 = vmatprep.subr.mxu0 0.0
        %2427 = vmatpush2.msra.mxu0 0.0
        %2428 = vmatprep.subr.mxu0 0.0
        %2429 = vmatpush2.msra.mxu0 0.0
        %2430 = vmatprep.subr.mxu0 0.0
        %2431 = vmatpush2.msra.mxu0 0.0
        %2432 = vmatprep.subr.mxu0 0.0
        %2433 = vmatpush2.msra.mxu0 0.0
        %2434 = vmatprep.mubr.f32.mxu0 0.0
        %2435 = vmatmul.mubr.f32.gmra.mxu0 %v2365
        %v2436 = vpop.f32.mrf.mxu0
        %v2437 = vadd.f32 %v2361, %v2436
        %v2438 = vpop.f32.mrf.mxu0
        %2439 = vmatprep.mubr.f32.mxu0 0.0
        %2440 = vmatmul.mubr.f32.gmra.mxu0 %v2368
        %v2441 = vpop.f32.mrf.mxu0
        %v2442 = vadd.f32 %v2361, %v2441
        %v2443 = vpop.f32.mrf.mxu0
        %2444 = vdwg.mxu0
        %v2445 = vadd.f32 %v2208, %v2437
        %v2446 = vadd.f32 %v2209, %v2442
        %2447 = vst.msk [vmem:[#allocation2] sm:$0xff] %vm1511, %v2445
        %2448 = vst.msk [vmem:[#allocation2 + $0x8] sm:$0xff] %vm1511, %v2446
        %p2449 = scmp.eq.s32.totalorder %s92, 1
        // Predicated region
        $region225: #{tpu_custom_call.1} parent=139 // pred_check
          %p2450 = pneg %p2449
        $region226: #{tpu_custom_call.1} parent=139 // pred_check_branch
          %2452 = sbr.rel (%p2450) target = $region228
        $region227: #{tpu_custom_call.1} parent=139 // pred_region
          %v2453 = vld [vmem:[#allocation21] sm:$0x3]
          %v2454 = vld [vmem:[#allocation2] sm:$0xff]
          %v2455 = vld [vmem:[#allocation2 + $0x8] sm:$0xff]
          %vm2456 = vcmask 130048
          %v2458 = vsel %vm2456, %v2453, 0
          %2460 = vmatprep.subr.mxu0 0.0
          %2461 = vmatpush1.msra.mxu0 0.0
          %2462 = vmatprep.subr.mxu0 0.0
          %2463 = vmatpush1.msra.mxu0 0.0
          %2464 = vmatprep.subr.mxu0 0.0
          %2465 = vmatpush1.msra.mxu0 0.0
          %2466 = vmatprep.subr.mxu0 0.0
          %2467 = vmatpush1.msra.mxu0 0.0
          %2468 = vmatprep.subr.mxu0 0.0
          %2469 = vmatpush1.msra.mxu0 0.0
          %2470 = vmatprep.subr.mxu0 0.0
          %2471 = vmatpush1.msra.mxu0 0.0
          %2472 = vmatprep.subr.mxu0 0.0
          %2473 = vmatpush1.msra.mxu0 0.0
          %2474 = vmatprep.subr.mxu0 0.0
          %2475 = vmatpush1.msra.mxu0 0.0
          %2476 = vmatprep.subr.mxu0 0.0
          %2477 = vmatpush1.msra.mxu0 0.0
          %2478 = vmatprep.subr.mxu0 0.0
          %2479 = vmatpush1.msra.mxu0 0.0
          %2480 = vmatprep.subr.mxu0 0.0
          %2481 = vmatpush1.msra.mxu0 0.0
          %2482 = vmatprep.subr.mxu0 0.0
          %2483 = vmatpush1.msra.mxu0 0.0
          %2484 = vmatprep.subr.mxu0 0.0
          %2485 = vmatpush1.msra.mxu0 0.0
          %2486 = vmatprep.subr.mxu0 0.0
          %2487 = vmatpush1.msra.mxu0 0.0
          %2488 = vmatprep.subr.mxu0 0.0
          %2489 = vmatpush1.msra.mxu0 %v2455
          %2490 = vmatprep.subr.mxu0 0.0
          %2491 = vmatpush1.msra.mxu0 %v2454
          %2492 = vmatprep.subr.mxu0 0.0
          %2493 = vmatpush2.msra.mxu0 0.0
          %2494 = vmatprep.subr.mxu0 0.0
          %2495 = vmatpush2.msra.mxu0 0.0
          %2496 = vmatprep.subr.mxu0 0.0
          %2497 = vmatpush2.msra.mxu0 0.0
          %2498 = vmatprep.subr.mxu0 0.0
          %2499 = vmatpush2.msra.mxu0 0.0
          %2500 = vmatprep.subr.mxu0 0.0
          %2501 = vmatpush2.msra.mxu0 0.0
          %2502 = vmatprep.subr.mxu0 0.0
          %2503 = vmatpush2.msra.mxu0 0.0
          %2504 = vmatprep.subr.mxu0 0.0
          %2505 = vmatpush2.msra.mxu0 0.0
          %2506 = vmatprep.subr.mxu0 0.0
          %2507 = vmatpush2.msra.mxu0 0.0
          %2508 = vmatprep.subr.mxu0 0.0
          %2509 = vmatpush2.msra.mxu0 0.0
          %2510 = vmatprep.subr.mxu0 0.0
          %2511 = vmatpush2.msra.mxu0 0.0
          %2512 = vmatprep.subr.mxu0 0.0
          %2513 = vmatpush2.msra.mxu0 0.0
          %2514 = vmatprep.subr.mxu0 0.0
          %2515 = vmatpush2.msra.mxu0 0.0
          %2516 = vmatprep.subr.mxu0 0.0
          %2517 = vmatpush2.msra.mxu0 0.0
          %2518 = vmatprep.subr.mxu0 0.0
          %2519 = vmatpush2.msra.mxu0 0.0
          %2520 = vmatprep.subr.mxu0 0.0
          %2521 = vmatpush2.msra.mxu0 0.0
          %2522 = vmatprep.subr.mxu0 0.0
          %2523 = vmatpush2.msra.mxu0 0.0
          %2524 = vmatprep.mubr.f32.mxu0 0.0
          %2525 = vmatmul.mubr.f32.gmra.mxu0 %v2458
          %v2526 = vpop.f32.mrf.mxu0
          %v2527 = vadd.f32 0.0, %v2526
          %v2528 = vpop.f32.mrf.mxu0
          %2529 = vdwg.mxu0
          %v2530 = vld [vmem:[%s35] sm:$0xff]
          %v2531 = vld [vmem:[%s35 + $0x8] sm:$0xff]
          %v2532 = vld [vmem:[%s35 + $0x10] sm:$0xff]
          %v2533 = vld [vmem:[%s35 + $0x18] sm:$0xff]
          %v2534 = vld [vmem:[#allocation23] sm:$0x1]
          %v2536 = vlaneseq
          %v2537 = vshrl.u32 %v2536, 7
          %v2538 = vsub.s32 0, %v2537
          %v2539 = vrot.slane %v2534, %v2538
          %v2542 = vsel %vm1511, %v2527, 0
          %2544 = vmatprep.subr.mxu0 0.0
          %2545 = vmatpush1.msra.mxu0 0.0
          %2546 = vmatprep.subr.mxu0 0.0
          %2547 = vmatpush1.msra.mxu0 0.0
          %2548 = vmatprep.subr.mxu0 0.0
          %2549 = vmatpush1.msra.mxu0 0.0
          %2550 = vmatprep.subr.mxu0 0.0
          %2551 = vmatpush1.msra.mxu0 0.0
          %2552 = vmatprep.subr.mxu0 0.0
          %2553 = vmatpush1.msra.mxu0 0.0
          %2554 = vmatprep.subr.mxu0 0.0
          %2555 = vmatpush1.msra.mxu0 0.0
          %2556 = vmatprep.subr.mxu0 0.0
          %2557 = vmatpush1.msra.mxu0 0.0
          %2558 = vmatprep.subr.mxu0 0.0
          %2559 = vmatpush1.msra.mxu0 0.0
          %2560 = vmatprep.subr.mxu0 0.0
          %2561 = vmatpush1.msra.mxu0 0.0
          %2562 = vmatprep.subr.mxu0 0.0
          %2563 = vmatpush1.msra.mxu0 0.0
          %2564 = vmatprep.subr.mxu0 0.0
          %2565 = vmatpush1.msra.mxu0 0.0
          %2566 = vmatprep.subr.mxu0 0.0
          %2567 = vmatpush1.msra.mxu0 0.0
          %2568 = vmatprep.subr.mxu0 0.0
          %2569 = vmatpush1.msra.mxu0 %v2533
          %2570 = vmatprep.subr.mxu0 0.0
          %2571 = vmatpush1.msra.mxu0 %v2532
          %2572 = vmatprep.subr.mxu0 0.0
          %2573 = vmatpush1.msra.mxu0 %v2531
          %2574 = vmatprep.subr.mxu0 0.0
          %2575 = vmatpush1.msra.mxu0 %v2530
          %2576 = vmatprep.subr.mxu0 0.0
          %2577 = vmatpush2.msra.mxu0 0.0
          %2578 = vmatprep.subr.mxu0 0.0
          %2579 = vmatpush2.msra.mxu0 0.0
          %2580 = vmatprep.subr.mxu0 0.0
          %2581 = vmatpush2.msra.mxu0 0.0
          %2582 = vmatprep.subr.mxu0 0.0
          %2583 = vmatpush2.msra.mxu0 0.0
          %2584 = vmatprep.subr.mxu0 0.0
          %2585 = vmatpush2.msra.mxu0 0.0
          %2586 = vmatprep.subr.mxu0 0.0
          %2587 = vmatpush2.msra.mxu0 0.0
          %2588 = vmatprep.subr.mxu0 0.0
          %2589 = vmatpush2.msra.mxu0 0.0
          %2590 = vmatprep.subr.mxu0 0.0
          %2591 = vmatpush2.msra.mxu0 0.0
          %2592 = vmatprep.subr.mxu0 0.0
          %2593 = vmatpush2.msra.mxu0 0.0
          %2594 = vmatprep.subr.mxu0 0.0
          %2595 = vmatpush2.msra.mxu0 0.0
          %2596 = vmatprep.subr.mxu0 0.0
          %2597 = vmatpush2.msra.mxu0 0.0
          %2598 = vmatprep.subr.mxu0 0.0
          %2599 = vmatpush2.msra.mxu0 0.0
          %2600 = vmatprep.subr.mxu0 0.0
          %2601 = vmatpush2.msra.mxu0 0.0
          %2602 = vmatprep.subr.mxu0 0.0
          %2603 = vmatpush2.msra.mxu0 0.0
          %2604 = vmatprep.subr.mxu0 0.0
          %2605 = vmatpush2.msra.mxu0 0.0
          %2606 = vmatprep.subr.mxu0 0.0
          %2607 = vmatpush2.msra.mxu0 0.0
          %2608 = vmatprep.mubr.f32.mxu0 0.0
          %2609 = vmatmul.mubr.f32.gmra.mxu0 %v2542
          %v2610 = vpop.f32.mrf.mxu0
          %v2611 = vadd.f32 %v2539, %v2610
          %v2612 = vpop.f32.mrf.mxu0
          %2613 = vdwg.mxu0
          %v2614 = vld [vmem:[#allocation24] sm:$0x3]
          %v2615 = vld [vmem:[#allocation26] sm:$0xff]
          %v2616 = vld [vmem:[#allocation26 + $0x8] sm:$0xff]
          %v2617 = vld [vmem:[#allocation27] sm:$0x1]
          %v2619 = vlaneseq
          %v2620 = vshrl.u32 %v2619, 7
          %v2621 = vsub.s32 0, %v2620
          %v2622 = vrot.slane %v2617, %v2621
          %v2625 = vsel %vm2456, %v2614, 0
          %2627 = vmatprep.subr.mxu0 0.0
          %2628 = vmatpush1.msra.mxu0 0.0
          %2629 = vmatprep.subr.mxu0 0.0
          %2630 = vmatpush1.msra.mxu0 0.0
          %2631 = vmatprep.subr.mxu0 0.0
          %2632 = vmatpush1.msra.mxu0 0.0
          %2633 = vmatprep.subr.mxu0 0.0
          %2634 = vmatpush1.msra.mxu0 0.0
          %2635 = vmatprep.subr.mxu0 0.0
          %2636 = vmatpush1.msra.mxu0 0.0
          %2637 = vmatprep.subr.mxu0 0.0
          %2638 = vmatpush1.msra.mxu0 0.0
          %2639 = vmatprep.subr.mxu0 0.0
          %2640 = vmatpush1.msra.mxu0 0.0
          %2641 = vmatprep.subr.mxu0 0.0
          %2642 = vmatpush1.msra.mxu0 0.0
          %2643 = vmatprep.subr.mxu0 0.0
          %2644 = vmatpush1.msra.mxu0 0.0
          %2645 = vmatprep.subr.mxu0 0.0
          %2646 = vmatpush1.msra.mxu0 0.0
          %2647 = vmatprep.subr.mxu0 0.0
          %2648 = vmatpush1.msra.mxu0 0.0
          %2649 = vmatprep.subr.mxu0 0.0
          %2650 = vmatpush1.msra.mxu0 0.0
          %2651 = vmatprep.subr.mxu0 0.0
          %2652 = vmatpush1.msra.mxu0 0.0
          %2653 = vmatprep.subr.mxu0 0.0
          %2654 = vmatpush1.msra.mxu0 0.0
          %2655 = vmatprep.subr.mxu0 0.0
          %2656 = vmatpush1.msra.mxu0 %v2616
          %2657 = vmatprep.subr.mxu0 0.0
          %2658 = vmatpush1.msra.mxu0 %v2615
          %2659 = vmatprep.subr.mxu0 0.0
          %2660 = vmatpush2.msra.mxu0 0.0
          %2661 = vmatprep.subr.mxu0 0.0
          %2662 = vmatpush2.msra.mxu0 0.0
          %2663 = vmatprep.subr.mxu0 0.0
          %2664 = vmatpush2.msra.mxu0 0.0
          %2665 = vmatprep.subr.mxu0 0.0
          %2666 = vmatpush2.msra.mxu0 0.0
          %2667 = vmatprep.subr.mxu0 0.0
          %2668 = vmatpush2.msra.mxu0 0.0
          %2669 = vmatprep.subr.mxu0 0.0
          %2670 = vmatpush2.msra.mxu0 0.0
          %2671 = vmatprep.subr.mxu0 0.0
          %2672 = vmatpush2.msra.mxu0 0.0
          %2673 = vmatprep.subr.mxu0 0.0
          %2674 = vmatpush2.msra.mxu0 0.0
          %2675 = vmatprep.subr.mxu0 0.0
          %2676 = vmatpush2.msra.mxu0 0.0
          %2677 = vmatprep.subr.mxu0 0.0
          %2678 = vmatpush2.msra.mxu0 0.0
          %2679 = vmatprep.subr.mxu0 0.0
          %2680 = vmatpush2.msra.mxu0 0.0
          %2681 = vmatprep.subr.mxu0 0.0
          %2682 = vmatpush2.msra.mxu0 0.0
          %2683 = vmatprep.subr.mxu0 0.0
          %2684 = vmatpush2.msra.mxu0 0.0
          %2685 = vmatprep.subr.mxu0 0.0
          %2686 = vmatpush2.msra.mxu0 0.0
          %2687 = vmatprep.subr.mxu0 0.0
          %2688 = vmatpush2.msra.mxu0 0.0
          %2689 = vmatprep.subr.mxu0 0.0
          %2690 = vmatpush2.msra.mxu0 0.0
          %2691 = vmatprep.mubr.f32.mxu0 0.0
          %2692 = vmatmul.mubr.f32.gmra.mxu0 %v2625
          %v2693 = vpop.f32.mrf.mxu0
          %v2694 = vadd.f32 %v2622, %v2693
          %v2695 = vpop.f32.mrf.mxu0
          %2696 = vdwg.mxu0
          %v2697 = vmax.f32 %v2694, 0.0
          %v2698 = vld [vmem:[%s45] sm:$0xff]
          %v2699 = vld [vmem:[%s45 + $0x8] sm:$0xff]
          %v2700 = vld [vmem:[%s45 + $0x10] sm:$0xff]
          %v2701 = vld [vmem:[%s45 + $0x18] sm:$0xff]
          %v2702 = vld [vmem:[#allocation29] sm:$0x1]
          %v2704 = vlaneseq
          %v2705 = vshrl.u32 %v2704, 7
          %v2706 = vsub.s32 0, %v2705
          %v2707 = vrot.slane %v2702, %v2706
          %v2710 = vsel %vm1511, %v2697, 0
          %2712 = vmatprep.subr.mxu0 0.0
          %2713 = vmatpush1.msra.mxu0 0.0
          %2714 = vmatprep.subr.mxu0 0.0
          %2715 = vmatpush1.msra.mxu0 0.0
          %2716 = vmatprep.subr.mxu0 0.0
          %2717 = vmatpush1.msra.mxu0 0.0
          %2718 = vmatprep.subr.mxu0 0.0
          %2719 = vmatpush1.msra.mxu0 0.0
          %2720 = vmatprep.subr.mxu0 0.0
          %2721 = vmatpush1.msra.mxu0 0.0
          %2722 = vmatprep.subr.mxu0 0.0
          %2723 = vmatpush1.msra.mxu0 0.0
          %2724 = vmatprep.subr.mxu0 0.0
          %2725 = vmatpush1.msra.mxu0 0.0
          %2726 = vmatprep.subr.mxu0 0.0
          %2727 = vmatpush1.msra.mxu0 0.0
          %2728 = vmatprep.subr.mxu0 0.0
          %2729 = vmatpush1.msra.mxu0 0.0
          %2730 = vmatprep.subr.mxu0 0.0
          %2731 = vmatpush1.msra.mxu0 0.0
          %2732 = vmatprep.subr.mxu0 0.0
          %2733 = vmatpush1.msra.mxu0 0.0
          %2734 = vmatprep.subr.mxu0 0.0
          %2735 = vmatpush1.msra.mxu0 0.0
          %2736 = vmatprep.subr.mxu0 0.0
          %2737 = vmatpush1.msra.mxu0 %v2701
          %2738 = vmatprep.subr.mxu0 0.0
          %2739 = vmatpush1.msra.mxu0 %v2700
          %2740 = vmatprep.subr.mxu0 0.0
          %2741 = vmatpush1.msra.mxu0 %v2699
          %2742 = vmatprep.subr.mxu0 0.0
          %2743 = vmatpush1.msra.mxu0 %v2698
          %2744 = vmatprep.subr.mxu0 0.0
          %2745 = vmatpush2.msra.mxu0 0.0
          %2746 = vmatprep.subr.mxu0 0.0
          %2747 = vmatpush2.msra.mxu0 0.0
          %2748 = vmatprep.subr.mxu0 0.0
          %2749 = vmatpush2.msra.mxu0 0.0
          %2750 = vmatprep.subr.mxu0 0.0
          %2751 = vmatpush2.msra.mxu0 0.0
          %2752 = vmatprep.subr.mxu0 0.0
          %2753 = vmatpush2.msra.mxu0 0.0
          %2754 = vmatprep.subr.mxu0 0.0
          %2755 = vmatpush2.msra.mxu0 0.0
          %2756 = vmatprep.subr.mxu0 0.0
          %2757 = vmatpush2.msra.mxu0 0.0
          %2758 = vmatprep.subr.mxu0 0.0
          %2759 = vmatpush2.msra.mxu0 0.0
          %2760 = vmatprep.subr.mxu0 0.0
          %2761 = vmatpush2.msra.mxu0 0.0
          %2762 = vmatprep.subr.mxu0 0.0
          %2763 = vmatpush2.msra.mxu0 0.0
          %2764 = vmatprep.subr.mxu0 0.0
          %2765 = vmatpush2.msra.mxu0 0.0
          %2766 = vmatprep.subr.mxu0 0.0
          %2767 = vmatpush2.msra.mxu0 0.0
          %2768 = vmatprep.subr.mxu0 0.0
          %2769 = vmatpush2.msra.mxu0 0.0
          %2770 = vmatprep.subr.mxu0 0.0
          %2771 = vmatpush2.msra.mxu0 0.0
          %2772 = vmatprep.subr.mxu0 0.0
          %2773 = vmatpush2.msra.mxu0 0.0
          %2774 = vmatprep.subr.mxu0 0.0
          %2775 = vmatpush2.msra.mxu0 0.0
          %2776 = vmatprep.mubr.f32.mxu0 0.0
          %2777 = vmatmul.mubr.f32.gmra.mxu0 %v2710
          %v2778 = vpop.f32.mrf.mxu0
          %v2779 = vadd.f32 %v2707, %v2778
          %v2780 = vpop.f32.mrf.mxu0
          %2781 = vdwg.mxu0
          %v2782 = vld [vmem:[#allocation30] sm:$0xff]
          %v2783 = vld [vmem:[#allocation32] sm:$0xff]
          %v2784 = vld [vmem:[%s55] sm:$0x1]
          %v2786 = vlaneseq
          %v2787 = vshrl.u32 %v2786, 7
          %v2788 = vsub.s32 0, %v2787
          %v2789 = vrot.slane %v2784, %v2788
          %v2792 = vsel %vm1954, %v2782, 0
          %2794 = vmatprep.subr.mxu0 0.0
          %2795 = vmatpush1.msra.mxu0 0.0
          %2796 = vmatprep.subr.mxu0 0.0
          %2797 = vmatpush1.msra.mxu0 0.0
          %2798 = vmatprep.subr.mxu0 0.0
          %2799 = vmatpush1.msra.mxu0 0.0
          %2800 = vmatprep.subr.mxu0 0.0
          %2801 = vmatpush1.msra.mxu0 0.0
          %2802 = vmatprep.subr.mxu0 0.0
          %2803 = vmatpush1.msra.mxu0 0.0
          %2804 = vmatprep.subr.mxu0 0.0
          %2805 = vmatpush1.msra.mxu0 0.0
          %2806 = vmatprep.subr.mxu0 0.0
          %2807 = vmatpush1.msra.mxu0 0.0
          %2808 = vmatprep.subr.mxu0 0.0
          %2809 = vmatpush1.msra.mxu0 0.0
          %2810 = vmatprep.subr.mxu0 0.0
          %2811 = vmatpush1.msra.mxu0 0.0
          %2812 = vmatprep.subr.mxu0 0.0
          %2813 = vmatpush1.msra.mxu0 0.0
          %2814 = vmatprep.subr.mxu0 0.0
          %2815 = vmatpush1.msra.mxu0 0.0
          %2816 = vmatprep.subr.mxu0 0.0
          %2817 = vmatpush1.msra.mxu0 0.0
          %2818 = vmatprep.subr.mxu0 0.0
          %2819 = vmatpush1.msra.mxu0 0.0
          %2820 = vmatprep.subr.mxu0 0.0
          %2821 = vmatpush1.msra.mxu0 0.0
          %2822 = vmatprep.subr.mxu0 0.0
          %2823 = vmatpush1.msra.mxu0 0.0
          %2824 = vmatprep.subr.mxu0 0.0
          %2825 = vmatpush1.msra.mxu0 %v2783
          %2826 = vmatprep.subr.mxu0 0.0
          %2827 = vmatpush2.msra.mxu0 0.0
          %2828 = vmatprep.subr.mxu0 0.0
          %2829 = vmatpush2.msra.mxu0 0.0
          %2830 = vmatprep.subr.mxu0 0.0
          %2831 = vmatpush2.msra.mxu0 0.0
          %2832 = vmatprep.subr.mxu0 0.0
          %2833 = vmatpush2.msra.mxu0 0.0
          %2834 = vmatprep.subr.mxu0 0.0
          %2835 = vmatpush2.msra.mxu0 0.0
          %2836 = vmatprep.subr.mxu0 0.0
          %2837 = vmatpush2.msra.mxu0 0.0
          %2838 = vmatprep.subr.mxu0 0.0
          %2839 = vmatpush2.msra.mxu0 0.0
          %2840 = vmatprep.subr.mxu0 0.0
          %2841 = vmatpush2.msra.mxu0 0.0
          %2842 = vmatprep.subr.mxu0 0.0
          %2843 = vmatpush2.msra.mxu0 0.0
          %2844 = vmatprep.subr.mxu0 0.0
          %2845 = vmatpush2.msra.mxu0 0.0
          %2846 = vmatprep.subr.mxu0 0.0
          %2847 = vmatpush2.msra.mxu0 0.0
          %2848 = vmatprep.subr.mxu0 0.0
          %2849 = vmatpush2.msra.mxu0 0.0
          %2850 = vmatprep.subr.mxu0 0.0
          %2851 = vmatpush2.msra.mxu0 0.0
          %2852 = vmatprep.subr.mxu0 0.0
          %2853 = vmatpush2.msra.mxu0 0.0
          %2854 = vmatprep.subr.mxu0 0.0
          %2855 = vmatpush2.msra.mxu0 0.0
          %2856 = vmatprep.subr.mxu0 0.0
          %2857 = vmatpush2.msra.mxu0 0.0
          %2858 = vmatprep.mubr.f32.mxu0 0.0
          %2859 = vmatmul.mubr.f32.gmra.mxu0 %v2792
          %v2860 = vpop.f32.mrf.mxu0
          %v2861 = vadd.f32 %v2789, %v2860
          %v2862 = vpop.f32.mrf.mxu0
          %2863 = vdwg.mxu0
          %v2864 = vmax.f32 %v2861, 0.0
          %v2865 = vld [vmem:[#allocation33] sm:$0xff]
          %v2866 = vld [vmem:[#allocation33 + $0x8] sm:$0xff]
          %v2867 = vld [vmem:[#allocation33 + $0x10] sm:$0xff]
          %v2868 = vld [vmem:[#allocation33 + $0x18] sm:$0xff]
          %v2869 = vld [vmem:[%s59] sm:$0x1]
          %v2871 = vlaneseq
          %v2872 = vshrl.u32 %v2871, 7
          %v2873 = vsub.s32 0, %v2872
          %v2874 = vrot.slane %v2869, %v2873
          %v2877 = vsel %vm1511, %v2864, 0
          %2879 = vmatprep.subr.mxu0 0.0
          %2880 = vmatpush1.msra.mxu0 0.0
          %2881 = vmatprep.subr.mxu0 0.0
          %2882 = vmatpush1.msra.mxu0 0.0
          %2883 = vmatprep.subr.mxu0 0.0
          %2884 = vmatpush1.msra.mxu0 0.0
          %2885 = vmatprep.subr.mxu0 0.0
          %2886 = vmatpush1.msra.mxu0 0.0
          %2887 = vmatprep.subr.mxu0 0.0
          %2888 = vmatpush1.msra.mxu0 0.0
          %2889 = vmatprep.subr.mxu0 0.0
          %2890 = vmatpush1.msra.mxu0 0.0
          %2891 = vmatprep.subr.mxu0 0.0
          %2892 = vmatpush1.msra.mxu0 0.0
          %2893 = vmatprep.subr.mxu0 0.0
          %2894 = vmatpush1.msra.mxu0 0.0
          %2895 = vmatprep.subr.mxu0 0.0
          %2896 = vmatpush1.msra.mxu0 0.0
          %2897 = vmatprep.subr.mxu0 0.0
          %2898 = vmatpush1.msra.mxu0 0.0
          %2899 = vmatprep.subr.mxu0 0.0
          %2900 = vmatpush1.msra.mxu0 0.0
          %2901 = vmatprep.subr.mxu0 0.0
          %2902 = vmatpush1.msra.mxu0 0.0
          %2903 = vmatprep.subr.mxu0 0.0
          %2904 = vmatpush1.msra.mxu0 %v2868
          %2905 = vmatprep.subr.mxu0 0.0
          %2906 = vmatpush1.msra.mxu0 %v2867
          %2907 = vmatprep.subr.mxu0 0.0
          %2908 = vmatpush1.msra.mxu0 %v2866
          %2909 = vmatprep.subr.mxu0 0.0
          %2910 = vmatpush1.msra.mxu0 %v2865
          %2911 = vmatprep.subr.mxu0 0.0
          %2912 = vmatpush2.msra.mxu0 0.0
          %2913 = vmatprep.subr.mxu0 0.0
          %2914 = vmatpush2.msra.mxu0 0.0
          %2915 = vmatprep.subr.mxu0 0.0
          %2916 = vmatpush2.msra.mxu0 0.0
          %2917 = vmatprep.subr.mxu0 0.0
          %2918 = vmatpush2.msra.mxu0 0.0
          %2919 = vmatprep.subr.mxu0 0.0
          %2920 = vmatpush2.msra.mxu0 0.0
          %2921 = vmatprep.subr.mxu0 0.0
          %2922 = vmatpush2.msra.mxu0 0.0
          %2923 = vmatprep.subr.mxu0 0.0
          %2924 = vmatpush2.msra.mxu0 0.0
          %2925 = vmatprep.subr.mxu0 0.0
          %2926 = vmatpush2.msra.mxu0 0.0
          %2927 = vmatprep.subr.mxu0 0.0
          %2928 = vmatpush2.msra.mxu0 0.0
          %2929 = vmatprep.subr.mxu0 0.0
          %2930 = vmatpush2.msra.mxu0 0.0
          %2931 = vmatprep.subr.mxu0 0.0
          %2932 = vmatpush2.msra.mxu0 0.0
          %2933 = vmatprep.subr.mxu0 0.0
          %2934 = vmatpush2.msra.mxu0 0.0
          %2935 = vmatprep.subr.mxu0 0.0
          %2936 = vmatpush2.msra.mxu0 0.0
          %2937 = vmatprep.subr.mxu0 0.0
          %2938 = vmatpush2.msra.mxu0 0.0
          %2939 = vmatprep.subr.mxu0 0.0
          %2940 = vmatpush2.msra.mxu0 0.0
          %2941 = vmatprep.subr.mxu0 0.0
          %2942 = vmatpush2.msra.mxu0 0.0
          %2943 = vmatprep.mubr.f32.mxu0 0.0
          %2944 = vmatmul.mubr.f32.gmra.mxu0 %v2877
          %v2945 = vpop.f32.mrf.mxu0
          %v2946 = vadd.f32 %v2874, %v2945
          %v2947 = vpop.f32.mrf.mxu0
          %2948 = vdwg.mxu0
          %v2949 = vld [vmem:[%s51] sm:$0x3]
          %v2951 = vsel %vm1954, %v2949, 0
          %2953 = vmatprep.subr.mxu0 0.0
          %2954 = vmatpush1.msra.mxu0 0.0
          %2955 = vmatprep.subr.mxu0 0.0
          %2956 = vmatpush1.msra.mxu0 0.0
          %2957 = vmatprep.subr.mxu0 0.0
          %2958 = vmatpush1.msra.mxu0 0.0
          %2959 = vmatprep.subr.mxu0 0.0
          %2960 = vmatpush1.msra.mxu0 0.0
          %2961 = vmatprep.subr.mxu0 0.0
          %2962 = vmatpush1.msra.mxu0 0.0
          %2963 = vmatprep.subr.mxu0 0.0
          %2964 = vmatpush1.msra.mxu0 0.0
          %2965 = vmatprep.subr.mxu0 0.0
          %2966 = vmatpush1.msra.mxu0 0.0
          %2967 = vmatprep.subr.mxu0 0.0
          %2968 = vmatpush1.msra.mxu0 0.0
          %2969 = vmatprep.subr.mxu0 0.0
          %2970 = vmatpush1.msra.mxu0 0.0
          %2971 = vmatprep.subr.mxu0 0.0
          %2972 = vmatpush1.msra.mxu0 0.0
          %2973 = vmatprep.subr.mxu0 0.0
          %2974 = vmatpush1.msra.mxu0 0.0
          %2975 = vmatprep.subr.mxu0 0.0
          %2976 = vmatpush1.msra.mxu0 0.0
          %2977 = vmatprep.subr.mxu0 0.0
          %2978 = vmatpush1.msra.mxu0 0.0
          %2979 = vmatprep.subr.mxu0 0.0
          %2980 = vmatpush1.msra.mxu0 0.0
          %2981 = vmatprep.subr.mxu0 0.0
          %2982 = vmatpush1.msra.mxu0 0.0
          %2983 = vmatprep.subr.mxu0 0.0
          %2984 = vmatpush1.msra.mxu0 %v2946
          %2985 = vmatprep.subr.mxu0 0.0
          %2986 = vmatpush2.msra.mxu0 0.0
          %2987 = vmatprep.subr.mxu0 0.0
          %2988 = vmatpush2.msra.mxu0 0.0
          %2989 = vmatprep.subr.mxu0 0.0
          %2990 = vmatpush2.msra.mxu0 0.0
          %2991 = vmatprep.subr.mxu0 0.0
          %2992 = vmatpush2.msra.mxu0 0.0
          %2993 = vmatprep.subr.mxu0 0.0
          %2994 = vmatpush2.msra.mxu0 0.0
          %2995 = vmatprep.subr.mxu0 0.0
          %2996 = vmatpush2.msra.mxu0 0.0
          %2997 = vmatprep.subr.mxu0 0.0
          %2998 = vmatpush2.msra.mxu0 0.0
          %2999 = vmatprep.subr.mxu0 0.0
          %3000 = vmatpush2.msra.mxu0 0.0
          %3001 = vmatprep.subr.mxu0 0.0
          %3002 = vmatpush2.msra.mxu0 0.0
          %3003 = vmatprep.subr.mxu0 0.0
          %3004 = vmatpush2.msra.mxu0 0.0
          %3005 = vmatprep.subr.mxu0 0.0
          %3006 = vmatpush2.msra.mxu0 0.0
          %3007 = vmatprep.subr.mxu0 0.0
          %3008 = vmatpush2.msra.mxu0 0.0
          %3009 = vmatprep.subr.mxu0 0.0
          %3010 = vmatpush2.msra.mxu0 0.0
          %3011 = vmatprep.subr.mxu0 0.0
          %3012 = vmatpush2.msra.mxu0 0.0
          %3013 = vmatprep.subr.mxu0 0.0
          %3014 = vmatpush2.msra.mxu0 0.0
          %3015 = vmatprep.subr.mxu0 0.0
          %3016 = vmatpush2.msra.mxu0 0.0
          %3017 = vmatprep.mubr.f32.mxu0 0.0
          %3018 = vmatmul.mubr.f32.gmra.mxu0 %v2951
          %v3019 = vpop.f32.mrf.mxu0
          %v3020 = vadd.f32 0.0, %v3019
          %v3021 = vpop.f32.mrf.mxu0
          %3022 = vdwg.mxu0
          %v3023 = vadd.f32 %v2611, %v2779
          %v3024 = vadd.f32 %v3023, %v3020
          %vm3025 = vcmask 254976
          %3026 = vst.msk [vmem:[#allocation35] sm:$0x3] %vm3025, %v3024
        $region228: #{tpu_custom_call.1} parent=139 // pred_fallthru
          _
        // Predicated region
        $region229: #{tpu_custom_call.1} parent=139 // pred_check
          %p3027 = pneg %p795
        $region230: #{tpu_custom_call.1} parent=139 // pred_check_branch
          %3029 = sbr.rel (%p3027) target = $region232
        $region231: #{tpu_custom_call.1} parent=139 // pred_region
          %s3031 = ssub.s32 32, 32
          %3032 = vsyncadd [#allocation5], %s3031
          %s3034 = sshll.u32 [#allocation35], 4
          %s3035 = int_to_ptr.vmem [resolvable:$true] %s3034
          %3037 = dma.vmem_to_hbm [thread:$0]  %s3035, 32, %s61, [#allocation5]
        $region232: #{tpu_custom_call.1} parent=139 // pred_fallthru
          _
        // Predicated region
        $region233: #{tpu_custom_call.1} parent=139 // pred_check
          %p3038 = pneg %p795
        $region234: #{tpu_custom_call.1} parent=139 // pred_check_branch
          %3040 = sbr.rel (%p3038) target = $region236
        $region235: #{tpu_custom_call.1} parent=139 // pred_region
          %3041 = dma.done [#allocation5], 32
        $region236: #{tpu_custom_call.1} parent=139 // pred_fallthru
          _
      $region140: #{tpu_custom_call.1} parent=5 // pred_fallthru
        _
      %p3042 = scmp.le.s32.totalorder 2, %s87
      // Predicated region
      $region237: #{tpu_custom_call.1} parent=5 // pred_check
        %p3043 = pneg %p3042
      $region238: #{tpu_custom_call.1} parent=5 // pred_check_branch
        %3045 = sbr.rel (%p3043) target = $region240
      $region239: #{tpu_custom_call.1} parent=5 // pred_region
        %s3046 = ssub.s32 %s87, 2
      $region240: #{tpu_custom_call.1} parent=5 // pred_fallthru
        _
    $region6: #{tpu_custom_call.1} parent=1 // loop_footer
      %s91 = sadd.s32 1, %s87
    $region7: #{tpu_custom_call.1} parent=1 // loop_footer_branch
      %86 = sbr.rel target = $region3
    $region8: #{tpu_custom_call.1} parent=1 // loop_exit
      _
    %3047 = vsyncpa [#allocation4], 1
    %s3048 = scalar_lea.sflag [#allocation4], 1
    %3049 = vsyncpa %s3048, 1
    %3050 = vsyncpa [#allocation7], 1
    %3051 = vsyncpa [#allocation10], 1
    %s3052 = scalar_lea.sflag [#allocation10], 1
    %3053 = vsyncpa %s3052, 1
    %3054 = vsyncpa [#allocation13], 1
    %s3055 = scalar_lea.sflag [#allocation13], 1
    %3056 = vsyncpa %s3055, 1
    %3057 = vsyncpa [#allocation16], 1
    %s3058 = scalar_lea.sflag [#allocation16], 1
    %3059 = vsyncpa %s3058, 1
    %3060 = vsyncpa [#allocation19], 1
    %s3061 = scalar_lea.sflag [#allocation19], 1
    %3062 = vsyncpa %s3061, 1
    %3063 = vsyncpa [#allocation22], 1
    %3064 = vsyncpa [#allocation25], 1
    %3065 = vsyncpa [#allocation28], 1
    %3066 = vsyncpa [#allocation31], 1
    %3067 = vsyncpa [#allocation34], 1
    %3068 = vsyncpa [#allocation5], 1
    %s3069 = scalar_lea.sflag [#allocation5], 1
    %3070 = vsyncpa %s3069, 1

</llo_original>
